<compile_context>
chip_gen: v7x
topology: tpu7x:2x2x1
jax: 0.10.0
libtpu: 0.0.40
codegen_flags: <defaults>
</compile_context>

<pallas_src>
import functools
import math

import jax
import jax.numpy as jnp
from jax.experimental import pallas as pl
from jax.experimental.pallas import tpu as pltpu

_CW = 256          # conv3 output-channel chunk width (keep >=256: full MXU width)
_C3 = 1024         # conv3 output channels


def _round_up(v, m):
    return ((v + m - 1) // m) * m


def _stn3d_conv_pool_kernel(x_ref,            # (3, Mt)   f32, Mt = bt*nt
                            w1_ref, b1_ref,   # (3, 64)   f32 / (1, 64)   f32
                            w2_ref, b2_ref,   # (64, 128) bf16 / (1, 128) f32
                            w3_ref, b3_ref,   # (128,1024) bf16 / (1,1024) f32
                            feat_ref,         # (bt, 1024) f32 out block (resident over ni)
                            acc_ref,          # (bt*8, 1024) f32 running-max scratch
                            *, bt, nt):
    ni = pl.program_id(1)

    @pl.when(ni == 0)
    def _init():
        acc_ref[...] = jnp.full(acc_ref.shape, -jnp.inf, dtype=acc_ref.dtype)

    x = x_ref[...]                                                # (3, Mt) f32

    # conv1: contract the channel axis (K=3).  Negligible FLOPs; kept in f32
    # for precision on raw coordinates.
    h = jax.lax.dot_general(x, w1_ref[...],
                            dimension_numbers=(((0,), (0,)), ((), ())),
                            preferred_element_type=jnp.float32)   # (Mt, 64)
    h = jnp.maximum(h + b1_ref[...], 0.0)

    # conv2 on the MXU in bf16, f32 accumulation.
    h = jnp.dot(h.astype(jnp.bfloat16), w2_ref[...],
                preferred_element_type=jnp.float32)               # (Mt, 128)
    h = jnp.maximum(h + b2_ref[...], 0.0)
    h = h.astype(jnp.bfloat16)

    # conv3 in output-channel chunks of _CW columns (4x smaller f32 temp).
    # Per-batch max over points is accumulated into an (8, 1024) slab per
    # batch with elementwise VPU maxima; the 8->1 cross-sublane reduce plus
    # conv3 bias + ReLU are deferred to the finalize branch.
    for c in range(_C3 // _CW):
        z = jnp.dot(h, w3_ref[:, c * _CW:(c + 1) * _CW],
                    preferred_element_type=jnp.float32)           # (Mt, _CW)
        for b in range(bt):
            zb = z[b * nt:(b + 1) * nt, :].reshape(nt // 8, 8, _CW)
            m = jnp.max(zb, axis=0)                               # (8, _CW), VPU
            cur = acc_ref[b * 8:(b + 1) * 8, c * _CW:(c + 1) * _CW]
            acc_ref[b * 8:(b + 1) * 8, c * _CW:(c + 1) * _CW] = jnp.maximum(cur, m)

    @pl.when(ni == pl.num_programs(1) - 1)
    def _finalize():
        for b in range(bt):
            m8 = jnp.max(acc_ref[b * 8:(b + 1) * 8, :], axis=0, keepdims=True)
            feat_ref[b:b + 1, :] = jnp.maximum(m8 + b3_ref[...], 0.0)


@functools.partial(jax.jit, static_argnames=("m_tile",))
def stn3d_forward(x_bcn, params, m_tile=2048):
    """x_bcn: (B, 3, N) float32 (PyTorch NCW layout). Returns (B, 3, 3)."""
    B, C, N = x_bcn.shape
    assert C == 3
    (w1, b1, w2, b2, w3, b3, wf1, bf1, wf2, bf2, wf3, bf3) = params

    # ---- tile selection (rows per grid step = bt * nt ~= m_tile) -----------
    m_tile = max(128, _round_up(m_tile, 128))     # keep (8,128) divisibility
    nt = min(_round_up(N, 128), m_tile)           # points per batch per step
    bt = max(1, min(B, m_tile // nt))             # batches packed per step
    n_pad = _round_up(N, nt)
    b_pad = _round_up(B, bt)

    # Pad points by replicating the last point (safe for max-pool).
    if n_pad != N:
        x_bcn = jnp.concatenate(
            [x_bcn, jnp.broadcast_to(x_bcn[:, :, -1:], (B, 3, n_pad - N))], axis=2)
    # Pad batches with zeros; padded rows are discarded after the kernel.
    if b_pad != B:
        x_bcn = jnp.concatenate(
            [x_bcn, jnp.zeros((b_pad - B, 3, n_pad), x_bcn.dtype)], axis=0)

    # Batch-flattened, channel-major layout: lane-dense (3, bt*nt) blocks.
    # (Tiny HBM transpose pass in the wrapper; x is small vs the weights.)
    x_flat = jnp.transpose(x_bcn, (1, 0, 2)).reshape(3, b_pad * n_pad)

    w2b, w3b = (w.astype(jnp.bfloat16) for w in (w2, w3))

    n_blk = n_pad // nt                           # point blocks per batch group

    def const_spec(arr):
        return pl.BlockSpec(arr.shape, lambda bi, ni: (0,) * arr.ndim)

    kernel = functools.partial(_stn3d_conv_pool_kernel, bt=bt, nt=nt)

    feat = pl.pallas_call(
        kernel,
        out_shape=jax.ShapeDtypeStruct((b_pad // bt, bt, _C3), jnp.float32),
        grid_spec=pltpu.PrefetchScalarGridSpec(
            num_scalar_prefetch=0,
            grid=(b_pad // bt, n_blk),            # batch groups parallel, N innermost
            in_specs=[
                pl.BlockSpec((3, bt * nt), lambda bi, ni: (0, bi * n_blk + ni)),
                const_spec(w1), const_spec(b1),
                const_spec(w2b), const_spec(b2),
                const_spec(w3b), const_spec(b3),
            ],
            out_specs=pl.BlockSpec((None, bt, _C3), lambda bi, ni: (bi, 0, 0)),
            scratch_shapes=[pltpu.VMEM((bt * 8, _C3), jnp.float32)],
        ),
        compiler_params=pltpu.CompilerParams(
            dimension_semantics=("parallel", "arbitrary"),
            # Default m_tile=2048 fits every chip's default scoped VMEM thanks
            # to conv3 chunking; only raise the limit (staying < v7x's 64 MiB
            # physical VMEM) if the user asks for a bigger tile.
            vmem_limit_bytes=(48 * 1024 * 1024 if m_tile > 2048 else None)),
    )(x_flat, w1, b1, w2b, b2, w3b, b3)

    feat = feat.reshape(b_pad, _C3)[:B]

    # ---- fc head: batched over B as plain XLA matmuls (full MXU rows) ------
    f = jax.nn.relu(feat @ wf1 + bf1)                  # (B, 512)
    f = jax.nn.relu(f @ wf2 + bf2)                     # (B, 256)
    f = f @ wf3 + bf3                                  # (B, 9)
    iden = jnp.array([1., 0., 0., 0., 1., 0., 0., 0., 1.], dtype=jnp.float32)
    return (f + iden).reshape(B, 3, 3)


def init_params(key):
    """PyTorch-default-style init: U(-1/sqrt(fan_in), +1/sqrt(fan_in)).
    Weights stored as (in_features, out_features); biases as (1, out)."""
    dims = [
        (3, 64),      # conv1
        (64, 128),    # conv2
        (128, 1024),  # conv3
        (1024, 512),  # fc1
        (512, 256),   # fc2
        (256, 9),     # fc3
    ]
    params = []
    for fan_in, fan_out in dims:
        key, kw, kb = jax.random.split(key, 3)
        bound = 1.0 / math.sqrt(fan_in)
        w = jax.random.uniform(kw, (fan_in, fan_out), jnp.float32, -bound, bound)
        b = jax.random.uniform(kb, (1, fan_out), jnp.float32, -bound, bound)
        params += [w, b]
    return tuple(params)


def stn3d_reference(x_bcn, params):
    """Pure-JAX f32 reference (same math, no Pallas) for a sanity check."""
    (w1, b1, w2, b2, w3, b3, wf1, bf1, wf2, bf2, wf3, bf3) = params
    x = jnp.transpose(x_bcn, (0, 2, 1))              # (B, N, 3)
    h = jax.nn.relu(x @ w1 + b1)
    h = jax.nn.relu(h @ w2 + b2)
    h = jax.nn.relu(h @ w3 + b3)
    feat = jnp.max(h, axis=1)                        # (B, 1024)
    f = jax.nn.relu(feat @ wf1 + bf1)
    f = jax.nn.relu(f @ wf2 + bf2)
    f = f @ wf3 + bf3
    iden = jnp.array([1., 0., 0., 0., 1., 0., 0., 0., 1.], dtype=jnp.float32)
    return (f + iden).reshape(-1, 3, 3)


if __name__ == "__main__":
    key = jax.random.PRNGKey(0)
    k_in, k_par = jax.random.split(key)

    B, C, N = 2, 3, 256          # batch=2, xyz channels, num_points=256
    x = jax.random.normal(k_in, (B, C, N), jnp.float32)
    params = init_params(k_par)
    ref = stn3d_reference(x, params)

    # Default tile: batch-flattened path (bt=2 batches packed into one step).
    out = jax.block_until_ready(stn3d_forward(x, params))
    assert out.shape == (B, 3, 3), out.shape
    err = float(jnp.max(jnp.abs(out - ref)))
    assert jnp.allclose(out, ref, rtol=2e-2, atol=2e-2), err

    # Small tile: exercises the multi-step running-max (bt=1, 2 point tiles).
    out2 = jax.block_until_ready(stn3d_forward(x, params, m_tile=128))
    err2 = float(jnp.max(jnp.abs(out2 - ref)))
    assert jnp.allclose(out2, ref, rtol=2e-2, atol=2e-2), err2

    print("KERNEL_OK")
</pallas_src>

<mosaic_0001>
module attributes {stable_mosaic.version = 11 : i64} {
  func.func @_stn3d_conv_pool_kernel(%arg0: i32, %arg1: i32, %arg2: memref<3x512xf32, #tpu.memory_space<vmem>>, %arg3: memref<3x64xf32, #tpu.memory_space<vmem>>, %arg4: memref<1x64xf32, #tpu.memory_space<vmem>>, %arg5: memref<64x128xbf16, #tpu.memory_space<vmem>>, %arg6: memref<1x128xf32, #tpu.memory_space<vmem>>, %arg7: memref<128x1024xbf16, #tpu.memory_space<vmem>>, %arg8: memref<1x1024xf32, #tpu.memory_space<vmem>>, %arg9: memref<1x2x1024xf32, #tpu.memory_space<vmem>>, %arg10: memref<16x1024xf32, #tpu.memory_space<vmem>>) attributes {dimension_semantics = [#tpu.dimension_semantics<parallel>, #tpu.dimension_semantics<arbitrary>], iteration_bounds = array<i64: 1, 1>, scalar_prefetch = 0 : i64, scratch_operands = 1 : i64, tpu.core_type = #tpu.core_type<tc>, window_params = [{transform_indices = @transform_0, window_bounds = array<i64: 3, 512>}, {pipeline_mode = #tpu.pipeline_mode<synchronous>, transform_indices = @transform_1, window_bounds = array<i64: 3, 64>}, {pipeline_mode = #tpu.pipeline_mode<synchronous>, transform_indices = @transform_2, window_bounds = array<i64: 1, 64>}, {pipeline_mode = #tpu.pipeline_mode<synchronous>, transform_indices = @transform_3, window_bounds = array<i64: 64, 128>}, {pipeline_mode = #tpu.pipeline_mode<synchronous>, transform_indices = @transform_4, window_bounds = array<i64: 1, 128>}, {pipeline_mode = #tpu.pipeline_mode<synchronous>, transform_indices = @transform_5, window_bounds = array<i64: 128, 1024>}, {pipeline_mode = #tpu.pipeline_mode<synchronous>, transform_indices = @transform_6, window_bounds = array<i64: 1, 1024>}, {transform_indices = @transform_7, window_bounds = array<i64: 1, 2, 1024>}]} {
    %c0_i32 = arith.constant 0 : i32
    %0 = arith.cmpi eq, %arg1, %c0_i32 : i32
    %1 = arith.extui %0 : i1 to i32
    %c0_i32_0 = arith.constant 0 : i32
    %2 = arith.cmpi ne, %1, %c0_i32_0 : i32
    scf.if %2 {
      %cst_63 = arith.constant 0xFF800000 : f32
      %79 = vector.broadcast %cst_63 : f32 to vector<16x1024xf32>
      %c0_64 = arith.constant 0 : index
      %c0_65 = arith.constant 0 : index
      %80 = vector.load %arg10[%c0_64, %c0_65] : memref<16x1024xf32, #tpu.memory_space<vmem>>, vector<16x1024xf32>
      tpu.vector_store %arg10[%c0_64, %c0_65], %79 {strides = array<i32>} : memref<16x1024xf32, #tpu.memory_space<vmem>>, vector<16x1024xf32>,
    } else {
    }
    %c0 = arith.constant 0 : index
    %c0_1 = arith.constant 0 : index
    %3 = vector.load %arg2[%c0, %c0_1] : memref<3x512xf32, #tpu.memory_space<vmem>>, vector<3x512xf32>
    %c0_2 = arith.constant 0 : index
    %c0_3 = arith.constant 0 : index
    %4 = vector.load %arg3[%c0_2, %c0_3] : memref<3x64xf32, #tpu.memory_space<vmem>>, vector<3x64xf32>
    %cst = arith.constant dense<0.000000e+00> : vector<512x64xf32>
    %5 = tpu.matmul %3, %4, %cst {dimension_numbers = #tpu.dot_dimension_numbers<[0], [0], [1], [1], [0, 1, 1, 1], [], []>} : vector<3x512xf32>, vector<3x64xf32>, vector<512x64xf32> -> vector<512x64xf32>
    %c0_4 = arith.constant 0 : index
    %c0_5 = arith.constant 0 : index
    %6 = vector.load %arg4[%c0_4, %c0_5] : memref<1x64xf32, #tpu.memory_space<vmem>>, vector<1x64xf32>
    %7 = vector.broadcast %6 : vector<1x64xf32> to vector<512x64xf32>
    %8 = arith.addf %5, %7 : vector<512x64xf32>
    %cst_6 = arith.constant 0.000000e+00 : f32
    %9 = vector.broadcast %cst_6 : f32 to vector<512x64xf32>
    %10 = arith.maximumf %8, %9 : vector<512x64xf32>
    %11 = arith.truncf %10 : vector<512x64xf32> to vector<512x64xbf16>
    %c0_7 = arith.constant 0 : index
    %c0_8 = arith.constant 0 : index
    %12 = vector.load %arg5[%c0_7, %c0_8] : memref<64x128xbf16, #tpu.memory_space<vmem>>, vector<64x128xbf16>
    %cst_9 = arith.constant dense<0.000000e+00> : vector<512x128xf32>
    %13 = tpu.matmul %11, %12, %cst_9 {dimension_numbers = #tpu.dot_dimension_numbers<[1], [0], [0], [1], [0, 0, 1, 1], [], []>} : vector<512x64xbf16>, vector<64x128xbf16>, vector<512x128xf32> -> vector<512x128xf32>
    %c0_10 = arith.constant 0 : index
    %c0_11 = arith.constant 0 : index
    %14 = vector.load %arg6[%c0_10, %c0_11] : memref<1x128xf32, #tpu.memory_space<vmem>>, vector<1x128xf32>
    %15 = vector.broadcast %14 : vector<1x128xf32> to vector<512x128xf32>
    %16 = arith.addf %13, %15 : vector<512x128xf32>
    %cst_12 = arith.constant 0.000000e+00 : f32
    %17 = vector.broadcast %cst_12 : f32 to vector<512x128xf32>
    %18 = arith.maximumf %16, %17 : vector<512x128xf32>
    %19 = arith.truncf %18 : vector<512x128xf32> to vector<512x128xbf16>
    %c0_13 = arith.constant 0 : index
    %c0_14 = arith.constant 0 : index
    %20 = vector.load %arg7[%c0_13, %c0_14] : memref<128x1024xbf16, #tpu.memory_space<vmem>>, vector<128x256xbf16>
    %cst_15 = arith.constant dense<0.000000e+00> : vector<512x256xf32>
    %21 = tpu.matmul %19, %20, %cst_15 {dimension_numbers = #tpu.dot_dimension_numbers<[1], [0], [0], [1], [0, 0, 1, 1], [], []>} : vector<512x128xbf16>, vector<128x256xbf16>, vector<512x256xf32> -> vector<512x256xf32>
    %22 = vector.extract_strided_slice %21 {offsets = [0, 0], sizes = [256, 256], strides = [1, 1]} : vector<512x256xf32> to vector<256x256xf32>
    %23 = vector.shape_cast %22 : vector<256x256xf32> to vector<32x8x256xf32>
    %cst_16 = arith.constant dense<0xFF800000> : vector<8x256xf32>
    %24 = vector.multi_reduction <maximumf>, %23, %cst_16 [0] : vector<32x8x256xf32> to vector<8x256xf32>
    %c0_17 = arith.constant 0 : index
    %c0_18 = arith.constant 0 : index
    %25 = vector.load %arg10[%c0_17, %c0_18] : memref<16x1024xf32, #tpu.memory_space<vmem>>, vector<8x256xf32>
    %26 = arith.maximumf %25, %24 : vector<8x256xf32>
    %c0_19 = arith.constant 0 : index
    %c0_20 = arith.constant 0 : index
    %27 = vector.load %arg10[%c0_19, %c0_20] : memref<16x1024xf32, #tpu.memory_space<vmem>>, vector<8x256xf32>
    tpu.vector_store %arg10[%c0_19, %c0_20], %26 {strides = array<i32>} : memref<16x1024xf32, #tpu.memory_space<vmem>>, vector<8x256xf32>,
    %28 = vector.extract_strided_slice %21 {offsets = [256, 0], sizes = [256, 256], strides = [1, 1]} : vector<512x256xf32> to vector<256x256xf32>
    %29 = vector.shape_cast %28 : vector<256x256xf32> to vector<32x8x256xf32>
    %cst_21 = arith.constant dense<0xFF800000> : vector<8x256xf32>
    %30 = vector.multi_reduction <maximumf>, %29, %cst_21 [0] : vector<32x8x256xf32> to vector<8x256xf32>
    %c8 = arith.constant 8 : index
    %c0_22 = arith.constant 0 : index
    %31 = vector.load %arg10[%c8, %c0_22] : memref<16x1024xf32, #tpu.memory_space<vmem>>, vector<8x256xf32>
    %32 = arith.maximumf %31, %30 : vector<8x256xf32>
    %c8_23 = arith.constant 8 : index
    %c0_24 = arith.constant 0 : index
    %33 = vector.load %arg10[%c8_23, %c0_24] : memref<16x1024xf32, #tpu.memory_space<vmem>>, vector<8x256xf32>
    tpu.vector_store %arg10[%c8_23, %c0_24], %32 {strides = array<i32>} : memref<16x1024xf32, #tpu.memory_space<vmem>>, vector<8x256xf32>,
    %c0_25 = arith.constant 0 : index
    %c256 = arith.constant 256 : index
    %34 = vector.load %arg7[%c0_25, %c256] : memref<128x1024xbf16, #tpu.memory_space<vmem>>, vector<128x256xbf16>
    %cst_26 = arith.constant dense<0.000000e+00> : vector<512x256xf32>
    %35 = tpu.matmul %19, %34, %cst_26 {dimension_numbers = #tpu.dot_dimension_numbers<[1], [0], [0], [1], [0, 0, 1, 1], [], []>} : vector<512x128xbf16>, vector<128x256xbf16>, vector<512x256xf32> -> vector<512x256xf32>
    %36 = vector.extract_strided_slice %35 {offsets = [0, 0], sizes = [256, 256], strides = [1, 1]} : vector<512x256xf32> to vector<256x256xf32>
    %37 = vector.shape_cast %36 : vector<256x256xf32> to vector<32x8x256xf32>
    %cst_27 = arith.constant dense<0xFF800000> : vector<8x256xf32>
    %38 = vector.multi_reduction <maximumf>, %37, %cst_27 [0] : vector<32x8x256xf32> to vector<8x256xf32>
    %c0_28 = arith.constant 0 : index
    %c256_29 = arith.constant 256 : index
    %39 = vector.load %arg10[%c0_28, %c256_29] : memref<16x1024xf32, #tpu.memory_space<vmem>>, vector<8x256xf32>
    %40 = arith.maximumf %39, %38 : vector<8x256xf32>
    %c0_30 = arith.constant 0 : index
    %c256_31 = arith.constant 256 : index
    %41 = vector.load %arg10[%c0_30, %c256_31] : memref<16x1024xf32, #tpu.memory_space<vmem>>, vector<8x256xf32>
    tpu.vector_store %arg10[%c0_30, %c256_31], %40 {strides = array<i32>} : memref<16x1024xf32, #tpu.memory_space<vmem>>, vector<8x256xf32>,
    %42 = vector.extract_strided_slice %35 {offsets = [256, 0], sizes = [256, 256], strides = [1, 1]} : vector<512x256xf32> to vector<256x256xf32>
    %43 = vector.shape_cast %42 : vector<256x256xf32> to vector<32x8x256xf32>
    %cst_32 = arith.constant dense<0xFF800000> : vector<8x256xf32>
    %44 = vector.multi_reduction <maximumf>, %43, %cst_32 [0] : vector<32x8x256xf32> to vector<8x256xf32>
    %c8_33 = arith.constant 8 : index
    %c256_34 = arith.constant 256 : index
    %45 = vector.load %arg10[%c8_33, %c256_34] : memref<16x1024xf32, #tpu.memory_space<vmem>>, vector<8x256xf32>
    %46 = arith.maximumf %45, %44 : vector<8x256xf32>
    %c8_35 = arith.constant 8 : index
    %c256_36 = arith.constant 256 : index
    %47 = vector.load %arg10[%c8_35, %c256_36] : memref<16x1024xf32, #tpu.memory_space<vmem>>, vector<8x256xf32>
    tpu.vector_store %arg10[%c8_35, %c256_36], %46 {strides = array<i32>} : memref<16x1024xf32, #tpu.memory_space<vmem>>, vector<8x256xf32>,
    %c0_37 = arith.constant 0 : index
    %c512 = arith.constant 512 : index
    %48 = vector.load %arg7[%c0_37, %c512] : memref<128x1024xbf16, #tpu.memory_space<vmem>>, vector<128x256xbf16>
    %cst_38 = arith.constant dense<0.000000e+00> : vector<512x256xf32>
    %49 = tpu.matmul %19, %48, %cst_38 {dimension_numbers = #tpu.dot_dimension_numbers<[1], [0], [0], [1], [0, 0, 1, 1], [], []>} : vector<512x128xbf16>, vector<128x256xbf16>, vector<512x256xf32> -> vector<512x256xf32>
    %50 = vector.extract_strided_slice %49 {offsets = [0, 0], sizes = [256, 256], strides = [1, 1]} : vector<512x256xf32> to vector<256x256xf32>
    %51 = vector.shape_cast %50 : vector<256x256xf32> to vector<32x8x256xf32>
    %cst_39 = arith.constant dense<0xFF800000> : vector<8x256xf32>
    %52 = vector.multi_reduction <maximumf>, %51, %cst_39 [0] : vector<32x8x256xf32> to vector<8x256xf32>
    %c0_40 = arith.constant 0 : index
    %c512_41 = arith.constant 512 : index
    %53 = vector.load %arg10[%c0_40, %c512_41] : memref<16x1024xf32, #tpu.memory_space<vmem>>, vector<8x256xf32>
    %54 = arith.maximumf %53, %52 : vector<8x256xf32>
    %c0_42 = arith.constant 0 : index
    %c512_43 = arith.constant 512 : index
    %55 = vector.load %arg10[%c0_42, %c512_43] : memref<16x1024xf32, #tpu.memory_space<vmem>>, vector<8x256xf32>
    tpu.vector_store %arg10[%c0_42, %c512_43], %54 {strides = array<i32>} : memref<16x1024xf32, #tpu.memory_space<vmem>>, vector<8x256xf32>,
    %56 = vector.extract_strided_slice %49 {offsets = [256, 0], sizes = [256, 256], strides = [1, 1]} : vector<512x256xf32> to vector<256x256xf32>
    %57 = vector.shape_cast %56 : vector<256x256xf32> to vector<32x8x256xf32>
    %cst_44 = arith.constant dense<0xFF800000> : vector<8x256xf32>
    %58 = vector.multi_reduction <maximumf>, %57, %cst_44 [0] : vector<32x8x256xf32> to vector<8x256xf32>
    %c8_45 = arith.constant 8 : index
    %c512_46 = arith.constant 512 : index
    %59 = vector.load %arg10[%c8_45, %c512_46] : memref<16x1024xf32, #tpu.memory_space<vmem>>, vector<8x256xf32>
    %60 = arith.maximumf %59, %58 : vector<8x256xf32>
    %c8_47 = arith.constant 8 : index
    %c512_48 = arith.constant 512 : index
    %61 = vector.load %arg10[%c8_47, %c512_48] : memref<16x1024xf32, #tpu.memory_space<vmem>>, vector<8x256xf32>
    tpu.vector_store %arg10[%c8_47, %c512_48], %60 {strides = array<i32>} : memref<16x1024xf32, #tpu.memory_space<vmem>>, vector<8x256xf32>,
    %c0_49 = arith.constant 0 : index
    %c768 = arith.constant 768 : index
    %62 = vector.load %arg7[%c0_49, %c768] : memref<128x1024xbf16, #tpu.memory_space<vmem>>, vector<128x256xbf16>
    %cst_50 = arith.constant dense<0.000000e+00> : vector<512x256xf32>
    %63 = tpu.matmul %19, %62, %cst_50 {dimension_numbers = #tpu.dot_dimension_numbers<[1], [0], [0], [1], [0, 0, 1, 1], [], []>} : vector<512x128xbf16>, vector<128x256xbf16>, vector<512x256xf32> -> vector<512x256xf32>
    %64 = vector.extract_strided_slice %63 {offsets = [0, 0], sizes = [256, 256], strides = [1, 1]} : vector<512x256xf32> to vector<256x256xf32>
    %65 = vector.shape_cast %64 : vector<256x256xf32> to vector<32x8x256xf32>
    %cst_51 = arith.constant dense<0xFF800000> : vector<8x256xf32>
    %66 = vector.multi_reduction <maximumf>, %65, %cst_51 [0] : vector<32x8x256xf32> to vector<8x256xf32>
    %c0_52 = arith.constant 0 : index
    %c768_53 = arith.constant 768 : index
    %67 = vector.load %arg10[%c0_52, %c768_53] : memref<16x1024xf32, #tpu.memory_space<vmem>>, vector<8x256xf32>
    %68 = arith.maximumf %67, %66 : vector<8x256xf32>
    %c0_54 = arith.constant 0 : index
    %c768_55 = arith.constant 768 : index
    %69 = vector.load %arg10[%c0_54, %c768_55] : memref<16x1024xf32, #tpu.memory_space<vmem>>, vector<8x256xf32>
    tpu.vector_store %arg10[%c0_54, %c768_55], %68 {strides = array<i32>} : memref<16x1024xf32, #tpu.memory_space<vmem>>, vector<8x256xf32>,
    %70 = vector.extract_strided_slice %63 {offsets = [256, 0], sizes = [256, 256], strides = [1, 1]} : vector<512x256xf32> to vector<256x256xf32>
    %71 = vector.shape_cast %70 : vector<256x256xf32> to vector<32x8x256xf32>
    %cst_56 = arith.constant dense<0xFF800000> : vector<8x256xf32>
    %72 = vector.multi_reduction <maximumf>, %71, %cst_56 [0] : vector<32x8x256xf32> to vector<8x256xf32>
    %c8_57 = arith.constant 8 : index
    %c768_58 = arith.constant 768 : index
    %73 = vector.load %arg10[%c8_57, %c768_58] : memref<16x1024xf32, #tpu.memory_space<vmem>>, vector<8x256xf32>
    %74 = arith.maximumf %73, %72 : vector<8x256xf32>
    %c8_59 = arith.constant 8 : index
    %c768_60 = arith.constant 768 : index
    %75 = vector.load %arg10[%c8_59, %c768_60] : memref<16x1024xf32, #tpu.memory_space<vmem>>, vector<8x256xf32>
    tpu.vector_store %arg10[%c8_59, %c768_60], %74 {strides = array<i32>} : memref<16x1024xf32, #tpu.memory_space<vmem>>, vector<8x256xf32>,
    %c0_i32_61 = arith.constant 0 : i32
    %76 = arith.cmpi eq, %arg1, %c0_i32_61 : i32
    %77 = arith.extui %76 : i1 to i32
    %c0_i32_62 = arith.constant 0 : i32
    %78 = arith.cmpi ne, %77, %c0_i32_62 : i32
    scf.if %78 {
      %c0_63 = arith.constant 0 : index
      %c0_64 = arith.constant 0 : index
      %79 = vector.load %arg10[%c0_63, %c0_64] : memref<16x1024xf32, #tpu.memory_space<vmem>>, vector<8x1024xf32>
      %cst_65 = arith.constant dense<0xFF800000> : vector<1024xf32>
      %80 = vector.multi_reduction <maximumf>, %79, %cst_65 [0] : vector<8x1024xf32> to vector<1024xf32>
      %81 = vector.shape_cast %80 : vector<1024xf32> to vector<1x1024xf32>
      %c0_66 = arith.constant 0 : index
      %c0_67 = arith.constant 0 : index
      %82 = vector.load %arg8[%c0_66, %c0_67] : memref<1x1024xf32, #tpu.memory_space<vmem>>, vector<1x1024xf32>
      %83 = arith.addf %81, %82 : vector<1x1024xf32>
      %cst_68 = arith.constant 0.000000e+00 : f32
      %84 = vector.broadcast %cst_68 : f32 to vector<1x1024xf32>
      %85 = arith.maximumf %83, %84 : vector<1x1024xf32>
      %c0_69 = arith.constant 0 : index
      %c0_70 = arith.constant 0 : index
      %c0_71 = arith.constant 0 : index
      %86 = vector.load %arg9[%c0_69, %c0_70, %c0_71] : memref<1x2x1024xf32, #tpu.memory_space<vmem>>, vector<1x1x1024xf32>
      %87 = vector.shape_cast %86 : vector<1x1x1024xf32> to vector<1x1024xf32>
      %88 = vector.shape_cast %85 : vector<1x1024xf32> to vector<1x1x1024xf32>
      tpu.vector_store %arg9[%c0_69, %c0_70, %c0_71], %88 {strides = array<i32>} : memref<1x2x1024xf32, #tpu.memory_space<vmem>>, vector<1x1x1024xf32>,
      %c8_72 = arith.constant 8 : index
      %c0_73 = arith.constant 0 : index
      %89 = vector.load %arg10[%c8_72, %c0_73] : memref<16x1024xf32, #tpu.memory_space<vmem>>, vector<8x1024xf32>
      %cst_74 = arith.constant dense<0xFF800000> : vector<1024xf32>
      %90 = vector.multi_reduction <maximumf>, %89, %cst_74 [0] : vector<8x1024xf32> to vector<1024xf32>
      %91 = vector.shape_cast %90 : vector<1024xf32> to vector<1x1024xf32>
      %c0_75 = arith.constant 0 : index
      %c0_76 = arith.constant 0 : index
      %92 = vector.load %arg8[%c0_75, %c0_76] : memref<1x1024xf32, #tpu.memory_space<vmem>>, vector<1x1024xf32>
      %93 = arith.addf %91, %92 : vector<1x1024xf32>
      %cst_77 = arith.constant 0.000000e+00 : f32
      %94 = vector.broadcast %cst_77 : f32 to vector<1x1024xf32>
      %95 = arith.maximumf %93, %94 : vector<1x1024xf32>
      %c0_78 = arith.constant 0 : index
      %c1 = arith.constant 1 : index
      %c0_79 = arith.constant 0 : index
      %96 = vector.load %arg9[%c0_78, %c1, %c0_79] : memref<1x2x1024xf32, #tpu.memory_space<vmem>>, vector<1x1x1024xf32>
      %97 = vector.shape_cast %96 : vector<1x1x1024xf32> to vector<1x1024xf32>
      %98 = vector.shape_cast %95 : vector<1x1024xf32> to vector<1x1x1024xf32>
      tpu.vector_store %arg9[%c0_78, %c1, %c0_79], %98 {strides = array<i32>} : memref<1x2x1024xf32, #tpu.memory_space<vmem>>, vector<1x1x1024xf32>,
    } else {
    }
    return
  }
  func.func @transform_0(%arg0: i32, %arg1: i32) -> (i32, i32) {
    %c1_i32 = arith.constant 1 : i32
    %0 = arith.muli %arg0, %c1_i32 : i32
    %1 = arith.addi %0, %arg1 : i32
    %c0_i32 = arith.constant 0 : i32
    %c0_i32_0 = arith.constant 0 : i32
    return %c0_i32, %1 : i32, i32
  }
  func.func @transform_1(%arg0: i32, %arg1: i32) -> (i32, i32) {
    %c0_i32 = arith.constant 0 : i32
    %c0_i32_0 = arith.constant 0 : i32
    %c0_i32_1 = arith.constant 0 : i32
    return %c0_i32, %c0_i32_0 : i32, i32
  }
  func.func @transform_2(%arg0: i32, %arg1: i32) -> (i32, i32) {
    %c0_i32 = arith.constant 0 : i32
    %c0_i32_0 = arith.constant 0 : i32
    %c0_i32_1 = arith.constant 0 : i32
    return %c0_i32, %c0_i32_0 : i32, i32
  }
  func.func @transform_3(%arg0: i32, %arg1: i32) -> (i32, i32) {
    %c0_i32 = arith.constant 0 : i32
    %c0_i32_0 = arith.constant 0 : i32
    %c0_i32_1 = arith.constant 0 : i32
    return %c0_i32, %c0_i32_0 : i32, i32
  }
  func.func @transform_4(%arg0: i32, %arg1: i32) -> (i32, i32) {
    %c0_i32 = arith.constant 0 : i32
    %c0_i32_0 = arith.constant 0 : i32
    %c0_i32_1 = arith.constant 0 : i32
    return %c0_i32, %c0_i32_0 : i32, i32
  }
  func.func @transform_5(%arg0: i32, %arg1: i32) -> (i32, i32) {
    %c0_i32 = arith.constant 0 : i32
    %c0_i32_0 = arith.constant 0 : i32
    %c0_i32_1 = arith.constant 0 : i32
    return %c0_i32, %c0_i32_0 : i32, i32
  }
  func.func @transform_6(%arg0: i32, %arg1: i32) -> (i32, i32) {
    %c0_i32 = arith.constant 0 : i32
    %c0_i32_0 = arith.constant 0 : i32
    %c0_i32_1 = arith.constant 0 : i32
    return %c0_i32, %c0_i32_0 : i32, i32
  }
  func.func @transform_7(%arg0: i32, %arg1: i32) -> (i32, i32, i32) {
    %c0_i32 = arith.constant 0 : i32
    %c0_i32_0 = arith.constant 0 : i32
    %c0_i32_1 = arith.constant 0 : i32
    return %arg0, %c0_i32, %c0_i32_0 : i32, i32, i32
  }
}

</mosaic_0001>

<llo_original>
// kernel: stn3d_forward.1
$region0: #{stn3d_forward.1}
  #allocation0 [shape = 'u32[]', space=smem, size = 0x4, offset = 0x4, fixed_abs, tag = 'smem constant byte address 0x4 - core index']
  #allocation1 [shape = 'u32[144,128]{1,0:T(1,128)}', space=vmem, size = 0x12000, scoped, tag = 'internal scratch']
  #allocation2 [shape = 'f32[16,1024]{1,0:T(8,128)}', space=vmem, size = 0x10000, scoped, tag = 'scratch operand']
  %s0 = inlined_call_operand.vmem [shape: f32[3,512], index: 0, kind: input, shape index: {}]
  %s1 = inlined_call_operand.hbm [shape: f32[3,64], index: 1, kind: input, shape index: {}]
  %s2 = inlined_call_operand.hbm [shape: f32[1,64], index: 2, kind: input, shape index: {}]
  %s3 = inlined_call_operand.vmem [shape: bf16[64,128], index: 3, kind: input, shape index: {}]
  %s4 = inlined_call_operand.hbm [shape: f32[1,128], index: 4, kind: input, shape index: {}]
  %s5 = inlined_call_operand.vmem [shape: bf16[128,1024], index: 5, kind: input, shape index: {}]
  %s6 = inlined_call_operand.hbm [shape: f32[1,1024], index: 6, kind: input, shape index: {}]
  %s7 = inlined_call_operand.vmem [shape: f32[1,2,1024], index: 7, kind: output, shape index: {}]
  %s8 = sld [smem:[#allocation0]]
  $region62: #{stn3d_forward.1} parent=0
    _
  %s10 = ssub.s32 1, %s8
  %s11 = scalar_select 0, %s10, %s8
  $region1: #{stn3d_forward.1} parent=0
    #allocation3 [shape = 'u8[2048]{0}', space=vmem, size = 0x800, scoped, tag = 'input window, operand 1, single buffered']
    #allocation4 [shape = 's32[1]{0}', space=sflag, size = 0x4, scoped, tag = 'scoped memory for stn3d_forward.1']
    #allocation5 [shape = 'u8[512]{0}', space=vmem, size = 0x400, scoped, tag = 'input window, operand 2, single buffered']
    #allocation6 [shape = 's32[1]{0}', space=sflag, size = 0x4, scoped, tag = 'scoped memory for stn3d_forward.1']
    #allocation7 [shape = 'u8[512]{0}', space=vmem, size = 0x400, scoped, tag = 'input window, operand 4, single buffered']
    #allocation8 [shape = 'u8[4096]{0}', space=vmem, size = 0x1000, scoped, tag = 'input window, operand 6, single buffered']
    #allocation9 [shape = 's32[1]{0}', space=sflag, size = 0x4, scoped, tag = 'scoped memory for stn3d_forward.1']
    %12 = vsyncpa [#allocation4], 0
    %13 = vsyncpa [#allocation6], 0
    %14 = vsyncpa [#allocation9], 0
    // Predicated region
    $region2: #{stn3d_forward.1} parent=1 // pred_check
      _
    $region3: #{stn3d_forward.1} parent=1 // pred_check_branch
      %16 = sbr.rel (0) target = $region5
    $region4: #{stn3d_forward.1} parent=1 // pred_region
      %s17 = sadd.s32 0, 0
      %s18 = smul.u32 4, %s17
      %p19 = scmp.lt.s32.totalorder %s18, 3
      %s20 = scalar_select %p19, %s18, 3
      %s21 = smul.addr %s20, 4
      %s22 = scalar_lea.vmem %s0, %s21
      %s23 = sadd.s32 0, 0
      %s24 = smul.u32 4, %s23
    $region5: #{stn3d_forward.1} parent=1 // pred_fallthru
      _
    // Predicated region
    $region6: #{stn3d_forward.1} parent=1 // pred_check
      _
    $region7: #{stn3d_forward.1} parent=1 // pred_check_branch
      %26 = sbr.rel (0) target = $region9
    $region8: #{stn3d_forward.1} parent=1 // pred_region
      %s28 = ssub.s32 64, 64
      %29 = vsyncadd [#allocation4], %s28
      %s31 = sshll.u32 [#allocation3], 4
      %s32 = int_to_ptr.vmem [resolvable:$true] %s31
      %34 = dma.hbm_to_vmem [thread:$0]  %s1, 64, %s32, [#allocation4]
    $region9: #{stn3d_forward.1} parent=1 // pred_fallthru
      _
    // Predicated region
    $region10: #{stn3d_forward.1} parent=1 // pred_check
      _
    $region11: #{stn3d_forward.1} parent=1 // pred_check_branch
      %36 = sbr.rel (0) target = $region13
    $region12: #{stn3d_forward.1} parent=1 // pred_region
      %s38 = ssub.s32 16, 16
      %39 = vsyncadd [#allocation6], %s38
      %s41 = sshll.u32 [#allocation5], 4
      %s42 = int_to_ptr.vmem [resolvable:$true] %s41
      %44 = dma.hbm_to_vmem [thread:$0]  %s2, 16, %s42, [#allocation6]
    $region13: #{stn3d_forward.1} parent=1 // pred_fallthru
      _
    // Predicated region
    $region14: #{stn3d_forward.1} parent=1 // pred_check
      _
    $region15: #{stn3d_forward.1} parent=1 // pred_check_branch
      %46 = sbr.rel (0) target = $region17
    $region16: #{stn3d_forward.1} parent=1 // pred_region
      _
    $region17: #{stn3d_forward.1} parent=1 // pred_fallthru
      _
    // Predicated region
    $region18: #{stn3d_forward.1} parent=1 // pred_check
      _
    $region19: #{stn3d_forward.1} parent=1 // pred_check_branch
      %48 = sbr.rel (0) target = $region21
    $region20: #{stn3d_forward.1} parent=1 // pred_region
      %s50 = ssub.s32 16, 16
      %51 = vsyncadd [#allocation6], %s50
      %s53 = sshll.u32 [#allocation7], 4
      %s54 = int_to_ptr.vmem [resolvable:$true] %s53
      %56 = dma.hbm_to_vmem [thread:$0]  %s4, 16, %s54, [#allocation6]
    $region21: #{stn3d_forward.1} parent=1 // pred_fallthru
      _
    // Predicated region
    $region22: #{stn3d_forward.1} parent=1 // pred_check
      _
    $region23: #{stn3d_forward.1} parent=1 // pred_check_branch
      %58 = sbr.rel (0) target = $region25
    $region24: #{stn3d_forward.1} parent=1 // pred_region
      _
    $region25: #{stn3d_forward.1} parent=1 // pred_fallthru
      _
    // Predicated region
    $region26: #{stn3d_forward.1} parent=1 // pred_check
      _
    $region27: #{stn3d_forward.1} parent=1 // pred_check_branch
      %60 = sbr.rel (0) target = $region29
    $region28: #{stn3d_forward.1} parent=1 // pred_region
      %s62 = ssub.s32 128, 128
      %63 = vsyncadd [#allocation9], %s62
      %s65 = sshll.u32 [#allocation8], 4
      %s66 = int_to_ptr.vmem [resolvable:$true] %s65
      %68 = dma.hbm_to_vmem [thread:$0]  %s6, 128, %s66, [#allocation9]
    $region29: #{stn3d_forward.1} parent=1 // pred_fallthru
      _
    // Predicated region
    $region30: #{stn3d_forward.1} parent=1 // pred_check
      _
    $region31: #{stn3d_forward.1} parent=1 // pred_check_branch
      %70 = sbr.rel (0) target = $region33
    $region32: #{stn3d_forward.1} parent=1 // pred_region
      %71 = dma.done [#allocation4], 64
    $region33: #{stn3d_forward.1} parent=1 // pred_fallthru
      _
    // Predicated region
    $region34: #{stn3d_forward.1} parent=1 // pred_check
      _
    $region35: #{stn3d_forward.1} parent=1 // pred_check_branch
      %73 = sbr.rel (0) target = $region37
    $region36: #{stn3d_forward.1} parent=1 // pred_region
      %74 = dma.done [#allocation6], 16
    $region37: #{stn3d_forward.1} parent=1 // pred_fallthru
      _
    // Predicated region
    $region38: #{stn3d_forward.1} parent=1 // pred_check
      _
    $region39: #{stn3d_forward.1} parent=1 // pred_check_branch
      %76 = sbr.rel (0) target = $region41
    $region40: #{stn3d_forward.1} parent=1 // pred_region
      %77 = dma.done [#allocation6], 16
    $region41: #{stn3d_forward.1} parent=1 // pred_fallthru
      _
    // Predicated region
    $region42: #{stn3d_forward.1} parent=1 // pred_check
      _
    $region43: #{stn3d_forward.1} parent=1 // pred_check_branch
      %79 = sbr.rel (0) target = $region45
    $region44: #{stn3d_forward.1} parent=1 // pred_region
      %80 = dma.done [#allocation9], 128
    $region45: #{stn3d_forward.1} parent=1 // pred_fallthru
      _
    %s81 = sadd.s32 0, 0
    %s82 = smul.u32 4, %s81
    %p83 = scmp.lt.s32.totalorder %s82, 3
    %s84 = scalar_select %p83, %s82, 3
    %s85 = smul.addr %s84, 4
    %s86 = scalar_lea.vmem %s0, %s85
    %s87 = sadd.s32 0, 0
    %s88 = smul.u32 4, %s87
    %p89 = scmp.lt.s32.totalorder %s88, 3
    %s90 = scalar_select %p89, %s88, 3
    %s91 = smul.addr %s90, 4
    %s92 = scalar_lea.vmem %s0, %s91
    %s93 = sadd.s32 0, 0
    %s94 = smul.u32 4, %s93
    %p96 = scmp.eq.s32.totalorder 0, 0
    // Predicated region
    $region46: #{stn3d_forward.1} parent=1 // pred_check
      %p97 = pneg %p96
    $region47: #{stn3d_forward.1} parent=1 // pred_check_branch
      %99 = sbr.rel (%p97) target = $region49
    $region48: #{stn3d_forward.1} parent=1 // pred_region
      %100 = vst [vmem:[#allocation2] sm:$0xff] -inf
      %101 = vst [vmem:[#allocation2 + $0x8] sm:$0xff] -inf
      %102 = vst [vmem:[#allocation2 + $0x10] sm:$0xff] -inf
      %103 = vst [vmem:[#allocation2 + $0x18] sm:$0xff] -inf
      %104 = vst [vmem:[#allocation2 + $0x20] sm:$0xff] -inf
      %105 = vst [vmem:[#allocation2 + $0x28] sm:$0xff] -inf
      %106 = vst [vmem:[#allocation2 + $0x30] sm:$0xff] -inf
      %107 = vst [vmem:[#allocation2 + $0x38] sm:$0xff] -inf
      %108 = vst [vmem:[#allocation2 + $0x40] sm:$0xff] -inf
      %109 = vst [vmem:[#allocation2 + $0x48] sm:$0xff] -inf
      %110 = vst [vmem:[#allocation2 + $0x50] sm:$0xff] -inf
      %111 = vst [vmem:[#allocation2 + $0x58] sm:$0xff] -inf
      %112 = vst [vmem:[#allocation2 + $0x60] sm:$0xff] -inf
      %113 = vst [vmem:[#allocation2 + $0x68] sm:$0xff] -inf
      %114 = vst [vmem:[#allocation2 + $0x70] sm:$0xff] -inf
      %115 = vst [vmem:[#allocation2 + $0x78] sm:$0xff] -inf
    $region49: #{stn3d_forward.1} parent=1 // pred_fallthru
      _
    %v116 = vld [vmem:[%s92] sm:$0x77]
    %v117 = vld [vmem:[%s92 + $0x8] sm:$0x77]
    %v118 = vld [vmem:[#allocation3] sm:$0x7]
    %v119 = vld [vmem:[#allocation5] sm:$0x1]
    %v121 = vlaneseq
    %v122 = vshrl.u32 %v121, 7
    %v123 = vsub.s32 0, %v122
    %v124 = vrot.slane %v119, %v123
    %v128 = vcombine.high %v116, %v116
    %v129 = vcombine.high %v117, %v117
    %132 = vxpose.xlu0.b32.start [1/16] %v116, 128
    %133 = vxpose.xlu0.b32.cont [2/16] 0.0, 128
    %134 = vxpose.xlu0.b32.cont [3/16] 0.0, 128
    %135 = vxpose.xlu0.b32.cont [4/16] 0.0, 128
    %136 = vxpose.xlu0.b32.cont [5/16] 0.0, 128
    %137 = vxpose.xlu0.b32.cont [6/16] 0.0, 128
    %138 = vxpose.xlu0.b32.cont [7/16] 0.0, 128
    %139 = vxpose.xlu0.b32.cont [8/16] 0.0, 128
    %140 = vxpose.xlu0.b32.cont [9/16] 0.0, 128
    %141 = vxpose.xlu0.b32.cont [10/16] 0.0, 128
    %142 = vxpose.xlu0.b32.cont [11/16] 0.0, 128
    %143 = vxpose.xlu0.b32.cont [12/16] 0.0, 128
    %144 = vxpose.xlu0.b32.cont [13/16] 0.0, 128
    %145 = vxpose.xlu0.b32.cont [14/16] 0.0, 128
    %146 = vxpose.xlu0.b32.cont [15/16] 0.0, 128
    %147 = vxpose.xlu0.b32.end [16/16] 0.0, 128
    %v148 = vpop.trf.xlu0
    %v149 = vpop.trf.xlu0
    %v150 = vpop.trf.xlu0
    %v151 = vpop.trf.xlu0
    %v152 = vpop.trf.xlu0
    %v153 = vpop.trf.xlu0
    %v154 = vpop.trf.xlu0
    %v155 = vpop.trf.xlu0
    %v156 = vpop.trf.xlu0
    %v157 = vpop.trf.xlu0
    %v158 = vpop.trf.xlu0
    %v159 = vpop.trf.xlu0
    %v160 = vpop.trf.xlu0
    %v161 = vpop.trf.xlu0
    %v162 = vpop.trf.xlu0
    %v163 = vpop.trf.xlu0
    %164 = vxpose.xlu0.b32.start [1/16] %v128, 128
    %165 = vxpose.xlu0.b32.cont [2/16] 0.0, 128
    %166 = vxpose.xlu0.b32.cont [3/16] 0.0, 128
    %167 = vxpose.xlu0.b32.cont [4/16] 0.0, 128
    %168 = vxpose.xlu0.b32.cont [5/16] 0.0, 128
    %169 = vxpose.xlu0.b32.cont [6/16] 0.0, 128
    %170 = vxpose.xlu0.b32.cont [7/16] 0.0, 128
    %171 = vxpose.xlu0.b32.cont [8/16] 0.0, 128
    %172 = vxpose.xlu0.b32.cont [9/16] 0.0, 128
    %173 = vxpose.xlu0.b32.cont [10/16] 0.0, 128
    %174 = vxpose.xlu0.b32.cont [11/16] 0.0, 128
    %175 = vxpose.xlu0.b32.cont [12/16] 0.0, 128
    %176 = vxpose.xlu0.b32.cont [13/16] 0.0, 128
    %177 = vxpose.xlu0.b32.cont [14/16] 0.0, 128
    %178 = vxpose.xlu0.b32.cont [15/16] 0.0, 128
    %179 = vxpose.xlu0.b32.end [16/16] 0.0, 128
    %v180 = vpop.trf.xlu0
    %v181 = vpop.trf.xlu0
    %v182 = vpop.trf.xlu0
    %v183 = vpop.trf.xlu0
    %v184 = vpop.trf.xlu0
    %v185 = vpop.trf.xlu0
    %v186 = vpop.trf.xlu0
    %v187 = vpop.trf.xlu0
    %v188 = vpop.trf.xlu0
    %v189 = vpop.trf.xlu0
    %v190 = vpop.trf.xlu0
    %v191 = vpop.trf.xlu0
    %v192 = vpop.trf.xlu0
    %v193 = vpop.trf.xlu0
    %v194 = vpop.trf.xlu0
    %v195 = vpop.trf.xlu0
    %196 = vxpose.xlu0.b32.start [1/16] %v117, 128
    %197 = vxpose.xlu0.b32.cont [2/16] 0.0, 128
    %198 = vxpose.xlu0.b32.cont [3/16] 0.0, 128
    %199 = vxpose.xlu0.b32.cont [4/16] 0.0, 128
    %200 = vxpose.xlu0.b32.cont [5/16] 0.0, 128
    %201 = vxpose.xlu0.b32.cont [6/16] 0.0, 128
    %202 = vxpose.xlu0.b32.cont [7/16] 0.0, 128
    %203 = vxpose.xlu0.b32.cont [8/16] 0.0, 128
    %204 = vxpose.xlu0.b32.cont [9/16] 0.0, 128
    %205 = vxpose.xlu0.b32.cont [10/16] 0.0, 128
    %206 = vxpose.xlu0.b32.cont [11/16] 0.0, 128
    %207 = vxpose.xlu0.b32.cont [12/16] 0.0, 128
    %208 = vxpose.xlu0.b32.cont [13/16] 0.0, 128
    %209 = vxpose.xlu0.b32.cont [14/16] 0.0, 128
    %210 = vxpose.xlu0.b32.cont [15/16] 0.0, 128
    %211 = vxpose.xlu0.b32.end [16/16] 0.0, 128
    %v212 = vpop.trf.xlu0
    %v213 = vpop.trf.xlu0
    %v214 = vpop.trf.xlu0
    %v215 = vpop.trf.xlu0
    %v216 = vpop.trf.xlu0
    %v217 = vpop.trf.xlu0
    %v218 = vpop.trf.xlu0
    %v219 = vpop.trf.xlu0
    %v220 = vpop.trf.xlu0
    %v221 = vpop.trf.xlu0
    %v222 = vpop.trf.xlu0
    %v223 = vpop.trf.xlu0
    %v224 = vpop.trf.xlu0
    %v225 = vpop.trf.xlu0
    %v226 = vpop.trf.xlu0
    %v227 = vpop.trf.xlu0
    %228 = vxpose.xlu0.b32.start [1/16] %v129, 128
    %229 = vxpose.xlu0.b32.cont [2/16] 0.0, 128
    %230 = vxpose.xlu0.b32.cont [3/16] 0.0, 128
    %231 = vxpose.xlu0.b32.cont [4/16] 0.0, 128
    %232 = vxpose.xlu0.b32.cont [5/16] 0.0, 128
    %233 = vxpose.xlu0.b32.cont [6/16] 0.0, 128
    %234 = vxpose.xlu0.b32.cont [7/16] 0.0, 128
    %235 = vxpose.xlu0.b32.cont [8/16] 0.0, 128
    %236 = vxpose.xlu0.b32.cont [9/16] 0.0, 128
    %237 = vxpose.xlu0.b32.cont [10/16] 0.0, 128
    %238 = vxpose.xlu0.b32.cont [11/16] 0.0, 128
    %239 = vxpose.xlu0.b32.cont [12/16] 0.0, 128
    %240 = vxpose.xlu0.b32.cont [13/16] 0.0, 128
    %241 = vxpose.xlu0.b32.cont [14/16] 0.0, 128
    %242 = vxpose.xlu0.b32.cont [15/16] 0.0, 128
    %243 = vxpose.xlu0.b32.end [16/16] 0.0, 128
    %v244 = vpop.trf.xlu0
    %v245 = vpop.trf.xlu0
    %v246 = vpop.trf.xlu0
    %v247 = vpop.trf.xlu0
    %v248 = vpop.trf.xlu0
    %v249 = vpop.trf.xlu0
    %v250 = vpop.trf.xlu0
    %v251 = vpop.trf.xlu0
    %v252 = vpop.trf.xlu0
    %v253 = vpop.trf.xlu0
    %v254 = vpop.trf.xlu0
    %v255 = vpop.trf.xlu0
    %v256 = vpop.trf.xlu0
    %v257 = vpop.trf.xlu0
    %v258 = vpop.trf.xlu0
    %v259 = vpop.trf.xlu0
    %vm260 = vcmask 23552
    %v262 = vsel %vm260, %v148, 0
    %v265 = vsel %vm260, %v149, 0
    %v268 = vsel %vm260, %v150, 0
    %v271 = vsel %vm260, %v151, 0
    %v274 = vsel %vm260, %v152, 0
    %v277 = vsel %vm260, %v153, 0
    %v280 = vsel %vm260, %v154, 0
    %v283 = vsel %vm260, %v155, 0
    %v286 = vsel %vm260, %v156, 0
    %v289 = vsel %vm260, %v157, 0
    %v292 = vsel %vm260, %v158, 0
    %v295 = vsel %vm260, %v159, 0
    %v298 = vsel %vm260, %v160, 0
    %v301 = vsel %vm260, %v161, 0
    %v304 = vsel %vm260, %v162, 0
    %v307 = vsel %vm260, %v163, 0
    %v310 = vsel %vm260, %v180, 0
    %v313 = vsel %vm260, %v181, 0
    %v316 = vsel %vm260, %v182, 0
    %v319 = vsel %vm260, %v183, 0
    %v322 = vsel %vm260, %v184, 0
    %v325 = vsel %vm260, %v185, 0
    %v328 = vsel %vm260, %v186, 0
    %v331 = vsel %vm260, %v187, 0
    %v334 = vsel %vm260, %v188, 0
    %v337 = vsel %vm260, %v189, 0
    %v340 = vsel %vm260, %v190, 0
    %v343 = vsel %vm260, %v191, 0
    %v346 = vsel %vm260, %v192, 0
    %v349 = vsel %vm260, %v193, 0
    %v352 = vsel %vm260, %v194, 0
    %v355 = vsel %vm260, %v195, 0
    %v358 = vsel %vm260, %v212, 0
    %v361 = vsel %vm260, %v213, 0
    %v364 = vsel %vm260, %v214, 0
    %v367 = vsel %vm260, %v215, 0
    %v370 = vsel %vm260, %v216, 0
    %v373 = vsel %vm260, %v217, 0
    %v376 = vsel %vm260, %v218, 0
    %v379 = vsel %vm260, %v219, 0
    %v382 = vsel %vm260, %v220, 0
    %v385 = vsel %vm260, %v221, 0
    %v388 = vsel %vm260, %v222, 0
    %v391 = vsel %vm260, %v223, 0
    %v394 = vsel %vm260, %v224, 0
    %v397 = vsel %vm260, %v225, 0
    %v400 = vsel %vm260, %v226, 0
    %v403 = vsel %vm260, %v227, 0
    %v406 = vsel %vm260, %v244, 0
    %v409 = vsel %vm260, %v245, 0
    %v412 = vsel %vm260, %v246, 0
    %v415 = vsel %vm260, %v247, 0
    %v418 = vsel %vm260, %v248, 0
    %v421 = vsel %vm260, %v249, 0
    %v424 = vsel %vm260, %v250, 0
    %v427 = vsel %vm260, %v251, 0
    %v430 = vsel %vm260, %v252, 0
    %v433 = vsel %vm260, %v253, 0
    %v436 = vsel %vm260, %v254, 0
    %v439 = vsel %vm260, %v255, 0
    %v442 = vsel %vm260, %v256, 0
    %v445 = vsel %vm260, %v257, 0
    %v448 = vsel %vm260, %v258, 0
    %v451 = vsel %vm260, %v259, 0
    %vm453 = vcmask 1042432
    %v455 = vsel %vm453, %v118, 0
    %457 = vmatprep.subr.mxu0 0.0
    %458 = vmatpush1.msra.mxu0 %v455
    %459 = vmatprep.subr.mxu0 0.0
    %460 = vmatpush1.msra.mxu0 0.0
    %461 = vmatprep.subr.mxu0 0.0
    %462 = vmatpush1.msra.mxu0 0.0
    %463 = vmatprep.subr.mxu0 0.0
    %464 = vmatpush1.msra.mxu0 0.0
    %465 = vmatprep.subr.mxu0 0.0
    %466 = vmatpush1.msra.mxu0 0.0
    %467 = vmatprep.subr.mxu0 0.0
    %468 = vmatpush1.msra.mxu0 0.0
    %469 = vmatprep.subr.mxu0 0.0
    %470 = vmatpush1.msra.mxu0 0.0
    %471 = vmatprep.subr.mxu0 0.0
    %472 = vmatpush1.msra.mxu0 0.0
    %473 = vmatprep.subr.mxu0 0.0
    %474 = vmatpush1.msra.mxu0 0.0
    %475 = vmatprep.subr.mxu0 0.0
    %476 = vmatpush1.msra.mxu0 0.0
    %477 = vmatprep.subr.mxu0 0.0
    %478 = vmatpush1.msra.mxu0 0.0
    %479 = vmatprep.subr.mxu0 0.0
    %480 = vmatpush1.msra.mxu0 0.0
    %481 = vmatprep.subr.mxu0 0.0
    %482 = vmatpush1.msra.mxu0 0.0
    %483 = vmatprep.subr.mxu0 0.0
    %484 = vmatpush1.msra.mxu0 0.0
    %485 = vmatprep.subr.mxu0 0.0
    %486 = vmatpush1.msra.mxu0 0.0
    %487 = vmatprep.subr.mxu0 0.0
    %488 = vmatpush1.msra.mxu0 0.0
    %489 = vmatprep.subr.mxu0 0.0
    %490 = vmatpush1.msra.mxu0 0.0
    %491 = vmatprep.subr.mxu0 0.0
    %492 = vmatpush1.msra.mxu0 0.0
    %493 = vmatprep.subr.mxu0 0.0
    %494 = vmatpush1.msra.mxu0 0.0
    %495 = vmatprep.subr.mxu0 0.0
    %496 = vmatpush1.msra.mxu0 0.0
    %497 = vmatprep.subr.mxu0 0.0
    %498 = vmatpush1.msra.mxu0 0.0
    %499 = vmatprep.subr.mxu0 0.0
    %500 = vmatpush1.msra.mxu0 0.0
    %501 = vmatprep.subr.mxu0 0.0
    %502 = vmatpush1.msra.mxu0 0.0
    %503 = vmatprep.subr.mxu0 0.0
    %504 = vmatpush1.msra.mxu0 0.0
    %505 = vmatprep.subr.mxu0 0.0
    %506 = vmatpush1.msra.mxu0 0.0
    %507 = vmatprep.subr.mxu0 0.0
    %508 = vmatpush1.msra.mxu0 0.0
    %509 = vmatprep.subr.mxu0 0.0
    %510 = vmatpush1.msra.mxu0 0.0
    %511 = vmatprep.subr.mxu0 0.0
    %512 = vmatpush1.msra.mxu0 0.0
    %513 = vmatprep.subr.mxu0 0.0
    %514 = vmatpush1.msra.mxu0 0.0
    %515 = vmatprep.subr.mxu0 0.0
    %516 = vmatpush1.msra.mxu0 0.0
    %517 = vmatprep.subr.mxu0 0.0
    %518 = vmatpush1.msra.mxu0 0.0
    %519 = vmatprep.subr.mxu0 0.0
    %520 = vmatpush1.msra.mxu0 0.0
    %521 = vmatprep.mubr.f32.mxu0 0.0
    %522 = vmatmul.mubr.f32.gmra.mrb[0].mxu0 %v262
    %v523 = vpop.f32.mrb[0].mxu0
    %v524 = vadd.f32 %v124, %v523
    %v525 = vpop.f32.mrb[0].mxu0
    %526 = vmatprep.mubr.f32.mxu0 0.0
    %527 = vmatmul.mubr.f32.gmra.mrb[0].mxu0 %v265
    %v528 = vpop.f32.mrb[0].mxu0
    %v529 = vadd.f32 %v124, %v528
    %v530 = vpop.f32.mrb[0].mxu0
    %531 = vmatprep.mubr.f32.mxu0 0.0
    %532 = vmatmul.mubr.f32.gmra.mrb[0].mxu0 %v268
    %v533 = vpop.f32.mrb[0].mxu0
    %v534 = vadd.f32 %v124, %v533
    %v535 = vpop.f32.mrb[0].mxu0
    %536 = vmatprep.mubr.f32.mxu0 0.0
    %537 = vmatmul.mubr.f32.gmra.mrb[0].mxu0 %v271
    %v538 = vpop.f32.mrb[0].mxu0
    %v539 = vadd.f32 %v124, %v538
    %v540 = vpop.f32.mrb[0].mxu0
    %541 = vmatprep.mubr.f32.mxu0 0.0
    %542 = vmatmul.mubr.f32.gmra.mrb[0].mxu0 %v274
    %v543 = vpop.f32.mrb[0].mxu0
    %v544 = vadd.f32 %v124, %v543
    %v545 = vpop.f32.mrb[0].mxu0
    %546 = vmatprep.mubr.f32.mxu0 0.0
    %547 = vmatmul.mubr.f32.gmra.mrb[0].mxu0 %v277
    %v548 = vpop.f32.mrb[0].mxu0
    %v549 = vadd.f32 %v124, %v548
    %v550 = vpop.f32.mrb[0].mxu0
    %551 = vmatprep.mubr.f32.mxu0 0.0
    %552 = vmatmul.mubr.f32.gmra.mrb[0].mxu0 %v280
    %v553 = vpop.f32.mrb[0].mxu0
    %v554 = vadd.f32 %v124, %v553
    %v555 = vpop.f32.mrb[0].mxu0
    %556 = vmatprep.mubr.f32.mxu0 0.0
    %557 = vmatmul.mubr.f32.gmra.mrb[0].mxu0 %v283
    %v558 = vpop.f32.mrb[0].mxu0
    %v559 = vadd.f32 %v124, %v558
    %v560 = vpop.f32.mrb[0].mxu0
    %561 = vmatprep.mubr.f32.mxu0 0.0
    %562 = vmatmul.mubr.f32.gmra.mrb[0].mxu0 %v286
    %v563 = vpop.f32.mrb[0].mxu0
    %v564 = vadd.f32 %v124, %v563
    %v565 = vpop.f32.mrb[0].mxu0
    %566 = vmatprep.mubr.f32.mxu0 0.0
    %567 = vmatmul.mubr.f32.gmra.mrb[0].mxu0 %v289
    %v568 = vpop.f32.mrb[0].mxu0
    %v569 = vadd.f32 %v124, %v568
    %v570 = vpop.f32.mrb[0].mxu0
    %571 = vmatprep.mubr.f32.mxu0 0.0
    %572 = vmatmul.mubr.f32.gmra.mrb[0].mxu0 %v292
    %v573 = vpop.f32.mrb[0].mxu0
    %v574 = vadd.f32 %v124, %v573
    %v575 = vpop.f32.mrb[0].mxu0
    %576 = vmatprep.mubr.f32.mxu0 0.0
    %577 = vmatmul.mubr.f32.gmra.mrb[0].mxu0 %v295
    %v578 = vpop.f32.mrb[0].mxu0
    %v579 = vadd.f32 %v124, %v578
    %v580 = vpop.f32.mrb[0].mxu0
    %581 = vmatprep.mubr.f32.mxu0 0.0
    %582 = vmatmul.mubr.f32.gmra.mrb[0].mxu0 %v298
    %v583 = vpop.f32.mrb[0].mxu0
    %v584 = vadd.f32 %v124, %v583
    %v585 = vpop.f32.mrb[0].mxu0
    %586 = vmatprep.mubr.f32.mxu0 0.0
    %587 = vmatmul.mubr.f32.gmra.mrb[0].mxu0 %v301
    %v588 = vpop.f32.mrb[0].mxu0
    %v589 = vadd.f32 %v124, %v588
    %v590 = vpop.f32.mrb[0].mxu0
    %591 = vmatprep.mubr.f32.mxu0 0.0
    %592 = vmatmul.mubr.f32.gmra.mrb[0].mxu0 %v304
    %v593 = vpop.f32.mrb[0].mxu0
    %v594 = vadd.f32 %v124, %v593
    %v595 = vpop.f32.mrb[0].mxu0
    %596 = vmatprep.mubr.f32.mxu0 0.0
    %597 = vmatmul.mubr.f32.gmra.mrb[0].mxu0 %v307
    %v598 = vpop.f32.mrb[0].mxu0
    %v599 = vadd.f32 %v124, %v598
    %v600 = vpop.f32.mrb[0].mxu0
    %601 = vmatprep.mubr.f32.mxu0 0.0
    %602 = vmatmul.mubr.f32.gmra.mrb[0].mxu0 %v310
    %v603 = vpop.f32.mrb[0].mxu0
    %v604 = vadd.f32 %v124, %v603
    %v605 = vpop.f32.mrb[0].mxu0
    %606 = vmatprep.mubr.f32.mxu0 0.0
    %607 = vmatmul.mubr.f32.gmra.mrb[0].mxu0 %v313
    %v608 = vpop.f32.mrb[0].mxu0
    %v609 = vadd.f32 %v124, %v608
    %v610 = vpop.f32.mrb[0].mxu0
    %611 = vmatprep.mubr.f32.mxu0 0.0
    %612 = vmatmul.mubr.f32.gmra.mrb[0].mxu0 %v316
    %v613 = vpop.f32.mrb[0].mxu0
    %v614 = vadd.f32 %v124, %v613
    %v615 = vpop.f32.mrb[0].mxu0
    %616 = vmatprep.mubr.f32.mxu0 0.0
    %617 = vmatmul.mubr.f32.gmra.mrb[0].mxu0 %v319
    %v618 = vpop.f32.mrb[0].mxu0
    %v619 = vadd.f32 %v124, %v618
    %v620 = vpop.f32.mrb[0].mxu0
    %621 = vmatprep.mubr.f32.mxu0 0.0
    %622 = vmatmul.mubr.f32.gmra.mrb[0].mxu0 %v322
    %v623 = vpop.f32.mrb[0].mxu0
    %v624 = vadd.f32 %v124, %v623
    %v625 = vpop.f32.mrb[0].mxu0
    %626 = vmatprep.mubr.f32.mxu0 0.0
    %627 = vmatmul.mubr.f32.gmra.mrb[0].mxu0 %v325
    %v628 = vpop.f32.mrb[0].mxu0
    %v629 = vadd.f32 %v124, %v628
    %v630 = vpop.f32.mrb[0].mxu0
    %631 = vmatprep.mubr.f32.mxu0 0.0
    %632 = vmatmul.mubr.f32.gmra.mrb[0].mxu0 %v328
    %v633 = vpop.f32.mrb[0].mxu0
    %v634 = vadd.f32 %v124, %v633
    %v635 = vpop.f32.mrb[0].mxu0
    %636 = vmatprep.mubr.f32.mxu0 0.0
    %637 = vmatmul.mubr.f32.gmra.mrb[0].mxu0 %v331
    %v638 = vpop.f32.mrb[0].mxu0
    %v639 = vadd.f32 %v124, %v638
    %v640 = vpop.f32.mrb[0].mxu0
    %641 = vmatprep.mubr.f32.mxu0 0.0
    %642 = vmatmul.mubr.f32.gmra.mrb[0].mxu0 %v334
    %v643 = vpop.f32.mrb[0].mxu0
    %v644 = vadd.f32 %v124, %v643
    %v645 = vpop.f32.mrb[0].mxu0
    %646 = vmatprep.mubr.f32.mxu0 0.0
    %647 = vmatmul.mubr.f32.gmra.mrb[0].mxu0 %v337
    %v648 = vpop.f32.mrb[0].mxu0
    %v649 = vadd.f32 %v124, %v648
    %v650 = vpop.f32.mrb[0].mxu0
    %651 = vmatprep.mubr.f32.mxu0 0.0
    %652 = vmatmul.mubr.f32.gmra.mrb[0].mxu0 %v340
    %v653 = vpop.f32.mrb[0].mxu0
    %v654 = vadd.f32 %v124, %v653
    %v655 = vpop.f32.mrb[0].mxu0
    %656 = vmatprep.mubr.f32.mxu0 0.0
    %657 = vmatmul.mubr.f32.gmra.mrb[0].mxu0 %v343
    %v658 = vpop.f32.mrb[0].mxu0
    %v659 = vadd.f32 %v124, %v658
    %v660 = vpop.f32.mrb[0].mxu0
    %661 = vmatprep.mubr.f32.mxu0 0.0
    %662 = vmatmul.mubr.f32.gmra.mrb[0].mxu0 %v346
    %v663 = vpop.f32.mrb[0].mxu0
    %v664 = vadd.f32 %v124, %v663
    %v665 = vpop.f32.mrb[0].mxu0
    %666 = vmatprep.mubr.f32.mxu0 0.0
    %667 = vmatmul.mubr.f32.gmra.mrb[0].mxu0 %v349
    %v668 = vpop.f32.mrb[0].mxu0
    %v669 = vadd.f32 %v124, %v668
    %v670 = vpop.f32.mrb[0].mxu0
    %671 = vmatprep.mubr.f32.mxu0 0.0
    %672 = vmatmul.mubr.f32.gmra.mrb[0].mxu0 %v352
    %v673 = vpop.f32.mrb[0].mxu0
    %v674 = vadd.f32 %v124, %v673
    %v675 = vpop.f32.mrb[0].mxu0
    %676 = vmatprep.mubr.f32.mxu0 0.0
    %677 = vmatmul.mubr.f32.gmra.mrb[0].mxu0 %v355
    %v678 = vpop.f32.mrb[0].mxu0
    %v679 = vadd.f32 %v124, %v678
    %v680 = vpop.f32.mrb[0].mxu0
    %681 = vmatprep.mubr.f32.mxu0 0.0
    %682 = vmatmul.mubr.f32.gmra.mrb[0].mxu0 %v358
    %v683 = vpop.f32.mrb[0].mxu0
    %v684 = vadd.f32 %v124, %v683
    %v685 = vpop.f32.mrb[0].mxu0
    %686 = vmatprep.mubr.f32.mxu0 0.0
    %687 = vmatmul.mubr.f32.gmra.mrb[0].mxu0 %v361
    %v688 = vpop.f32.mrb[0].mxu0
    %v689 = vadd.f32 %v124, %v688
    %v690 = vpop.f32.mrb[0].mxu0
    %691 = vmatprep.mubr.f32.mxu0 0.0
    %692 = vmatmul.mubr.f32.gmra.mrb[0].mxu0 %v364
    %v693 = vpop.f32.mrb[0].mxu0
    %v694 = vadd.f32 %v124, %v693
    %v695 = vpop.f32.mrb[0].mxu0
    %696 = vmatprep.mubr.f32.mxu0 0.0
    %697 = vmatmul.mubr.f32.gmra.mrb[0].mxu0 %v367
    %v698 = vpop.f32.mrb[0].mxu0
    %v699 = vadd.f32 %v124, %v698
    %v700 = vpop.f32.mrb[0].mxu0
    %701 = vmatprep.mubr.f32.mxu0 0.0
    %702 = vmatmul.mubr.f32.gmra.mrb[0].mxu0 %v370
    %v703 = vpop.f32.mrb[0].mxu0
    %v704 = vadd.f32 %v124, %v703
    %v705 = vpop.f32.mrb[0].mxu0
    %706 = vmatprep.mubr.f32.mxu0 0.0
    %707 = vmatmul.mubr.f32.gmra.mrb[0].mxu0 %v373
    %v708 = vpop.f32.mrb[0].mxu0
    %v709 = vadd.f32 %v124, %v708
    %v710 = vpop.f32.mrb[0].mxu0
    %711 = vmatprep.mubr.f32.mxu0 0.0
    %712 = vmatmul.mubr.f32.gmra.mrb[0].mxu0 %v376
    %v713 = vpop.f32.mrb[0].mxu0
    %v714 = vadd.f32 %v124, %v713
    %v715 = vpop.f32.mrb[0].mxu0
    %716 = vmatprep.mubr.f32.mxu0 0.0
    %717 = vmatmul.mubr.f32.gmra.mrb[0].mxu0 %v379
    %v718 = vpop.f32.mrb[0].mxu0
    %v719 = vadd.f32 %v124, %v718
    %v720 = vpop.f32.mrb[0].mxu0
    %721 = vmatprep.mubr.f32.mxu0 0.0
    %722 = vmatmul.mubr.f32.gmra.mrb[0].mxu0 %v382
    %v723 = vpop.f32.mrb[0].mxu0
    %v724 = vadd.f32 %v124, %v723
    %v725 = vpop.f32.mrb[0].mxu0
    %726 = vmatprep.mubr.f32.mxu0 0.0
    %727 = vmatmul.mubr.f32.gmra.mrb[0].mxu0 %v385
    %v728 = vpop.f32.mrb[0].mxu0
    %v729 = vadd.f32 %v124, %v728
    %v730 = vpop.f32.mrb[0].mxu0
    %731 = vmatprep.mubr.f32.mxu0 0.0
    %732 = vmatmul.mubr.f32.gmra.mrb[0].mxu0 %v388
    %v733 = vpop.f32.mrb[0].mxu0
    %v734 = vadd.f32 %v124, %v733
    %v735 = vpop.f32.mrb[0].mxu0
    %736 = vmatprep.mubr.f32.mxu0 0.0
    %737 = vmatmul.mubr.f32.gmra.mrb[0].mxu0 %v391
    %v738 = vpop.f32.mrb[0].mxu0
    %v739 = vadd.f32 %v124, %v738
    %v740 = vpop.f32.mrb[0].mxu0
    %741 = vmatprep.mubr.f32.mxu0 0.0
    %742 = vmatmul.mubr.f32.gmra.mrb[0].mxu0 %v394
    %v743 = vpop.f32.mrb[0].mxu0
    %v744 = vadd.f32 %v124, %v743
    %v745 = vpop.f32.mrb[0].mxu0
    %746 = vmatprep.mubr.f32.mxu0 0.0
    %747 = vmatmul.mubr.f32.gmra.mrb[0].mxu0 %v397
    %v748 = vpop.f32.mrb[0].mxu0
    %v749 = vadd.f32 %v124, %v748
    %v750 = vpop.f32.mrb[0].mxu0
    %751 = vmatprep.mubr.f32.mxu0 0.0
    %752 = vmatmul.mubr.f32.gmra.mrb[0].mxu0 %v400
    %v753 = vpop.f32.mrb[0].mxu0
    %v754 = vadd.f32 %v124, %v753
    %v755 = vpop.f32.mrb[0].mxu0
    %756 = vmatprep.mubr.f32.mxu0 0.0
    %757 = vmatmul.mubr.f32.gmra.mrb[0].mxu0 %v403
    %v758 = vpop.f32.mrb[0].mxu0
    %v759 = vadd.f32 %v124, %v758
    %v760 = vpop.f32.mrb[0].mxu0
    %761 = vmatprep.mubr.f32.mxu0 0.0
    %762 = vmatmul.mubr.f32.gmra.mrb[0].mxu0 %v406
    %v763 = vpop.f32.mrb[0].mxu0
    %v764 = vadd.f32 %v124, %v763
    %v765 = vpop.f32.mrb[0].mxu0
    %766 = vmatprep.mubr.f32.mxu0 0.0
    %767 = vmatmul.mubr.f32.gmra.mrb[0].mxu0 %v409
    %v768 = vpop.f32.mrb[0].mxu0
    %v769 = vadd.f32 %v124, %v768
    %v770 = vpop.f32.mrb[0].mxu0
    %771 = vmatprep.mubr.f32.mxu0 0.0
    %772 = vmatmul.mubr.f32.gmra.mrb[0].mxu0 %v412
    %v773 = vpop.f32.mrb[0].mxu0
    %v774 = vadd.f32 %v124, %v773
    %v775 = vpop.f32.mrb[0].mxu0
    %776 = vmatprep.mubr.f32.mxu0 0.0
    %777 = vmatmul.mubr.f32.gmra.mrb[0].mxu0 %v415
    %v778 = vpop.f32.mrb[0].mxu0
    %v779 = vadd.f32 %v124, %v778
    %v780 = vpop.f32.mrb[0].mxu0
    %781 = vmatprep.mubr.f32.mxu0 0.0
    %782 = vmatmul.mubr.f32.gmra.mrb[0].mxu0 %v418
    %v783 = vpop.f32.mrb[0].mxu0
    %v784 = vadd.f32 %v124, %v783
    %v785 = vpop.f32.mrb[0].mxu0
    %786 = vmatprep.mubr.f32.mxu0 0.0
    %787 = vmatmul.mubr.f32.gmra.mrb[0].mxu0 %v421
    %v788 = vpop.f32.mrb[0].mxu0
    %v789 = vadd.f32 %v124, %v788
    %v790 = vpop.f32.mrb[0].mxu0
    %791 = vmatprep.mubr.f32.mxu0 0.0
    %792 = vmatmul.mubr.f32.gmra.mrb[0].mxu0 %v424
    %v793 = vpop.f32.mrb[0].mxu0
    %v794 = vadd.f32 %v124, %v793
    %v795 = vpop.f32.mrb[0].mxu0
    %796 = vmatprep.mubr.f32.mxu0 0.0
    %797 = vmatmul.mubr.f32.gmra.mrb[0].mxu0 %v427
    %v798 = vpop.f32.mrb[0].mxu0
    %v799 = vadd.f32 %v124, %v798
    %v800 = vpop.f32.mrb[0].mxu0
    %801 = vmatprep.mubr.f32.mxu0 0.0
    %802 = vmatmul.mubr.f32.gmra.mrb[0].mxu0 %v430
    %v803 = vpop.f32.mrb[0].mxu0
    %v804 = vadd.f32 %v124, %v803
    %v805 = vpop.f32.mrb[0].mxu0
    %806 = vmatprep.mubr.f32.mxu0 0.0
    %807 = vmatmul.mubr.f32.gmra.mrb[0].mxu0 %v433
    %v808 = vpop.f32.mrb[0].mxu0
    %v809 = vadd.f32 %v124, %v808
    %v810 = vpop.f32.mrb[0].mxu0
    %811 = vmatprep.mubr.f32.mxu0 0.0
    %812 = vmatmul.mubr.f32.gmra.mrb[0].mxu0 %v436
    %v813 = vpop.f32.mrb[0].mxu0
    %v814 = vadd.f32 %v124, %v813
    %v815 = vpop.f32.mrb[0].mxu0
    %816 = vmatprep.mubr.f32.mxu0 0.0
    %817 = vmatmul.mubr.f32.gmra.mrb[0].mxu0 %v439
    %v818 = vpop.f32.mrb[0].mxu0
    %v819 = vadd.f32 %v124, %v818
    %v820 = vpop.f32.mrb[0].mxu0
    %821 = vmatprep.mubr.f32.mxu0 0.0
    %822 = vmatmul.mubr.f32.gmra.mrb[0].mxu0 %v442
    %v823 = vpop.f32.mrb[0].mxu0
    %v824 = vadd.f32 %v124, %v823
    %v825 = vpop.f32.mrb[0].mxu0
    %826 = vmatprep.mubr.f32.mxu0 0.0
    %827 = vmatmul.mubr.f32.gmra.mrb[0].mxu0 %v445
    %v828 = vpop.f32.mrb[0].mxu0
    %v829 = vadd.f32 %v124, %v828
    %v830 = vpop.f32.mrb[0].mxu0
    %831 = vmatprep.mubr.f32.mxu0 0.0
    %832 = vmatmul.mubr.f32.gmra.mrb[0].mxu0 %v448
    %v833 = vpop.f32.mrb[0].mxu0
    %v834 = vadd.f32 %v124, %v833
    %v835 = vpop.f32.mrb[0].mxu0
    %836 = vmatprep.mubr.f32.mxu0 0.0
    %837 = vmatmul.mubr.f32.gmra.mrb[0].mxu0 %v451
    %v838 = vpop.f32.mrb[0].mxu0
    %v839 = vadd.f32 %v124, %v838
    %v840 = vpop.f32.mrb[0].mxu0
    %841 = vdwg.mxu0
    %v842 = vmax.f32 %v524, 0.0
    %v843 = vmax.f32 %v529, 0.0
    %v844 = vmax.f32 %v534, 0.0
    %v845 = vmax.f32 %v539, 0.0
    %v846 = vmax.f32 %v544, 0.0
    %v847 = vmax.f32 %v549, 0.0
    %v848 = vmax.f32 %v554, 0.0
    %v849 = vmax.f32 %v559, 0.0
    %v850 = vmax.f32 %v564, 0.0
    %v851 = vmax.f32 %v569, 0.0
    %v852 = vmax.f32 %v574, 0.0
    %v853 = vmax.f32 %v579, 0.0
    %v854 = vmax.f32 %v584, 0.0
    %v855 = vmax.f32 %v589, 0.0
    %v856 = vmax.f32 %v594, 0.0
    %v857 = vmax.f32 %v599, 0.0
    %v858 = vmax.f32 %v604, 0.0
    %v859 = vmax.f32 %v609, 0.0
    %v860 = vmax.f32 %v614, 0.0
    %v861 = vmax.f32 %v619, 0.0
    %v862 = vmax.f32 %v624, 0.0
    %v863 = vmax.f32 %v629, 0.0
    %v864 = vmax.f32 %v634, 0.0
    %v865 = vmax.f32 %v639, 0.0
    %v866 = vmax.f32 %v644, 0.0
    %v867 = vmax.f32 %v649, 0.0
    %v868 = vmax.f32 %v654, 0.0
    %v869 = vmax.f32 %v659, 0.0
    %v870 = vmax.f32 %v664, 0.0
    %v871 = vmax.f32 %v669, 0.0
    %v872 = vmax.f32 %v674, 0.0
    %v873 = vmax.f32 %v679, 0.0
    %v874 = vmax.f32 %v684, 0.0
    %v875 = vmax.f32 %v689, 0.0
    %v876 = vmax.f32 %v694, 0.0
    %v877 = vmax.f32 %v699, 0.0
    %v878 = vmax.f32 %v704, 0.0
    %v879 = vmax.f32 %v709, 0.0
    %v880 = vmax.f32 %v714, 0.0
    %v881 = vmax.f32 %v719, 0.0
    %v882 = vmax.f32 %v724, 0.0
    %v883 = vmax.f32 %v729, 0.0
    %v884 = vmax.f32 %v734, 0.0
    %v885 = vmax.f32 %v739, 0.0
    %v886 = vmax.f32 %v744, 0.0
    %v887 = vmax.f32 %v749, 0.0
    %v888 = vmax.f32 %v754, 0.0
    %v889 = vmax.f32 %v759, 0.0
    %v890 = vmax.f32 %v764, 0.0
    %v891 = vmax.f32 %v769, 0.0
    %v892 = vmax.f32 %v774, 0.0
    %v893 = vmax.f32 %v779, 0.0
    %v894 = vmax.f32 %v784, 0.0
    %v895 = vmax.f32 %v789, 0.0
    %v896 = vmax.f32 %v794, 0.0
    %v897 = vmax.f32 %v799, 0.0
    %v898 = vmax.f32 %v804, 0.0
    %v899 = vmax.f32 %v809, 0.0
    %v900 = vmax.f32 %v814, 0.0
    %v901 = vmax.f32 %v819, 0.0
    %v902 = vmax.f32 %v824, 0.0
    %v903 = vmax.f32 %v829, 0.0
    %v904 = vmax.f32 %v834, 0.0
    %v905 = vmax.f32 %v839, 0.0
    %v906 = vpack.c.bf16 %v843, %v842
    %v907 = vpack.c.bf16 %v845, %v844
    %v908 = vpack.c.bf16 %v847, %v846
    %v909 = vpack.c.bf16 %v849, %v848
    %v910 = vpack.c.bf16 %v851, %v850
    %v911 = vpack.c.bf16 %v853, %v852
    %v912 = vpack.c.bf16 %v855, %v854
    %v913 = vpack.c.bf16 %v857, %v856
    %v914 = vpack.c.bf16 %v859, %v858
    %v915 = vpack.c.bf16 %v861, %v860
    %v916 = vpack.c.bf16 %v863, %v862
    %v917 = vpack.c.bf16 %v865, %v864
    %v918 = vpack.c.bf16 %v867, %v866
    %v919 = vpack.c.bf16 %v869, %v868
    %v920 = vpack.c.bf16 %v871, %v870
    %v921 = vpack.c.bf16 %v873, %v872
    %v922 = vpack.c.bf16 %v875, %v874
    %v923 = vpack.c.bf16 %v877, %v876
    %v924 = vpack.c.bf16 %v879, %v878
    %v925 = vpack.c.bf16 %v881, %v880
    %v926 = vpack.c.bf16 %v883, %v882
    %v927 = vpack.c.bf16 %v885, %v884
    %v928 = vpack.c.bf16 %v887, %v886
    %v929 = vpack.c.bf16 %v889, %v888
    %v930 = vpack.c.bf16 %v891, %v890
    %v931 = vpack.c.bf16 %v893, %v892
    %v932 = vpack.c.bf16 %v895, %v894
    %v933 = vpack.c.bf16 %v897, %v896
    %v934 = vpack.c.bf16 %v899, %v898
    %v935 = vpack.c.bf16 %v901, %v900
    %v936 = vpack.c.bf16 %v903, %v902
    %v937 = vpack.c.bf16 %v905, %v904
    %v938 = vld [vmem:[%s3] sm:$0xf]
    %v939 = vld [vmem:[%s3 + $0x4] sm:$0xf]
    %v940 = vld [vmem:[%s3 + $0x8] sm:$0xf]
    %v941 = vld [vmem:[%s3 + $0xc] sm:$0xf]
    %v942 = vld [vmem:[%s3 + $0x10] sm:$0xf]
    %v943 = vld [vmem:[%s3 + $0x14] sm:$0xf]
    %v944 = vld [vmem:[%s3 + $0x18] sm:$0xf]
    %v945 = vld [vmem:[%s3 + $0x1c] sm:$0xf]
    %v946 = vld [vmem:[#allocation7] sm:$0x1]
    %v948 = vlaneseq
    %v949 = vshrl.u32 %v948, 7
    %v950 = vsub.s32 0, %v949
    %v951 = vrot.slane %v946, %v950
    %v961 = vunpack.c.l.b16 %v938
    %v962 = vunpack.c.l.b16 %v939
    %v963 = vunpack.c.l.b16 %v940
    %v964 = vunpack.c.l.b16 %v941
    %v965 = vunpack.c.l.b16 %v942
    %v966 = vunpack.c.l.b16 %v943
    %v967 = vunpack.c.l.b16 %v944
    %v968 = vunpack.c.l.b16 %v945
    %v969 = vpack.c.b16 %v962, %v961
    %v970 = vpack.c.b16 %v964, %v963
    %v971 = vpack.c.b16 %v966, %v965
    %v972 = vpack.c.b16 %v968, %v967
    %vm977 = vcmask 523264
    %v979 = vsel %vm977, %v906, 0
    %v982 = vsel %vm977, %v907, 0
    %v985 = vsel %vm977, %v908, 0
    %v988 = vsel %vm977, %v909, 0
    %v991 = vsel %vm977, %v910, 0
    %v994 = vsel %vm977, %v911, 0
    %v997 = vsel %vm977, %v912, 0
    %v1000 = vsel %vm977, %v913, 0
    %v1003 = vsel %vm977, %v914, 0
    %v1006 = vsel %vm977, %v915, 0
    %v1009 = vsel %vm977, %v916, 0
    %v1012 = vsel %vm977, %v917, 0
    %v1015 = vsel %vm977, %v918, 0
    %v1018 = vsel %vm977, %v919, 0
    %v1021 = vsel %vm977, %v920, 0
    %v1024 = vsel %vm977, %v921, 0
    %v1027 = vsel %vm977, %v922, 0
    %v1030 = vsel %vm977, %v923, 0
    %v1033 = vsel %vm977, %v924, 0
    %v1036 = vsel %vm977, %v925, 0
    %v1039 = vsel %vm977, %v926, 0
    %v1042 = vsel %vm977, %v927, 0
    %v1045 = vsel %vm977, %v928, 0
    %v1048 = vsel %vm977, %v929, 0
    %v1051 = vsel %vm977, %v930, 0
    %v1054 = vsel %vm977, %v931, 0
    %v1057 = vsel %vm977, %v932, 0
    %v1060 = vsel %vm977, %v933, 0
    %v1063 = vsel %vm977, %v934, 0
    %v1066 = vsel %vm977, %v935, 0
    %v1069 = vsel %vm977, %v936, 0
    %v1072 = vsel %vm977, %v937, 0
    %1074 = vmatprep.subr.bf16.mxu0 0
    %1075 = vmatpush1.bf16.msra.mxu0 %v969
    %1076 = vmatprep.subr.bf16.mxu0 0
    %1077 = vmatpush1.bf16.msra.mxu0 %v970
    %1078 = vmatprep.subr.bf16.mxu0 0
    %1079 = vmatpush1.bf16.msra.mxu0 %v971
    %1080 = vmatprep.subr.bf16.mxu0 0
    %1081 = vmatpush1.bf16.msra.mxu0 %v972
    %1082 = vmatprep.subr.bf16.mxu0 0
    %1083 = vmatpush1.bf16.msra.mxu0 0
    %1084 = vmatprep.subr.bf16.mxu0 0
    %1085 = vmatpush1.bf16.msra.mxu0 0
    %1086 = vmatprep.subr.bf16.mxu0 0
    %1087 = vmatpush1.bf16.msra.mxu0 0
    %1088 = vmatprep.subr.bf16.mxu0 0
    %1089 = vmatpush1.bf16.msra.mxu0 0
    %1090 = vmatprep.subr.bf16.mxu0 0
    %1091 = vmatpush1.bf16.msra.mxu0 0
    %1092 = vmatprep.subr.bf16.mxu0 0
    %1093 = vmatpush1.bf16.msra.mxu0 0
    %1094 = vmatprep.subr.bf16.mxu0 0
    %1095 = vmatpush1.bf16.msra.mxu0 0
    %1096 = vmatprep.subr.bf16.mxu0 0
    %1097 = vmatpush1.bf16.msra.mxu0 0
    %1098 = vmatprep.subr.bf16.mxu0 0
    %1099 = vmatpush1.bf16.msra.mxu0 0
    %1100 = vmatprep.subr.bf16.mxu0 0
    %1101 = vmatpush1.bf16.msra.mxu0 0
    %1102 = vmatprep.subr.bf16.mxu0 0
    %1103 = vmatpush1.bf16.msra.mxu0 0
    %1104 = vmatprep.subr.bf16.mxu0 0
    %1105 = vmatpush1.bf16.msra.mxu0 0
    %1106 = vmatprep.mubr.bf16.mxu0 0
    %1107 = vmatmul.mubr.bf16.gmra.mrb[0].mxu0 %v979
    %v1108 = vpop.f32.mrb[0].mxu0
    %v1109 = vadd.f32 %v951, %v1108
    %v1110 = vpop.f32.mrb[0].mxu0
    %v1111 = vpop.f32.mrb[0].mxu0
    %v1112 = vadd.f32 %v951, %v1111
    %v1113 = vpop.f32.mrb[0].mxu0
    %1114 = vmatprep.mubr.bf16.mxu0 0
    %1115 = vmatmul.mubr.bf16.gmra.mrb[0].mxu0 %v982
    %v1116 = vpop.f32.mrb[0].mxu0
    %v1117 = vadd.f32 %v951, %v1116
    %v1118 = vpop.f32.mrb[0].mxu0
    %v1119 = vpop.f32.mrb[0].mxu0
    %v1120 = vadd.f32 %v951, %v1119
    %v1121 = vpop.f32.mrb[0].mxu0
    %1122 = vmatprep.mubr.bf16.mxu0 0
    %1123 = vmatmul.mubr.bf16.gmra.mrb[0].mxu0 %v985
    %v1124 = vpop.f32.mrb[0].mxu0
    %v1125 = vadd.f32 %v951, %v1124
    %v1126 = vpop.f32.mrb[0].mxu0
    %v1127 = vpop.f32.mrb[0].mxu0
    %v1128 = vadd.f32 %v951, %v1127
    %v1129 = vpop.f32.mrb[0].mxu0
    %1130 = vmatprep.mubr.bf16.mxu0 0
    %1131 = vmatmul.mubr.bf16.gmra.mrb[0].mxu0 %v988
    %v1132 = vpop.f32.mrb[0].mxu0
    %v1133 = vadd.f32 %v951, %v1132
    %v1134 = vpop.f32.mrb[0].mxu0
    %v1135 = vpop.f32.mrb[0].mxu0
    %v1136 = vadd.f32 %v951, %v1135
    %v1137 = vpop.f32.mrb[0].mxu0
    %1138 = vmatprep.mubr.bf16.mxu0 0
    %1139 = vmatmul.mubr.bf16.gmra.mrb[0].mxu0 %v991
    %v1140 = vpop.f32.mrb[0].mxu0
    %v1141 = vadd.f32 %v951, %v1140
    %v1142 = vpop.f32.mrb[0].mxu0
    %v1143 = vpop.f32.mrb[0].mxu0
    %v1144 = vadd.f32 %v951, %v1143
    %v1145 = vpop.f32.mrb[0].mxu0
    %1146 = vmatprep.mubr.bf16.mxu0 0
    %1147 = vmatmul.mubr.bf16.gmra.mrb[0].mxu0 %v994
    %v1148 = vpop.f32.mrb[0].mxu0
    %v1149 = vadd.f32 %v951, %v1148
    %v1150 = vpop.f32.mrb[0].mxu0
    %v1151 = vpop.f32.mrb[0].mxu0
    %v1152 = vadd.f32 %v951, %v1151
    %v1153 = vpop.f32.mrb[0].mxu0
    %1154 = vmatprep.mubr.bf16.mxu0 0
    %1155 = vmatmul.mubr.bf16.gmra.mrb[0].mxu0 %v997
    %v1156 = vpop.f32.mrb[0].mxu0
    %v1157 = vadd.f32 %v951, %v1156
    %v1158 = vpop.f32.mrb[0].mxu0
    %v1159 = vpop.f32.mrb[0].mxu0
    %v1160 = vadd.f32 %v951, %v1159
    %v1161 = vpop.f32.mrb[0].mxu0
    %1162 = vmatprep.mubr.bf16.mxu0 0
    %1163 = vmatmul.mubr.bf16.gmra.mrb[0].mxu0 %v1000
    %v1164 = vpop.f32.mrb[0].mxu0
    %v1165 = vadd.f32 %v951, %v1164
    %v1166 = vpop.f32.mrb[0].mxu0
    %v1167 = vpop.f32.mrb[0].mxu0
    %v1168 = vadd.f32 %v951, %v1167
    %v1169 = vpop.f32.mrb[0].mxu0
    %1170 = vmatprep.mubr.bf16.mxu0 0
    %1171 = vmatmul.mubr.bf16.gmra.mrb[0].mxu0 %v1003
    %v1172 = vpop.f32.mrb[0].mxu0
    %v1173 = vadd.f32 %v951, %v1172
    %v1174 = vpop.f32.mrb[0].mxu0
    %v1175 = vpop.f32.mrb[0].mxu0
    %v1176 = vadd.f32 %v951, %v1175
    %v1177 = vpop.f32.mrb[0].mxu0
    %1178 = vmatprep.mubr.bf16.mxu0 0
    %1179 = vmatmul.mubr.bf16.gmra.mrb[0].mxu0 %v1006
    %v1180 = vpop.f32.mrb[0].mxu0
    %v1181 = vadd.f32 %v951, %v1180
    %v1182 = vpop.f32.mrb[0].mxu0
    %v1183 = vpop.f32.mrb[0].mxu0
    %v1184 = vadd.f32 %v951, %v1183
    %v1185 = vpop.f32.mrb[0].mxu0
    %1186 = vmatprep.mubr.bf16.mxu0 0
    %1187 = vmatmul.mubr.bf16.gmra.mrb[0].mxu0 %v1009
    %v1188 = vpop.f32.mrb[0].mxu0
    %v1189 = vadd.f32 %v951, %v1188
    %v1190 = vpop.f32.mrb[0].mxu0
    %v1191 = vpop.f32.mrb[0].mxu0
    %v1192 = vadd.f32 %v951, %v1191
    %v1193 = vpop.f32.mrb[0].mxu0
    %1194 = vmatprep.mubr.bf16.mxu0 0
    %1195 = vmatmul.mubr.bf16.gmra.mrb[0].mxu0 %v1012
    %v1196 = vpop.f32.mrb[0].mxu0
    %v1197 = vadd.f32 %v951, %v1196
    %v1198 = vpop.f32.mrb[0].mxu0
    %v1199 = vpop.f32.mrb[0].mxu0
    %v1200 = vadd.f32 %v951, %v1199
    %v1201 = vpop.f32.mrb[0].mxu0
    %1202 = vmatprep.mubr.bf16.mxu0 0
    %1203 = vmatmul.mubr.bf16.gmra.mrb[0].mxu0 %v1015
    %v1204 = vpop.f32.mrb[0].mxu0
    %v1205 = vadd.f32 %v951, %v1204
    %v1206 = vpop.f32.mrb[0].mxu0
    %v1207 = vpop.f32.mrb[0].mxu0
    %v1208 = vadd.f32 %v951, %v1207
    %v1209 = vpop.f32.mrb[0].mxu0
    %1210 = vmatprep.mubr.bf16.mxu0 0
    %1211 = vmatmul.mubr.bf16.gmra.mrb[0].mxu0 %v1018
    %v1212 = vpop.f32.mrb[0].mxu0
    %v1213 = vadd.f32 %v951, %v1212
    %v1214 = vpop.f32.mrb[0].mxu0
    %v1215 = vpop.f32.mrb[0].mxu0
    %v1216 = vadd.f32 %v951, %v1215
    %v1217 = vpop.f32.mrb[0].mxu0
    %1218 = vmatprep.mubr.bf16.mxu0 0
    %1219 = vmatmul.mubr.bf16.gmra.mrb[0].mxu0 %v1021
    %v1220 = vpop.f32.mrb[0].mxu0
    %v1221 = vadd.f32 %v951, %v1220
    %v1222 = vpop.f32.mrb[0].mxu0
    %v1223 = vpop.f32.mrb[0].mxu0
    %v1224 = vadd.f32 %v951, %v1223
    %v1225 = vpop.f32.mrb[0].mxu0
    %1226 = vmatprep.mubr.bf16.mxu0 0
    %1227 = vmatmul.mubr.bf16.gmra.mrb[0].mxu0 %v1024
    %v1228 = vpop.f32.mrb[0].mxu0
    %v1229 = vadd.f32 %v951, %v1228
    %v1230 = vpop.f32.mrb[0].mxu0
    %v1231 = vpop.f32.mrb[0].mxu0
    %v1232 = vadd.f32 %v951, %v1231
    %v1233 = vpop.f32.mrb[0].mxu0
    %1234 = vmatprep.mubr.bf16.mxu0 0
    %1235 = vmatmul.mubr.bf16.gmra.mrb[0].mxu0 %v1027
    %v1236 = vpop.f32.mrb[0].mxu0
    %v1237 = vadd.f32 %v951, %v1236
    %v1238 = vpop.f32.mrb[0].mxu0
    %v1239 = vpop.f32.mrb[0].mxu0
    %v1240 = vadd.f32 %v951, %v1239
    %v1241 = vpop.f32.mrb[0].mxu0
    %1242 = vmatprep.mubr.bf16.mxu0 0
    %1243 = vmatmul.mubr.bf16.gmra.mrb[0].mxu0 %v1030
    %v1244 = vpop.f32.mrb[0].mxu0
    %v1245 = vadd.f32 %v951, %v1244
    %v1246 = vpop.f32.mrb[0].mxu0
    %v1247 = vpop.f32.mrb[0].mxu0
    %v1248 = vadd.f32 %v951, %v1247
    %v1249 = vpop.f32.mrb[0].mxu0
    %1250 = vmatprep.mubr.bf16.mxu0 0
    %1251 = vmatmul.mubr.bf16.gmra.mrb[0].mxu0 %v1033
    %v1252 = vpop.f32.mrb[0].mxu0
    %v1253 = vadd.f32 %v951, %v1252
    %v1254 = vpop.f32.mrb[0].mxu0
    %v1255 = vpop.f32.mrb[0].mxu0
    %v1256 = vadd.f32 %v951, %v1255
    %v1257 = vpop.f32.mrb[0].mxu0
    %1258 = vmatprep.mubr.bf16.mxu0 0
    %1259 = vmatmul.mubr.bf16.gmra.mrb[0].mxu0 %v1036
    %v1260 = vpop.f32.mrb[0].mxu0
    %v1261 = vadd.f32 %v951, %v1260
    %v1262 = vpop.f32.mrb[0].mxu0
    %v1263 = vpop.f32.mrb[0].mxu0
    %v1264 = vadd.f32 %v951, %v1263
    %v1265 = vpop.f32.mrb[0].mxu0
    %1266 = vmatprep.mubr.bf16.mxu0 0
    %1267 = vmatmul.mubr.bf16.gmra.mrb[0].mxu0 %v1039
    %v1268 = vpop.f32.mrb[0].mxu0
    %v1269 = vadd.f32 %v951, %v1268
    %v1270 = vpop.f32.mrb[0].mxu0
    %v1271 = vpop.f32.mrb[0].mxu0
    %v1272 = vadd.f32 %v951, %v1271
    %v1273 = vpop.f32.mrb[0].mxu0
    %1274 = vmatprep.mubr.bf16.mxu0 0
    %1275 = vmatmul.mubr.bf16.gmra.mrb[0].mxu0 %v1042
    %v1276 = vpop.f32.mrb[0].mxu0
    %v1277 = vadd.f32 %v951, %v1276
    %v1278 = vpop.f32.mrb[0].mxu0
    %v1279 = vpop.f32.mrb[0].mxu0
    %v1280 = vadd.f32 %v951, %v1279
    %v1281 = vpop.f32.mrb[0].mxu0
    %1282 = vmatprep.mubr.bf16.mxu0 0
    %1283 = vmatmul.mubr.bf16.gmra.mrb[0].mxu0 %v1045
    %v1284 = vpop.f32.mrb[0].mxu0
    %v1285 = vadd.f32 %v951, %v1284
    %v1286 = vpop.f32.mrb[0].mxu0
    %v1287 = vpop.f32.mrb[0].mxu0
    %v1288 = vadd.f32 %v951, %v1287
    %v1289 = vpop.f32.mrb[0].mxu0
    %1290 = vmatprep.mubr.bf16.mxu0 0
    %1291 = vmatmul.mubr.bf16.gmra.mrb[0].mxu0 %v1048
    %v1292 = vpop.f32.mrb[0].mxu0
    %v1293 = vadd.f32 %v951, %v1292
    %v1294 = vpop.f32.mrb[0].mxu0
    %v1295 = vpop.f32.mrb[0].mxu0
    %v1296 = vadd.f32 %v951, %v1295
    %v1297 = vpop.f32.mrb[0].mxu0
    %1298 = vmatprep.mubr.bf16.mxu0 0
    %1299 = vmatmul.mubr.bf16.gmra.mrb[0].mxu0 %v1051
    %v1300 = vpop.f32.mrb[0].mxu0
    %v1301 = vadd.f32 %v951, %v1300
    %v1302 = vpop.f32.mrb[0].mxu0
    %v1303 = vpop.f32.mrb[0].mxu0
    %v1304 = vadd.f32 %v951, %v1303
    %v1305 = vpop.f32.mrb[0].mxu0
    %1306 = vmatprep.mubr.bf16.mxu0 0
    %1307 = vmatmul.mubr.bf16.gmra.mrb[0].mxu0 %v1054
    %v1308 = vpop.f32.mrb[0].mxu0
    %v1309 = vadd.f32 %v951, %v1308
    %v1310 = vpop.f32.mrb[0].mxu0
    %v1311 = vpop.f32.mrb[0].mxu0
    %v1312 = vadd.f32 %v951, %v1311
    %v1313 = vpop.f32.mrb[0].mxu0
    %1314 = vmatprep.mubr.bf16.mxu0 0
    %1315 = vmatmul.mubr.bf16.gmra.mrb[0].mxu0 %v1057
    %v1316 = vpop.f32.mrb[0].mxu0
    %v1317 = vadd.f32 %v951, %v1316
    %v1318 = vpop.f32.mrb[0].mxu0
    %v1319 = vpop.f32.mrb[0].mxu0
    %v1320 = vadd.f32 %v951, %v1319
    %v1321 = vpop.f32.mrb[0].mxu0
    %1322 = vmatprep.mubr.bf16.mxu0 0
    %1323 = vmatmul.mubr.bf16.gmra.mrb[0].mxu0 %v1060
    %v1324 = vpop.f32.mrb[0].mxu0
    %v1325 = vadd.f32 %v951, %v1324
    %v1326 = vpop.f32.mrb[0].mxu0
    %v1327 = vpop.f32.mrb[0].mxu0
    %v1328 = vadd.f32 %v951, %v1327
    %v1329 = vpop.f32.mrb[0].mxu0
    %1330 = vmatprep.mubr.bf16.mxu0 0
    %1331 = vmatmul.mubr.bf16.gmra.mrb[0].mxu0 %v1063
    %v1332 = vpop.f32.mrb[0].mxu0
    %v1333 = vadd.f32 %v951, %v1332
    %v1334 = vpop.f32.mrb[0].mxu0
    %v1335 = vpop.f32.mrb[0].mxu0
    %v1336 = vadd.f32 %v951, %v1335
    %v1337 = vpop.f32.mrb[0].mxu0
    %1338 = vmatprep.mubr.bf16.mxu0 0
    %1339 = vmatmul.mubr.bf16.gmra.mrb[0].mxu0 %v1066
    %v1340 = vpop.f32.mrb[0].mxu0
    %v1341 = vadd.f32 %v951, %v1340
    %v1342 = vpop.f32.mrb[0].mxu0
    %v1343 = vpop.f32.mrb[0].mxu0
    %v1344 = vadd.f32 %v951, %v1343
    %v1345 = vpop.f32.mrb[0].mxu0
    %1346 = vmatprep.mubr.bf16.mxu0 0
    %1347 = vmatmul.mubr.bf16.gmra.mrb[0].mxu0 %v1069
    %v1348 = vpop.f32.mrb[0].mxu0
    %v1349 = vadd.f32 %v951, %v1348
    %v1350 = vpop.f32.mrb[0].mxu0
    %v1351 = vpop.f32.mrb[0].mxu0
    %v1352 = vadd.f32 %v951, %v1351
    %v1353 = vpop.f32.mrb[0].mxu0
    %1354 = vmatprep.mubr.bf16.mxu0 0
    %1355 = vmatmul.mubr.bf16.gmra.mrb[0].mxu0 %v1072
    %v1356 = vpop.f32.mrb[0].mxu0
    %v1357 = vadd.f32 %v951, %v1356
    %v1358 = vpop.f32.mrb[0].mxu0
    %v1359 = vpop.f32.mrb[0].mxu0
    %v1360 = vadd.f32 %v951, %v1359
    %v1361 = vpop.f32.mrb[0].mxu0
    %1362 = vdwg.mxu0
    %v1363 = vmax.f32 %v1109, 0.0
    %v1364 = vmax.f32 %v1112, 0.0
    %v1365 = vmax.f32 %v1117, 0.0
    %v1366 = vmax.f32 %v1120, 0.0
    %v1367 = vmax.f32 %v1125, 0.0
    %v1368 = vmax.f32 %v1128, 0.0
    %v1369 = vmax.f32 %v1133, 0.0
    %v1370 = vmax.f32 %v1136, 0.0
    %v1371 = vmax.f32 %v1141, 0.0
    %v1372 = vmax.f32 %v1144, 0.0
    %v1373 = vmax.f32 %v1149, 0.0
    %v1374 = vmax.f32 %v1152, 0.0
    %v1375 = vmax.f32 %v1157, 0.0
    %v1376 = vmax.f32 %v1160, 0.0
    %v1377 = vmax.f32 %v1165, 0.0
    %v1378 = vmax.f32 %v1168, 0.0
    %v1379 = vmax.f32 %v1173, 0.0
    %v1380 = vmax.f32 %v1176, 0.0
    %v1381 = vmax.f32 %v1181, 0.0
    %v1382 = vmax.f32 %v1184, 0.0
    %v1383 = vmax.f32 %v1189, 0.0
    %v1384 = vmax.f32 %v1192, 0.0
    %v1385 = vmax.f32 %v1197, 0.0
    %v1386 = vmax.f32 %v1200, 0.0
    %v1387 = vmax.f32 %v1205, 0.0
    %v1388 = vmax.f32 %v1208, 0.0
    %v1389 = vmax.f32 %v1213, 0.0
    %v1390 = vmax.f32 %v1216, 0.0
    %v1391 = vmax.f32 %v1221, 0.0
    %v1392 = vmax.f32 %v1224, 0.0
    %v1393 = vmax.f32 %v1229, 0.0
    %v1394 = vmax.f32 %v1232, 0.0
    %v1395 = vmax.f32 %v1237, 0.0
    %v1396 = vmax.f32 %v1240, 0.0
    %v1397 = vmax.f32 %v1245, 0.0
    %v1398 = vmax.f32 %v1248, 0.0
    %v1399 = vmax.f32 %v1253, 0.0
    %v1400 = vmax.f32 %v1256, 0.0
    %v1401 = vmax.f32 %v1261, 0.0
    %v1402 = vmax.f32 %v1264, 0.0
    %v1403 = vmax.f32 %v1269, 0.0
    %v1404 = vmax.f32 %v1272, 0.0
    %v1405 = vmax.f32 %v1277, 0.0
    %v1406 = vmax.f32 %v1280, 0.0
    %v1407 = vmax.f32 %v1285, 0.0
    %v1408 = vmax.f32 %v1288, 0.0
    %v1409 = vmax.f32 %v1293, 0.0
    %v1410 = vmax.f32 %v1296, 0.0
    %v1411 = vmax.f32 %v1301, 0.0
    %v1412 = vmax.f32 %v1304, 0.0
    %v1413 = vmax.f32 %v1309, 0.0
    %v1414 = vmax.f32 %v1312, 0.0
    %v1415 = vmax.f32 %v1317, 0.0
    %v1416 = vmax.f32 %v1320, 0.0
    %v1417 = vmax.f32 %v1325, 0.0
    %v1418 = vmax.f32 %v1328, 0.0
    %v1419 = vmax.f32 %v1333, 0.0
    %v1420 = vmax.f32 %v1336, 0.0
    %v1421 = vmax.f32 %v1341, 0.0
    %v1422 = vmax.f32 %v1344, 0.0
    %v1423 = vmax.f32 %v1349, 0.0
    %v1424 = vmax.f32 %v1352, 0.0
    %v1425 = vmax.f32 %v1357, 0.0
    %v1426 = vmax.f32 %v1360, 0.0
    %v1427 = vpack.c.bf16 %v1364, %v1363
    %v1428 = vpack.c.bf16 %v1366, %v1365
    %v1429 = vpack.c.bf16 %v1368, %v1367
    %v1430 = vpack.c.bf16 %v1370, %v1369
    %v1431 = vpack.c.bf16 %v1372, %v1371
    %v1432 = vpack.c.bf16 %v1374, %v1373
    %v1433 = vpack.c.bf16 %v1376, %v1375
    %v1434 = vpack.c.bf16 %v1378, %v1377
    %v1435 = vpack.c.bf16 %v1380, %v1379
    %v1436 = vpack.c.bf16 %v1382, %v1381
    %v1437 = vpack.c.bf16 %v1384, %v1383
    %v1438 = vpack.c.bf16 %v1386, %v1385
    %v1439 = vpack.c.bf16 %v1388, %v1387
    %v1440 = vpack.c.bf16 %v1390, %v1389
    %v1441 = vpack.c.bf16 %v1392, %v1391
    %v1442 = vpack.c.bf16 %v1394, %v1393
    %v1443 = vpack.c.bf16 %v1396, %v1395
    %v1444 = vpack.c.bf16 %v1398, %v1397
    %v1445 = vpack.c.bf16 %v1400, %v1399
    %v1446 = vpack.c.bf16 %v1402, %v1401
    %v1447 = vpack.c.bf16 %v1404, %v1403
    %v1448 = vpack.c.bf16 %v1406, %v1405
    %v1449 = vpack.c.bf16 %v1408, %v1407
    %v1450 = vpack.c.bf16 %v1410, %v1409
    %v1451 = vpack.c.bf16 %v1412, %v1411
    %v1452 = vpack.c.bf16 %v1414, %v1413
    %v1453 = vpack.c.bf16 %v1416, %v1415
    %v1454 = vpack.c.bf16 %v1418, %v1417
    %v1455 = vpack.c.bf16 %v1420, %v1419
    %v1456 = vpack.c.bf16 %v1422, %v1421
    %v1457 = vpack.c.bf16 %v1424, %v1423
    %v1458 = vpack.c.bf16 %v1426, %v1425
    %v1459 = vld [vmem:[%s5] sm:$0xff]
    %v1460 = vld [vmem:[%s5 + $0x20] sm:$0xff]
    %v1461 = vld [vmem:[%s5 + $0x40] sm:$0xff]
    %v1462 = vld [vmem:[%s5 + $0x60] sm:$0xff]
    %v1463 = vld [vmem:[%s5 + $0x80] sm:$0xff]
    %v1464 = vld [vmem:[%s5 + $0xa0] sm:$0xff]
    %v1465 = vld [vmem:[%s5 + $0xc0] sm:$0xff]
    %v1466 = vld [vmem:[%s5 + $0xe0] sm:$0xff]
    %v1467 = vld [vmem:[%s5 + $0x100] sm:$0xff]
    %v1468 = vld [vmem:[%s5 + $0x120] sm:$0xff]
    %v1469 = vld [vmem:[%s5 + $0x140] sm:$0xff]
    %v1470 = vld [vmem:[%s5 + $0x160] sm:$0xff]
    %v1471 = vld [vmem:[%s5 + $0x180] sm:$0xff]
    %v1472 = vld [vmem:[%s5 + $0x1a0] sm:$0xff]
    %v1473 = vld [vmem:[%s5 + $0x1c0] sm:$0xff]
    %v1474 = vld [vmem:[%s5 + $0x1e0] sm:$0xff]
    %v1491 = vunpack.c.l.b16 %v1459
    %v1492 = vunpack.c.h.b16 %v1459
    %v1493 = vunpack.c.l.b16 %v1460
    %v1494 = vunpack.c.h.b16 %v1460
    %v1495 = vunpack.c.l.b16 %v1461
    %v1496 = vunpack.c.h.b16 %v1461
    %v1497 = vunpack.c.l.b16 %v1462
    %v1498 = vunpack.c.h.b16 %v1462
    %v1499 = vunpack.c.l.b16 %v1463
    %v1500 = vunpack.c.h.b16 %v1463
    %v1501 = vunpack.c.l.b16 %v1464
    %v1502 = vunpack.c.h.b16 %v1464
    %v1503 = vunpack.c.l.b16 %v1465
    %v1504 = vunpack.c.h.b16 %v1465
    %v1505 = vunpack.c.l.b16 %v1466
    %v1506 = vunpack.c.h.b16 %v1466
    %v1507 = vunpack.c.l.b16 %v1467
    %v1508 = vunpack.c.h.b16 %v1467
    %v1509 = vunpack.c.l.b16 %v1468
    %v1510 = vunpack.c.h.b16 %v1468
    %v1511 = vunpack.c.l.b16 %v1469
    %v1512 = vunpack.c.h.b16 %v1469
    %v1513 = vunpack.c.l.b16 %v1470
    %v1514 = vunpack.c.h.b16 %v1470
    %v1515 = vunpack.c.l.b16 %v1471
    %v1516 = vunpack.c.h.b16 %v1471
    %v1517 = vunpack.c.l.b16 %v1472
    %v1518 = vunpack.c.h.b16 %v1472
    %v1519 = vunpack.c.l.b16 %v1473
    %v1520 = vunpack.c.h.b16 %v1473
    %v1521 = vunpack.c.l.b16 %v1474
    %v1522 = vunpack.c.h.b16 %v1474
    %v1523 = vpack.c.b16 %v1493, %v1491
    %v1524 = vpack.c.b16 %v1494, %v1492
    %v1525 = vpack.c.b16 %v1497, %v1495
    %v1526 = vpack.c.b16 %v1498, %v1496
    %v1527 = vpack.c.b16 %v1501, %v1499
    %v1528 = vpack.c.b16 %v1502, %v1500
    %v1529 = vpack.c.b16 %v1505, %v1503
    %v1530 = vpack.c.b16 %v1506, %v1504
    %v1531 = vpack.c.b16 %v1509, %v1507
    %v1532 = vpack.c.b16 %v1510, %v1508
    %v1533 = vpack.c.b16 %v1513, %v1511
    %v1534 = vpack.c.b16 %v1514, %v1512
    %v1535 = vpack.c.b16 %v1517, %v1515
    %v1536 = vpack.c.b16 %v1518, %v1516
    %v1537 = vpack.c.b16 %v1521, %v1519
    %v1538 = vpack.c.b16 %v1522, %v1520
    %1555 = vmatprep.subr.bf16.mxu0 %v1524
    %1556 = vmatpush1.bf16.msra.mxu0 %v1523
    %1557 = vmatprep.subr.bf16.mxu0 %v1526
    %1558 = vmatpush1.bf16.msra.mxu0 %v1525
    %1559 = vmatprep.subr.bf16.mxu0 %v1528
    %1560 = vmatpush1.bf16.msra.mxu0 %v1527
    %1561 = vmatprep.subr.bf16.mxu0 %v1530
    %1562 = vmatpush1.bf16.msra.mxu0 %v1529
    %1563 = vmatprep.subr.bf16.mxu0 %v1532
    %1564 = vmatpush1.bf16.msra.mxu0 %v1531
    %1565 = vmatprep.subr.bf16.mxu0 %v1534
    %1566 = vmatpush1.bf16.msra.mxu0 %v1533
    %1567 = vmatprep.subr.bf16.mxu0 %v1536
    %1568 = vmatpush1.bf16.msra.mxu0 %v1535
    %1569 = vmatprep.subr.bf16.mxu0 %v1538
    %1570 = vmatpush1.bf16.msra.mxu0 %v1537
    %1571 = vmatprep.subr.bf16.mxu0 0
    %1572 = vmatpush1.bf16.msra.mxu0 0
    %1573 = vmatprep.subr.bf16.mxu0 0
    %1574 = vmatpush1.bf16.msra.mxu0 0
    %1575 = vmatprep.subr.bf16.mxu0 0
    %1576 = vmatpush1.bf16.msra.mxu0 0
    %1577 = vmatprep.subr.bf16.mxu0 0
    %1578 = vmatpush1.bf16.msra.mxu0 0
    %1579 = vmatprep.subr.bf16.mxu0 0
    %1580 = vmatpush1.bf16.msra.mxu0 0
    %1581 = vmatprep.subr.bf16.mxu0 0
    %1582 = vmatpush1.bf16.msra.mxu0 0
    %1583 = vmatprep.subr.bf16.mxu0 0
    %1584 = vmatpush1.bf16.msra.mxu0 0
    %1585 = vmatprep.subr.bf16.mxu0 0
    %1586 = vmatpush1.bf16.msra.mxu0 0
    %1587 = vmatprep.mubr.bf16.mxu0 0
    %1588 = vmatmul.mubr.bf16.gmra.mrb[0].mxu0 %v1427
    %v1589 = vpop.f32.mrb[0].mxu0
    %v1590 = vadd.f32 0.0, %v1589
    %v1591 = vpop.f32.mrb[0].mxu0
    %v1592 = vadd.f32 0.0, %v1591
    %v1593 = vpop.f32.mrb[0].mxu0
    %v1594 = vadd.f32 0.0, %v1593
    %v1595 = vpop.f32.mrb[0].mxu0
    %v1596 = vadd.f32 0.0, %v1595
    %1597 = vmatprep.mubr.bf16.mxu0 0
    %1598 = vmatmul.mubr.bf16.gmra.mrb[0].mxu0 %v1428
    %v1599 = vpop.f32.mrb[0].mxu0
    %v1600 = vadd.f32 0.0, %v1599
    %v1601 = vpop.f32.mrb[0].mxu0
    %v1602 = vadd.f32 0.0, %v1601
    %v1603 = vpop.f32.mrb[0].mxu0
    %v1604 = vadd.f32 0.0, %v1603
    %v1605 = vpop.f32.mrb[0].mxu0
    %v1606 = vadd.f32 0.0, %v1605
    %1607 = vmatprep.mubr.bf16.mxu0 0
    %1608 = vmatmul.mubr.bf16.gmra.mrb[0].mxu0 %v1429
    %v1609 = vpop.f32.mrb[0].mxu0
    %v1610 = vadd.f32 0.0, %v1609
    %v1611 = vpop.f32.mrb[0].mxu0
    %v1612 = vadd.f32 0.0, %v1611
    %v1613 = vpop.f32.mrb[0].mxu0
    %v1614 = vadd.f32 0.0, %v1613
    %v1615 = vpop.f32.mrb[0].mxu0
    %v1616 = vadd.f32 0.0, %v1615
    %1617 = vmatprep.mubr.bf16.mxu0 0
    %1618 = vmatmul.mubr.bf16.gmra.mrb[0].mxu0 %v1430
    %v1619 = vpop.f32.mrb[0].mxu0
    %v1620 = vadd.f32 0.0, %v1619
    %v1621 = vpop.f32.mrb[0].mxu0
    %v1622 = vadd.f32 0.0, %v1621
    %v1623 = vpop.f32.mrb[0].mxu0
    %v1624 = vadd.f32 0.0, %v1623
    %v1625 = vpop.f32.mrb[0].mxu0
    %v1626 = vadd.f32 0.0, %v1625
    %1627 = vmatprep.mubr.bf16.mxu0 0
    %1628 = vmatmul.mubr.bf16.gmra.mrb[0].mxu0 %v1431
    %v1629 = vpop.f32.mrb[0].mxu0
    %v1630 = vadd.f32 0.0, %v1629
    %v1631 = vpop.f32.mrb[0].mxu0
    %v1632 = vadd.f32 0.0, %v1631
    %v1633 = vpop.f32.mrb[0].mxu0
    %v1634 = vadd.f32 0.0, %v1633
    %v1635 = vpop.f32.mrb[0].mxu0
    %v1636 = vadd.f32 0.0, %v1635
    %1637 = vmatprep.mubr.bf16.mxu0 0
    %1638 = vmatmul.mubr.bf16.gmra.mrb[0].mxu0 %v1432
    %v1639 = vpop.f32.mrb[0].mxu0
    %v1640 = vadd.f32 0.0, %v1639
    %v1641 = vpop.f32.mrb[0].mxu0
    %v1642 = vadd.f32 0.0, %v1641
    %v1643 = vpop.f32.mrb[0].mxu0
    %v1644 = vadd.f32 0.0, %v1643
    %v1645 = vpop.f32.mrb[0].mxu0
    %v1646 = vadd.f32 0.0, %v1645
    %1647 = vmatprep.mubr.bf16.mxu0 0
    %1648 = vmatmul.mubr.bf16.gmra.mrb[0].mxu0 %v1433
    %v1649 = vpop.f32.mrb[0].mxu0
    %v1650 = vadd.f32 0.0, %v1649
    %v1651 = vpop.f32.mrb[0].mxu0
    %v1652 = vadd.f32 0.0, %v1651
    %v1653 = vpop.f32.mrb[0].mxu0
    %v1654 = vadd.f32 0.0, %v1653
    %v1655 = vpop.f32.mrb[0].mxu0
    %v1656 = vadd.f32 0.0, %v1655
    %1657 = vmatprep.mubr.bf16.mxu0 0
    %1658 = vmatmul.mubr.bf16.gmra.mrb[0].mxu0 %v1434
    %v1659 = vpop.f32.mrb[0].mxu0
    %v1660 = vadd.f32 0.0, %v1659
    %v1661 = vpop.f32.mrb[0].mxu0
    %v1662 = vadd.f32 0.0, %v1661
    %v1663 = vpop.f32.mrb[0].mxu0
    %v1664 = vadd.f32 0.0, %v1663
    %v1665 = vpop.f32.mrb[0].mxu0
    %v1666 = vadd.f32 0.0, %v1665
    %1667 = vmatprep.mubr.bf16.mxu0 0
    %1668 = vmatmul.mubr.bf16.gmra.mrb[0].mxu0 %v1435
    %v1669 = vpop.f32.mrb[0].mxu0
    %v1670 = vadd.f32 0.0, %v1669
    %v1671 = vpop.f32.mrb[0].mxu0
    %v1672 = vadd.f32 0.0, %v1671
    %v1673 = vpop.f32.mrb[0].mxu0
    %v1674 = vadd.f32 0.0, %v1673
    %v1675 = vpop.f32.mrb[0].mxu0
    %v1676 = vadd.f32 0.0, %v1675
    %1677 = vmatprep.mubr.bf16.mxu0 0
    %1678 = vmatmul.mubr.bf16.gmra.mrb[0].mxu0 %v1436
    %v1679 = vpop.f32.mrb[0].mxu0
    %v1680 = vadd.f32 0.0, %v1679
    %v1681 = vpop.f32.mrb[0].mxu0
    %v1682 = vadd.f32 0.0, %v1681
    %v1683 = vpop.f32.mrb[0].mxu0
    %v1684 = vadd.f32 0.0, %v1683
    %v1685 = vpop.f32.mrb[0].mxu0
    %v1686 = vadd.f32 0.0, %v1685
    %1687 = vmatprep.mubr.bf16.mxu0 0
    %1688 = vmatmul.mubr.bf16.gmra.mrb[0].mxu0 %v1437
    %v1689 = vpop.f32.mrb[0].mxu0
    %v1690 = vadd.f32 0.0, %v1689
    %v1691 = vpop.f32.mrb[0].mxu0
    %v1692 = vadd.f32 0.0, %v1691
    %v1693 = vpop.f32.mrb[0].mxu0
    %v1694 = vadd.f32 0.0, %v1693
    %v1695 = vpop.f32.mrb[0].mxu0
    %v1696 = vadd.f32 0.0, %v1695
    %1697 = vmatprep.mubr.bf16.mxu0 0
    %1698 = vmatmul.mubr.bf16.gmra.mrb[0].mxu0 %v1438
    %v1699 = vpop.f32.mrb[0].mxu0
    %v1700 = vadd.f32 0.0, %v1699
    %v1701 = vpop.f32.mrb[0].mxu0
    %v1702 = vadd.f32 0.0, %v1701
    %v1703 = vpop.f32.mrb[0].mxu0
    %v1704 = vadd.f32 0.0, %v1703
    %v1705 = vpop.f32.mrb[0].mxu0
    %v1706 = vadd.f32 0.0, %v1705
    %1707 = vmatprep.mubr.bf16.mxu0 0
    %1708 = vmatmul.mubr.bf16.gmra.mrb[0].mxu0 %v1439
    %v1709 = vpop.f32.mrb[0].mxu0
    %v1710 = vadd.f32 0.0, %v1709
    %v1711 = vpop.f32.mrb[0].mxu0
    %v1712 = vadd.f32 0.0, %v1711
    %v1713 = vpop.f32.mrb[0].mxu0
    %v1714 = vadd.f32 0.0, %v1713
    %v1715 = vpop.f32.mrb[0].mxu0
    %v1716 = vadd.f32 0.0, %v1715
    %1717 = vmatprep.mubr.bf16.mxu0 0
    %1718 = vmatmul.mubr.bf16.gmra.mrb[0].mxu0 %v1440
    %v1719 = vpop.f32.mrb[0].mxu0
    %v1720 = vadd.f32 0.0, %v1719
    %v1721 = vpop.f32.mrb[0].mxu0
    %v1722 = vadd.f32 0.0, %v1721
    %v1723 = vpop.f32.mrb[0].mxu0
    %v1724 = vadd.f32 0.0, %v1723
    %v1725 = vpop.f32.mrb[0].mxu0
    %v1726 = vadd.f32 0.0, %v1725
    %1727 = vmatprep.mubr.bf16.mxu0 0
    %1728 = vmatmul.mubr.bf16.gmra.mrb[0].mxu0 %v1441
    %v1729 = vpop.f32.mrb[0].mxu0
    %v1730 = vadd.f32 0.0, %v1729
    %v1731 = vpop.f32.mrb[0].mxu0
    %v1732 = vadd.f32 0.0, %v1731
    %v1733 = vpop.f32.mrb[0].mxu0
    %v1734 = vadd.f32 0.0, %v1733
    %v1735 = vpop.f32.mrb[0].mxu0
    %v1736 = vadd.f32 0.0, %v1735
    %1737 = vmatprep.mubr.bf16.mxu0 0
    %1738 = vmatmul.mubr.bf16.gmra.mrb[0].mxu0 %v1442
    %v1739 = vpop.f32.mrb[0].mxu0
    %v1740 = vadd.f32 0.0, %v1739
    %v1741 = vpop.f32.mrb[0].mxu0
    %v1742 = vadd.f32 0.0, %v1741
    %v1743 = vpop.f32.mrb[0].mxu0
    %v1744 = vadd.f32 0.0, %v1743
    %v1745 = vpop.f32.mrb[0].mxu0
    %v1746 = vadd.f32 0.0, %v1745
    %1747 = vmatprep.mubr.bf16.mxu0 0
    %1748 = vmatmul.mubr.bf16.gmra.mrb[0].mxu0 %v1443
    %v1749 = vpop.f32.mrb[0].mxu0
    %v1750 = vadd.f32 0.0, %v1749
    %v1751 = vpop.f32.mrb[0].mxu0
    %v1752 = vadd.f32 0.0, %v1751
    %v1753 = vpop.f32.mrb[0].mxu0
    %v1754 = vadd.f32 0.0, %v1753
    %v1755 = vpop.f32.mrb[0].mxu0
    %v1756 = vadd.f32 0.0, %v1755
    %1757 = vmatprep.mubr.bf16.mxu0 0
    %1758 = vmatmul.mubr.bf16.gmra.mrb[0].mxu0 %v1444
    %v1759 = vpop.f32.mrb[0].mxu0
    %v1760 = vadd.f32 0.0, %v1759
    %v1761 = vpop.f32.mrb[0].mxu0
    %v1762 = vadd.f32 0.0, %v1761
    %v1763 = vpop.f32.mrb[0].mxu0
    %v1764 = vadd.f32 0.0, %v1763
    %v1765 = vpop.f32.mrb[0].mxu0
    %v1766 = vadd.f32 0.0, %v1765
    %1767 = vmatprep.mubr.bf16.mxu0 0
    %1768 = vmatmul.mubr.bf16.gmra.mrb[0].mxu0 %v1445
    %v1769 = vpop.f32.mrb[0].mxu0
    %v1770 = vadd.f32 0.0, %v1769
    %v1771 = vpop.f32.mrb[0].mxu0
    %v1772 = vadd.f32 0.0, %v1771
    %v1773 = vpop.f32.mrb[0].mxu0
    %v1774 = vadd.f32 0.0, %v1773
    %v1775 = vpop.f32.mrb[0].mxu0
    %v1776 = vadd.f32 0.0, %v1775
    %1777 = vmatprep.mubr.bf16.mxu0 0
    %1778 = vmatmul.mubr.bf16.gmra.mrb[0].mxu0 %v1446
    %v1779 = vpop.f32.mrb[0].mxu0
    %v1780 = vadd.f32 0.0, %v1779
    %v1781 = vpop.f32.mrb[0].mxu0
    %v1782 = vadd.f32 0.0, %v1781
    %v1783 = vpop.f32.mrb[0].mxu0
    %v1784 = vadd.f32 0.0, %v1783
    %v1785 = vpop.f32.mrb[0].mxu0
    %v1786 = vadd.f32 0.0, %v1785
    %1787 = vmatprep.mubr.bf16.mxu0 0
    %1788 = vmatmul.mubr.bf16.gmra.mrb[0].mxu0 %v1447
    %v1789 = vpop.f32.mrb[0].mxu0
    %v1790 = vadd.f32 0.0, %v1789
    %v1791 = vpop.f32.mrb[0].mxu0
    %v1792 = vadd.f32 0.0, %v1791
    %v1793 = vpop.f32.mrb[0].mxu0
    %v1794 = vadd.f32 0.0, %v1793
    %v1795 = vpop.f32.mrb[0].mxu0
    %v1796 = vadd.f32 0.0, %v1795
    %1797 = vmatprep.mubr.bf16.mxu0 0
    %1798 = vmatmul.mubr.bf16.gmra.mrb[0].mxu0 %v1448
    %v1799 = vpop.f32.mrb[0].mxu0
    %v1800 = vadd.f32 0.0, %v1799
    %v1801 = vpop.f32.mrb[0].mxu0
    %v1802 = vadd.f32 0.0, %v1801
    %v1803 = vpop.f32.mrb[0].mxu0
    %v1804 = vadd.f32 0.0, %v1803
    %v1805 = vpop.f32.mrb[0].mxu0
    %v1806 = vadd.f32 0.0, %v1805
    %1807 = vmatprep.mubr.bf16.mxu0 0
    %1808 = vmatmul.mubr.bf16.gmra.mrb[0].mxu0 %v1449
    %v1809 = vpop.f32.mrb[0].mxu0
    %v1810 = vadd.f32 0.0, %v1809
    %v1811 = vpop.f32.mrb[0].mxu0
    %v1812 = vadd.f32 0.0, %v1811
    %v1813 = vpop.f32.mrb[0].mxu0
    %v1814 = vadd.f32 0.0, %v1813
    %v1815 = vpop.f32.mrb[0].mxu0
    %v1816 = vadd.f32 0.0, %v1815
    %1817 = vmatprep.mubr.bf16.mxu0 0
    %1818 = vmatmul.mubr.bf16.gmra.mrb[0].mxu0 %v1450
    %v1819 = vpop.f32.mrb[0].mxu0
    %v1820 = vadd.f32 0.0, %v1819
    %v1821 = vpop.f32.mrb[0].mxu0
    %v1822 = vadd.f32 0.0, %v1821
    %v1823 = vpop.f32.mrb[0].mxu0
    %v1824 = vadd.f32 0.0, %v1823
    %v1825 = vpop.f32.mrb[0].mxu0
    %v1826 = vadd.f32 0.0, %v1825
    %1827 = vmatprep.mubr.bf16.mxu0 0
    %1828 = vmatmul.mubr.bf16.gmra.mrb[0].mxu0 %v1451
    %v1829 = vpop.f32.mrb[0].mxu0
    %v1830 = vadd.f32 0.0, %v1829
    %v1831 = vpop.f32.mrb[0].mxu0
    %v1832 = vadd.f32 0.0, %v1831
    %v1833 = vpop.f32.mrb[0].mxu0
    %v1834 = vadd.f32 0.0, %v1833
    %v1835 = vpop.f32.mrb[0].mxu0
    %v1836 = vadd.f32 0.0, %v1835
    %1837 = vmatprep.mubr.bf16.mxu0 0
    %1838 = vmatmul.mubr.bf16.gmra.mrb[0].mxu0 %v1452
    %v1839 = vpop.f32.mrb[0].mxu0
    %v1840 = vadd.f32 0.0, %v1839
    %v1841 = vpop.f32.mrb[0].mxu0
    %v1842 = vadd.f32 0.0, %v1841
    %v1843 = vpop.f32.mrb[0].mxu0
    %v1844 = vadd.f32 0.0, %v1843
    %v1845 = vpop.f32.mrb[0].mxu0
    %v1846 = vadd.f32 0.0, %v1845
    %1847 = vmatprep.mubr.bf16.mxu0 0
    %1848 = vmatmul.mubr.bf16.gmra.mrb[0].mxu0 %v1453
    %v1849 = vpop.f32.mrb[0].mxu0
    %v1850 = vadd.f32 0.0, %v1849
    %v1851 = vpop.f32.mrb[0].mxu0
    %v1852 = vadd.f32 0.0, %v1851
    %v1853 = vpop.f32.mrb[0].mxu0
    %v1854 = vadd.f32 0.0, %v1853
    %v1855 = vpop.f32.mrb[0].mxu0
    %v1856 = vadd.f32 0.0, %v1855
    %1857 = vmatprep.mubr.bf16.mxu0 0
    %1858 = vmatmul.mubr.bf16.gmra.mrb[0].mxu0 %v1454
    %v1859 = vpop.f32.mrb[0].mxu0
    %v1860 = vadd.f32 0.0, %v1859
    %v1861 = vpop.f32.mrb[0].mxu0
    %v1862 = vadd.f32 0.0, %v1861
    %v1863 = vpop.f32.mrb[0].mxu0
    %v1864 = vadd.f32 0.0, %v1863
    %v1865 = vpop.f32.mrb[0].mxu0
    %v1866 = vadd.f32 0.0, %v1865
    %1867 = vmatprep.mubr.bf16.mxu0 0
    %1868 = vmatmul.mubr.bf16.gmra.mrb[0].mxu0 %v1455
    %v1869 = vpop.f32.mrb[0].mxu0
    %v1870 = vadd.f32 0.0, %v1869
    %v1871 = vpop.f32.mrb[0].mxu0
    %v1872 = vadd.f32 0.0, %v1871
    %v1873 = vpop.f32.mrb[0].mxu0
    %v1874 = vadd.f32 0.0, %v1873
    %v1875 = vpop.f32.mrb[0].mxu0
    %v1876 = vadd.f32 0.0, %v1875
    %1877 = vmatprep.mubr.bf16.mxu0 0
    %1878 = vmatmul.mubr.bf16.gmra.mrb[0].mxu0 %v1456
    %v1879 = vpop.f32.mrb[0].mxu0
    %v1880 = vadd.f32 0.0, %v1879
    %v1881 = vpop.f32.mrb[0].mxu0
    %v1882 = vadd.f32 0.0, %v1881
    %v1883 = vpop.f32.mrb[0].mxu0
    %v1884 = vadd.f32 0.0, %v1883
    %v1885 = vpop.f32.mrb[0].mxu0
    %v1886 = vadd.f32 0.0, %v1885
    %1887 = vmatprep.mubr.bf16.mxu0 0
    %1888 = vmatmul.mubr.bf16.gmra.mrb[0].mxu0 %v1457
    %v1889 = vpop.f32.mrb[0].mxu0
    %v1890 = vadd.f32 0.0, %v1889
    %v1891 = vpop.f32.mrb[0].mxu0
    %v1892 = vadd.f32 0.0, %v1891
    %v1893 = vpop.f32.mrb[0].mxu0
    %v1894 = vadd.f32 0.0, %v1893
    %v1895 = vpop.f32.mrb[0].mxu0
    %v1896 = vadd.f32 0.0, %v1895
    %1897 = vmatprep.mubr.bf16.mxu0 0
    %1898 = vmatmul.mubr.bf16.gmra.mrb[0].mxu0 %v1458
    %v1899 = vpop.f32.mrb[0].mxu0
    %v1900 = vadd.f32 0.0, %v1899
    %v1901 = vpop.f32.mrb[0].mxu0
    %v1902 = vadd.f32 0.0, %v1901
    %v1903 = vpop.f32.mrb[0].mxu0
    %v1904 = vadd.f32 0.0, %v1903
    %v1905 = vpop.f32.mrb[0].mxu0
    %v1906 = vadd.f32 0.0, %v1905
    %1907 = vdwg.mxu0
    %v1908 = vmax.f32 %v1590, %v1600
    %v1909 = vmax.f32 %v1594, %v1604
    %v1910 = vmax.f32 %v1908, %v1610
    %v1911 = vmax.f32 %v1909, %v1614
    %v1912 = vmax.f32 %v1910, %v1620
    %v1913 = vmax.f32 %v1911, %v1624
    %v1914 = vmax.f32 %v1912, %v1630
    %v1915 = vmax.f32 %v1913, %v1634
    %v1916 = vmax.f32 %v1914, %v1640
    %v1917 = vmax.f32 %v1915, %v1644
    %v1918 = vmax.f32 %v1916, %v1650
    %v1919 = vmax.f32 %v1917, %v1654
    %v1920 = vmax.f32 %v1918, %v1660
    %v1921 = vmax.f32 %v1919, %v1664
    %v1922 = vmax.f32 %v1920, %v1670
    %v1923 = vmax.f32 %v1921, %v1674
    %v1924 = vmax.f32 %v1922, %v1680
    %v1925 = vmax.f32 %v1923, %v1684
    %v1926 = vmax.f32 %v1924, %v1690
    %v1927 = vmax.f32 %v1925, %v1694
    %v1928 = vmax.f32 %v1926, %v1700
    %v1929 = vmax.f32 %v1927, %v1704
    %v1930 = vmax.f32 %v1928, %v1710
    %v1931 = vmax.f32 %v1929, %v1714
    %v1932 = vmax.f32 %v1930, %v1720
    %v1933 = vmax.f32 %v1931, %v1724
    %v1934 = vmax.f32 %v1932, %v1730
    %v1935 = vmax.f32 %v1933, %v1734
    %v1936 = vmax.f32 %v1934, %v1740
    %v1937 = vmax.f32 %v1935, %v1744
    %v1938 = vmax.f32 %v1936, %v1937
    %v1939 = vmax.f32 %v1592, %v1602
    %v1940 = vmax.f32 %v1596, %v1606
    %v1941 = vmax.f32 %v1939, %v1612
    %v1942 = vmax.f32 %v1940, %v1616
    %v1943 = vmax.f32 %v1941, %v1622
    %v1944 = vmax.f32 %v1942, %v1626
    %v1945 = vmax.f32 %v1943, %v1632
    %v1946 = vmax.f32 %v1944, %v1636
    %v1947 = vmax.f32 %v1945, %v1642
    %v1948 = vmax.f32 %v1946, %v1646
    %v1949 = vmax.f32 %v1947, %v1652
    %v1950 = vmax.f32 %v1948, %v1656
    %v1951 = vmax.f32 %v1949, %v1662
    %v1952 = vmax.f32 %v1950, %v1666
    %v1953 = vmax.f32 %v1951, %v1672
    %v1954 = vmax.f32 %v1952, %v1676
    %v1955 = vmax.f32 %v1953, %v1682
    %v1956 = vmax.f32 %v1954, %v1686
    %v1957 = vmax.f32 %v1955, %v1692
    %v1958 = vmax.f32 %v1956, %v1696
    %v1959 = vmax.f32 %v1957, %v1702
    %v1960 = vmax.f32 %v1958, %v1706
    %v1961 = vmax.f32 %v1959, %v1712
    %v1962 = vmax.f32 %v1960, %v1716
    %v1963 = vmax.f32 %v1961, %v1722
    %v1964 = vmax.f32 %v1962, %v1726
    %v1965 = vmax.f32 %v1963, %v1732
    %v1966 = vmax.f32 %v1964, %v1736
    %v1967 = vmax.f32 %v1965, %v1742
    %v1968 = vmax.f32 %v1966, %v1746
    %v1969 = vmax.f32 %v1967, %v1968
    %v1970 = vld [vmem:[#allocation2] sm:$0xff]
    %v1971 = vld [vmem:[#allocation2 + $0x8] sm:$0xff]
    %v1972 = vmax.f32 %v1970, %v1938
    %v1973 = vmax.f32 %v1971, %v1969
    %1974 = vst [vmem:[#allocation2] sm:$0xff] %v1972
    %1975 = vst [vmem:[#allocation2 + $0x8] sm:$0xff] %v1973
    %v1976 = vmax.f32 %v1750, %v1760
    %v1977 = vmax.f32 %v1754, %v1764
    %v1978 = vmax.f32 %v1976, %v1770
    %v1979 = vmax.f32 %v1977, %v1774
    %v1980 = vmax.f32 %v1978, %v1780
    %v1981 = vmax.f32 %v1979, %v1784
    %v1982 = vmax.f32 %v1980, %v1790
    %v1983 = vmax.f32 %v1981, %v1794
    %v1984 = vmax.f32 %v1982, %v1800
    %v1985 = vmax.f32 %v1983, %v1804
    %v1986 = vmax.f32 %v1984, %v1810
    %v1987 = vmax.f32 %v1985, %v1814
    %v1988 = vmax.f32 %v1986, %v1820
    %v1989 = vmax.f32 %v1987, %v1824
    %v1990 = vmax.f32 %v1988, %v1830
    %v1991 = vmax.f32 %v1989, %v1834
    %v1992 = vmax.f32 %v1990, %v1840
    %v1993 = vmax.f32 %v1991, %v1844
    %v1994 = vmax.f32 %v1992, %v1850
    %v1995 = vmax.f32 %v1993, %v1854
    %v1996 = vmax.f32 %v1994, %v1860
    %v1997 = vmax.f32 %v1995, %v1864
    %v1998 = vmax.f32 %v1996, %v1870
    %v1999 = vmax.f32 %v1997, %v1874
    %v2000 = vmax.f32 %v1998, %v1880
    %v2001 = vmax.f32 %v1999, %v1884
    %v2002 = vmax.f32 %v2000, %v1890
    %v2003 = vmax.f32 %v2001, %v1894
    %v2004 = vmax.f32 %v2002, %v1900
    %v2005 = vmax.f32 %v2003, %v1904
    %v2006 = vmax.f32 %v2004, %v2005
    %v2007 = vmax.f32 %v1752, %v1762
    %v2008 = vmax.f32 %v1756, %v1766
    %v2009 = vmax.f32 %v2007, %v1772
    %v2010 = vmax.f32 %v2008, %v1776
    %v2011 = vmax.f32 %v2009, %v1782
    %v2012 = vmax.f32 %v2010, %v1786
    %v2013 = vmax.f32 %v2011, %v1792
    %v2014 = vmax.f32 %v2012, %v1796
    %v2015 = vmax.f32 %v2013, %v1802
    %v2016 = vmax.f32 %v2014, %v1806
    %v2017 = vmax.f32 %v2015, %v1812
    %v2018 = vmax.f32 %v2016, %v1816
    %v2019 = vmax.f32 %v2017, %v1822
    %v2020 = vmax.f32 %v2018, %v1826
    %v2021 = vmax.f32 %v2019, %v1832
    %v2022 = vmax.f32 %v2020, %v1836
    %v2023 = vmax.f32 %v2021, %v1842
    %v2024 = vmax.f32 %v2022, %v1846
    %v2025 = vmax.f32 %v2023, %v1852
    %v2026 = vmax.f32 %v2024, %v1856
    %v2027 = vmax.f32 %v2025, %v1862
    %v2028 = vmax.f32 %v2026, %v1866
    %v2029 = vmax.f32 %v2027, %v1872
    %v2030 = vmax.f32 %v2028, %v1876
    %v2031 = vmax.f32 %v2029, %v1882
    %v2032 = vmax.f32 %v2030, %v1886
    %v2033 = vmax.f32 %v2031, %v1892
    %v2034 = vmax.f32 %v2032, %v1896
    %v2035 = vmax.f32 %v2033, %v1902
    %v2036 = vmax.f32 %v2034, %v1906
    %v2037 = vmax.f32 %v2035, %v2036
    %v2038 = vld [vmem:[#allocation2 + $0x40] sm:$0xff]
    %v2039 = vld [vmem:[#allocation2 + $0x48] sm:$0xff]
    %v2040 = vmax.f32 %v2038, %v2006
    %v2041 = vmax.f32 %v2039, %v2037
    %2042 = vst [vmem:[#allocation2 + $0x40] sm:$0xff] %v2040
    %2043 = vst [vmem:[#allocation2 + $0x48] sm:$0xff] %v2041
    %v2044 = vld [vmem:[%s5 + $0x8] sm:$0xff]
    %v2045 = vld [vmem:[%s5 + $0x28] sm:$0xff]
    %v2046 = vld [vmem:[%s5 + $0x48] sm:$0xff]
    %v2047 = vld [vmem:[%s5 + $0x68] sm:$0xff]
    %v2048 = vld [vmem:[%s5 + $0x88] sm:$0xff]
    %v2049 = vld [vmem:[%s5 + $0xa8] sm:$0xff]
    %v2050 = vld [vmem:[%s5 + $0xc8] sm:$0xff]
    %v2051 = vld [vmem:[%s5 + $0xe8] sm:$0xff]
    %v2052 = vld [vmem:[%s5 + $0x108] sm:$0xff]
    %v2053 = vld [vmem:[%s5 + $0x128] sm:$0xff]
    %v2054 = vld [vmem:[%s5 + $0x148] sm:$0xff]
    %v2055 = vld [vmem:[%s5 + $0x168] sm:$0xff]
    %v2056 = vld [vmem:[%s5 + $0x188] sm:$0xff]
    %v2057 = vld [vmem:[%s5 + $0x1a8] sm:$0xff]
    %v2058 = vld [vmem:[%s5 + $0x1c8] sm:$0xff]
    %v2059 = vld [vmem:[%s5 + $0x1e8] sm:$0xff]
    %v2076 = vunpack.c.l.b16 %v2044
    %v2077 = vunpack.c.h.b16 %v2044
    %v2078 = vunpack.c.l.b16 %v2045
    %v2079 = vunpack.c.h.b16 %v2045
    %v2080 = vunpack.c.l.b16 %v2046
    %v2081 = vunpack.c.h.b16 %v2046
    %v2082 = vunpack.c.l.b16 %v2047
    %v2083 = vunpack.c.h.b16 %v2047
    %v2084 = vunpack.c.l.b16 %v2048
    %v2085 = vunpack.c.h.b16 %v2048
    %v2086 = vunpack.c.l.b16 %v2049
    %v2087 = vunpack.c.h.b16 %v2049
    %v2088 = vunpack.c.l.b16 %v2050
    %v2089 = vunpack.c.h.b16 %v2050
    %v2090 = vunpack.c.l.b16 %v2051
    %v2091 = vunpack.c.h.b16 %v2051
    %v2092 = vunpack.c.l.b16 %v2052
    %v2093 = vunpack.c.h.b16 %v2052
    %v2094 = vunpack.c.l.b16 %v2053
    %v2095 = vunpack.c.h.b16 %v2053
    %v2096 = vunpack.c.l.b16 %v2054
    %v2097 = vunpack.c.h.b16 %v2054
    %v2098 = vunpack.c.l.b16 %v2055
    %v2099 = vunpack.c.h.b16 %v2055
    %v2100 = vunpack.c.l.b16 %v2056
    %v2101 = vunpack.c.h.b16 %v2056
    %v2102 = vunpack.c.l.b16 %v2057
    %v2103 = vunpack.c.h.b16 %v2057
    %v2104 = vunpack.c.l.b16 %v2058
    %v2105 = vunpack.c.h.b16 %v2058
    %v2106 = vunpack.c.l.b16 %v2059
    %v2107 = vunpack.c.h.b16 %v2059
    %v2108 = vpack.c.b16 %v2078, %v2076
    %v2109 = vpack.c.b16 %v2079, %v2077
    %v2110 = vpack.c.b16 %v2082, %v2080
    %v2111 = vpack.c.b16 %v2083, %v2081
    %v2112 = vpack.c.b16 %v2086, %v2084
    %v2113 = vpack.c.b16 %v2087, %v2085
    %v2114 = vpack.c.b16 %v2090, %v2088
    %v2115 = vpack.c.b16 %v2091, %v2089
    %v2116 = vpack.c.b16 %v2094, %v2092
    %v2117 = vpack.c.b16 %v2095, %v2093
    %v2118 = vpack.c.b16 %v2098, %v2096
    %v2119 = vpack.c.b16 %v2099, %v2097
    %v2120 = vpack.c.b16 %v2102, %v2100
    %v2121 = vpack.c.b16 %v2103, %v2101
    %v2122 = vpack.c.b16 %v2106, %v2104
    %v2123 = vpack.c.b16 %v2107, %v2105
    %2140 = vmatprep.subr.bf16.mxu0 %v2109
    %2141 = vmatpush1.bf16.msra.mxu0 %v2108
    %2142 = vmatprep.subr.bf16.mxu0 %v2111
    %2143 = vmatpush1.bf16.msra.mxu0 %v2110
    %2144 = vmatprep.subr.bf16.mxu0 %v2113
    %2145 = vmatpush1.bf16.msra.mxu0 %v2112
    %2146 = vmatprep.subr.bf16.mxu0 %v2115
    %2147 = vmatpush1.bf16.msra.mxu0 %v2114
    %2148 = vmatprep.subr.bf16.mxu0 %v2117
    %2149 = vmatpush1.bf16.msra.mxu0 %v2116
    %2150 = vmatprep.subr.bf16.mxu0 %v2119
    %2151 = vmatpush1.bf16.msra.mxu0 %v2118
    %2152 = vmatprep.subr.bf16.mxu0 %v2121
    %2153 = vmatpush1.bf16.msra.mxu0 %v2120
    %2154 = vmatprep.subr.bf16.mxu0 %v2123
    %2155 = vmatpush1.bf16.msra.mxu0 %v2122
    %2156 = vmatprep.subr.bf16.mxu0 0
    %2157 = vmatpush1.bf16.msra.mxu0 0
    %2158 = vmatprep.subr.bf16.mxu0 0
    %2159 = vmatpush1.bf16.msra.mxu0 0
    %2160 = vmatprep.subr.bf16.mxu0 0
    %2161 = vmatpush1.bf16.msra.mxu0 0
    %2162 = vmatprep.subr.bf16.mxu0 0
    %2163 = vmatpush1.bf16.msra.mxu0 0
    %2164 = vmatprep.subr.bf16.mxu0 0
    %2165 = vmatpush1.bf16.msra.mxu0 0
    %2166 = vmatprep.subr.bf16.mxu0 0
    %2167 = vmatpush1.bf16.msra.mxu0 0
    %2168 = vmatprep.subr.bf16.mxu0 0
    %2169 = vmatpush1.bf16.msra.mxu0 0
    %2170 = vmatprep.subr.bf16.mxu0 0
    %2171 = vmatpush1.bf16.msra.mxu0 0
    %2172 = vmatprep.mubr.bf16.mxu0 0
    %2173 = vmatmul.mubr.bf16.gmra.mrb[0].mxu0 %v1427
    %v2174 = vpop.f32.mrb[0].mxu0
    %v2175 = vadd.f32 0.0, %v2174
    %v2176 = vpop.f32.mrb[0].mxu0
    %v2177 = vadd.f32 0.0, %v2176
    %v2178 = vpop.f32.mrb[0].mxu0
    %v2179 = vadd.f32 0.0, %v2178
    %v2180 = vpop.f32.mrb[0].mxu0
    %v2181 = vadd.f32 0.0, %v2180
    %2182 = vmatprep.mubr.bf16.mxu0 0
    %2183 = vmatmul.mubr.bf16.gmra.mrb[0].mxu0 %v1428
    %v2184 = vpop.f32.mrb[0].mxu0
    %v2185 = vadd.f32 0.0, %v2184
    %v2186 = vpop.f32.mrb[0].mxu0
    %v2187 = vadd.f32 0.0, %v2186
    %v2188 = vpop.f32.mrb[0].mxu0
    %v2189 = vadd.f32 0.0, %v2188
    %v2190 = vpop.f32.mrb[0].mxu0
    %v2191 = vadd.f32 0.0, %v2190
    %2192 = vmatprep.mubr.bf16.mxu0 0
    %2193 = vmatmul.mubr.bf16.gmra.mrb[0].mxu0 %v1429
    %v2194 = vpop.f32.mrb[0].mxu0
    %v2195 = vadd.f32 0.0, %v2194
    %v2196 = vpop.f32.mrb[0].mxu0
    %v2197 = vadd.f32 0.0, %v2196
    %v2198 = vpop.f32.mrb[0].mxu0
    %v2199 = vadd.f32 0.0, %v2198
    %v2200 = vpop.f32.mrb[0].mxu0
    %v2201 = vadd.f32 0.0, %v2200
    %2202 = vmatprep.mubr.bf16.mxu0 0
    %2203 = vmatmul.mubr.bf16.gmra.mrb[0].mxu0 %v1430
    %v2204 = vpop.f32.mrb[0].mxu0
    %v2205 = vadd.f32 0.0, %v2204
    %v2206 = vpop.f32.mrb[0].mxu0
    %v2207 = vadd.f32 0.0, %v2206
    %v2208 = vpop.f32.mrb[0].mxu0
    %v2209 = vadd.f32 0.0, %v2208
    %v2210 = vpop.f32.mrb[0].mxu0
    %v2211 = vadd.f32 0.0, %v2210
    %2212 = vmatprep.mubr.bf16.mxu0 0
    %2213 = vmatmul.mubr.bf16.gmra.mrb[0].mxu0 %v1431
    %v2214 = vpop.f32.mrb[0].mxu0
    %v2215 = vadd.f32 0.0, %v2214
    %v2216 = vpop.f32.mrb[0].mxu0
    %v2217 = vadd.f32 0.0, %v2216
    %v2218 = vpop.f32.mrb[0].mxu0
    %v2219 = vadd.f32 0.0, %v2218
    %v2220 = vpop.f32.mrb[0].mxu0
    %v2221 = vadd.f32 0.0, %v2220
    %2222 = vmatprep.mubr.bf16.mxu0 0
    %2223 = vmatmul.mubr.bf16.gmra.mrb[0].mxu0 %v1432
    %v2224 = vpop.f32.mrb[0].mxu0
    %v2225 = vadd.f32 0.0, %v2224
    %v2226 = vpop.f32.mrb[0].mxu0
    %v2227 = vadd.f32 0.0, %v2226
    %v2228 = vpop.f32.mrb[0].mxu0
    %v2229 = vadd.f32 0.0, %v2228
    %v2230 = vpop.f32.mrb[0].mxu0
    %v2231 = vadd.f32 0.0, %v2230
    %2232 = vmatprep.mubr.bf16.mxu0 0
    %2233 = vmatmul.mubr.bf16.gmra.mrb[0].mxu0 %v1433
    %v2234 = vpop.f32.mrb[0].mxu0
    %v2235 = vadd.f32 0.0, %v2234
    %v2236 = vpop.f32.mrb[0].mxu0
    %v2237 = vadd.f32 0.0, %v2236
    %v2238 = vpop.f32.mrb[0].mxu0
    %v2239 = vadd.f32 0.0, %v2238
    %v2240 = vpop.f32.mrb[0].mxu0
    %v2241 = vadd.f32 0.0, %v2240
    %2242 = vmatprep.mubr.bf16.mxu0 0
    %2243 = vmatmul.mubr.bf16.gmra.mrb[0].mxu0 %v1434
    %v2244 = vpop.f32.mrb[0].mxu0
    %v2245 = vadd.f32 0.0, %v2244
    %v2246 = vpop.f32.mrb[0].mxu0
    %v2247 = vadd.f32 0.0, %v2246
    %v2248 = vpop.f32.mrb[0].mxu0
    %v2249 = vadd.f32 0.0, %v2248
    %v2250 = vpop.f32.mrb[0].mxu0
    %v2251 = vadd.f32 0.0, %v2250
    %2252 = vmatprep.mubr.bf16.mxu0 0
    %2253 = vmatmul.mubr.bf16.gmra.mrb[0].mxu0 %v1435
    %v2254 = vpop.f32.mrb[0].mxu0
    %v2255 = vadd.f32 0.0, %v2254
    %v2256 = vpop.f32.mrb[0].mxu0
    %v2257 = vadd.f32 0.0, %v2256
    %v2258 = vpop.f32.mrb[0].mxu0
    %v2259 = vadd.f32 0.0, %v2258
    %v2260 = vpop.f32.mrb[0].mxu0
    %v2261 = vadd.f32 0.0, %v2260
    %2262 = vmatprep.mubr.bf16.mxu0 0
    %2263 = vmatmul.mubr.bf16.gmra.mrb[0].mxu0 %v1436
    %v2264 = vpop.f32.mrb[0].mxu0
    %v2265 = vadd.f32 0.0, %v2264
    %v2266 = vpop.f32.mrb[0].mxu0
    %v2267 = vadd.f32 0.0, %v2266
    %v2268 = vpop.f32.mrb[0].mxu0
    %v2269 = vadd.f32 0.0, %v2268
    %v2270 = vpop.f32.mrb[0].mxu0
    %v2271 = vadd.f32 0.0, %v2270
    %2272 = vmatprep.mubr.bf16.mxu0 0
    %2273 = vmatmul.mubr.bf16.gmra.mrb[0].mxu0 %v1437
    %v2274 = vpop.f32.mrb[0].mxu0
    %v2275 = vadd.f32 0.0, %v2274
    %v2276 = vpop.f32.mrb[0].mxu0
    %v2277 = vadd.f32 0.0, %v2276
    %v2278 = vpop.f32.mrb[0].mxu0
    %v2279 = vadd.f32 0.0, %v2278
    %v2280 = vpop.f32.mrb[0].mxu0
    %v2281 = vadd.f32 0.0, %v2280
    %2282 = vmatprep.mubr.bf16.mxu0 0
    %2283 = vmatmul.mubr.bf16.gmra.mrb[0].mxu0 %v1438
    %v2284 = vpop.f32.mrb[0].mxu0
    %v2285 = vadd.f32 0.0, %v2284
    %v2286 = vpop.f32.mrb[0].mxu0
    %v2287 = vadd.f32 0.0, %v2286
    %v2288 = vpop.f32.mrb[0].mxu0
    %v2289 = vadd.f32 0.0, %v2288
    %v2290 = vpop.f32.mrb[0].mxu0
    %v2291 = vadd.f32 0.0, %v2290
    %2292 = vmatprep.mubr.bf16.mxu0 0
    %2293 = vmatmul.mubr.bf16.gmra.mrb[0].mxu0 %v1439
    %v2294 = vpop.f32.mrb[0].mxu0
    %v2295 = vadd.f32 0.0, %v2294
    %v2296 = vpop.f32.mrb[0].mxu0
    %v2297 = vadd.f32 0.0, %v2296
    %v2298 = vpop.f32.mrb[0].mxu0
    %v2299 = vadd.f32 0.0, %v2298
    %v2300 = vpop.f32.mrb[0].mxu0
    %v2301 = vadd.f32 0.0, %v2300
    %2302 = vmatprep.mubr.bf16.mxu0 0
    %2303 = vmatmul.mubr.bf16.gmra.mrb[0].mxu0 %v1440
    %v2304 = vpop.f32.mrb[0].mxu0
    %v2305 = vadd.f32 0.0, %v2304
    %v2306 = vpop.f32.mrb[0].mxu0
    %v2307 = vadd.f32 0.0, %v2306
    %v2308 = vpop.f32.mrb[0].mxu0
    %v2309 = vadd.f32 0.0, %v2308
    %v2310 = vpop.f32.mrb[0].mxu0
    %v2311 = vadd.f32 0.0, %v2310
    %2312 = vmatprep.mubr.bf16.mxu0 0
    %2313 = vmatmul.mubr.bf16.gmra.mrb[0].mxu0 %v1441
    %v2314 = vpop.f32.mrb[0].mxu0
    %v2315 = vadd.f32 0.0, %v2314
    %v2316 = vpop.f32.mrb[0].mxu0
    %v2317 = vadd.f32 0.0, %v2316
    %v2318 = vpop.f32.mrb[0].mxu0
    %v2319 = vadd.f32 0.0, %v2318
    %v2320 = vpop.f32.mrb[0].mxu0
    %v2321 = vadd.f32 0.0, %v2320
    %2322 = vmatprep.mubr.bf16.mxu0 0
    %2323 = vmatmul.mubr.bf16.gmra.mrb[0].mxu0 %v1442
    %v2324 = vpop.f32.mrb[0].mxu0
    %v2325 = vadd.f32 0.0, %v2324
    %v2326 = vpop.f32.mrb[0].mxu0
    %v2327 = vadd.f32 0.0, %v2326
    %v2328 = vpop.f32.mrb[0].mxu0
    %v2329 = vadd.f32 0.0, %v2328
    %v2330 = vpop.f32.mrb[0].mxu0
    %v2331 = vadd.f32 0.0, %v2330
    %2332 = vmatprep.mubr.bf16.mxu0 0
    %2333 = vmatmul.mubr.bf16.gmra.mrb[0].mxu0 %v1443
    %v2334 = vpop.f32.mrb[0].mxu0
    %v2335 = vadd.f32 0.0, %v2334
    %v2336 = vpop.f32.mrb[0].mxu0
    %v2337 = vadd.f32 0.0, %v2336
    %v2338 = vpop.f32.mrb[0].mxu0
    %v2339 = vadd.f32 0.0, %v2338
    %v2340 = vpop.f32.mrb[0].mxu0
    %v2341 = vadd.f32 0.0, %v2340
    %2342 = vmatprep.mubr.bf16.mxu0 0
    %2343 = vmatmul.mubr.bf16.gmra.mrb[0].mxu0 %v1444
    %v2344 = vpop.f32.mrb[0].mxu0
    %v2345 = vadd.f32 0.0, %v2344
    %v2346 = vpop.f32.mrb[0].mxu0
    %v2347 = vadd.f32 0.0, %v2346
    %v2348 = vpop.f32.mrb[0].mxu0
    %v2349 = vadd.f32 0.0, %v2348
    %v2350 = vpop.f32.mrb[0].mxu0
    %v2351 = vadd.f32 0.0, %v2350
    %2352 = vmatprep.mubr.bf16.mxu0 0
    %2353 = vmatmul.mubr.bf16.gmra.mrb[0].mxu0 %v1445
    %v2354 = vpop.f32.mrb[0].mxu0
    %v2355 = vadd.f32 0.0, %v2354
    %v2356 = vpop.f32.mrb[0].mxu0
    %v2357 = vadd.f32 0.0, %v2356
    %v2358 = vpop.f32.mrb[0].mxu0
    %v2359 = vadd.f32 0.0, %v2358
    %v2360 = vpop.f32.mrb[0].mxu0
    %v2361 = vadd.f32 0.0, %v2360
    %2362 = vmatprep.mubr.bf16.mxu0 0
    %2363 = vmatmul.mubr.bf16.gmra.mrb[0].mxu0 %v1446
    %v2364 = vpop.f32.mrb[0].mxu0
    %v2365 = vadd.f32 0.0, %v2364
    %v2366 = vpop.f32.mrb[0].mxu0
    %v2367 = vadd.f32 0.0, %v2366
    %v2368 = vpop.f32.mrb[0].mxu0
    %v2369 = vadd.f32 0.0, %v2368
    %v2370 = vpop.f32.mrb[0].mxu0
    %v2371 = vadd.f32 0.0, %v2370
    %2372 = vmatprep.mubr.bf16.mxu0 0
    %2373 = vmatmul.mubr.bf16.gmra.mrb[0].mxu0 %v1447
    %v2374 = vpop.f32.mrb[0].mxu0
    %v2375 = vadd.f32 0.0, %v2374
    %v2376 = vpop.f32.mrb[0].mxu0
    %v2377 = vadd.f32 0.0, %v2376
    %v2378 = vpop.f32.mrb[0].mxu0
    %v2379 = vadd.f32 0.0, %v2378
    %v2380 = vpop.f32.mrb[0].mxu0
    %v2381 = vadd.f32 0.0, %v2380
    %2382 = vmatprep.mubr.bf16.mxu0 0
    %2383 = vmatmul.mubr.bf16.gmra.mrb[0].mxu0 %v1448
    %v2384 = vpop.f32.mrb[0].mxu0
    %v2385 = vadd.f32 0.0, %v2384
    %v2386 = vpop.f32.mrb[0].mxu0
    %v2387 = vadd.f32 0.0, %v2386
    %v2388 = vpop.f32.mrb[0].mxu0
    %v2389 = vadd.f32 0.0, %v2388
    %v2390 = vpop.f32.mrb[0].mxu0
    %v2391 = vadd.f32 0.0, %v2390
    %2392 = vmatprep.mubr.bf16.mxu0 0
    %2393 = vmatmul.mubr.bf16.gmra.mrb[0].mxu0 %v1449
    %v2394 = vpop.f32.mrb[0].mxu0
    %v2395 = vadd.f32 0.0, %v2394
    %v2396 = vpop.f32.mrb[0].mxu0
    %v2397 = vadd.f32 0.0, %v2396
    %v2398 = vpop.f32.mrb[0].mxu0
    %v2399 = vadd.f32 0.0, %v2398
    %v2400 = vpop.f32.mrb[0].mxu0
    %v2401 = vadd.f32 0.0, %v2400
    %2402 = vmatprep.mubr.bf16.mxu0 0
    %2403 = vmatmul.mubr.bf16.gmra.mrb[0].mxu0 %v1450
    %v2404 = vpop.f32.mrb[0].mxu0
    %v2405 = vadd.f32 0.0, %v2404
    %v2406 = vpop.f32.mrb[0].mxu0
    %v2407 = vadd.f32 0.0, %v2406
    %v2408 = vpop.f32.mrb[0].mxu0
    %v2409 = vadd.f32 0.0, %v2408
    %v2410 = vpop.f32.mrb[0].mxu0
    %v2411 = vadd.f32 0.0, %v2410
    %2412 = vmatprep.mubr.bf16.mxu0 0
    %2413 = vmatmul.mubr.bf16.gmra.mrb[0].mxu0 %v1451
    %v2414 = vpop.f32.mrb[0].mxu0
    %v2415 = vadd.f32 0.0, %v2414
    %v2416 = vpop.f32.mrb[0].mxu0
    %v2417 = vadd.f32 0.0, %v2416
    %v2418 = vpop.f32.mrb[0].mxu0
    %v2419 = vadd.f32 0.0, %v2418
    %v2420 = vpop.f32.mrb[0].mxu0
    %v2421 = vadd.f32 0.0, %v2420
    %2422 = vmatprep.mubr.bf16.mxu0 0
    %2423 = vmatmul.mubr.bf16.gmra.mrb[0].mxu0 %v1452
    %v2424 = vpop.f32.mrb[0].mxu0
    %v2425 = vadd.f32 0.0, %v2424
    %v2426 = vpop.f32.mrb[0].mxu0
    %v2427 = vadd.f32 0.0, %v2426
    %v2428 = vpop.f32.mrb[0].mxu0
    %v2429 = vadd.f32 0.0, %v2428
    %v2430 = vpop.f32.mrb[0].mxu0
    %v2431 = vadd.f32 0.0, %v2430
    %2432 = vmatprep.mubr.bf16.mxu0 0
    %2433 = vmatmul.mubr.bf16.gmra.mrb[0].mxu0 %v1453
    %v2434 = vpop.f32.mrb[0].mxu0
    %v2435 = vadd.f32 0.0, %v2434
    %v2436 = vpop.f32.mrb[0].mxu0
    %v2437 = vadd.f32 0.0, %v2436
    %v2438 = vpop.f32.mrb[0].mxu0
    %v2439 = vadd.f32 0.0, %v2438
    %v2440 = vpop.f32.mrb[0].mxu0
    %v2441 = vadd.f32 0.0, %v2440
    %2442 = vmatprep.mubr.bf16.mxu0 0
    %2443 = vmatmul.mubr.bf16.gmra.mrb[0].mxu0 %v1454
    %v2444 = vpop.f32.mrb[0].mxu0
    %v2445 = vadd.f32 0.0, %v2444
    %v2446 = vpop.f32.mrb[0].mxu0
    %v2447 = vadd.f32 0.0, %v2446
    %v2448 = vpop.f32.mrb[0].mxu0
    %v2449 = vadd.f32 0.0, %v2448
    %v2450 = vpop.f32.mrb[0].mxu0
    %v2451 = vadd.f32 0.0, %v2450
    %2452 = vmatprep.mubr.bf16.mxu0 0
    %2453 = vmatmul.mubr.bf16.gmra.mrb[0].mxu0 %v1455
    %v2454 = vpop.f32.mrb[0].mxu0
    %v2455 = vadd.f32 0.0, %v2454
    %v2456 = vpop.f32.mrb[0].mxu0
    %v2457 = vadd.f32 0.0, %v2456
    %v2458 = vpop.f32.mrb[0].mxu0
    %v2459 = vadd.f32 0.0, %v2458
    %v2460 = vpop.f32.mrb[0].mxu0
    %v2461 = vadd.f32 0.0, %v2460
    %2462 = vmatprep.mubr.bf16.mxu0 0
    %2463 = vmatmul.mubr.bf16.gmra.mrb[0].mxu0 %v1456
    %v2464 = vpop.f32.mrb[0].mxu0
    %v2465 = vadd.f32 0.0, %v2464
    %v2466 = vpop.f32.mrb[0].mxu0
    %v2467 = vadd.f32 0.0, %v2466
    %v2468 = vpop.f32.mrb[0].mxu0
    %v2469 = vadd.f32 0.0, %v2468
    %v2470 = vpop.f32.mrb[0].mxu0
    %v2471 = vadd.f32 0.0, %v2470
    %2472 = vmatprep.mubr.bf16.mxu0 0
    %2473 = vmatmul.mubr.bf16.gmra.mrb[0].mxu0 %v1457
    %v2474 = vpop.f32.mrb[0].mxu0
    %v2475 = vadd.f32 0.0, %v2474
    %v2476 = vpop.f32.mrb[0].mxu0
    %v2477 = vadd.f32 0.0, %v2476
    %v2478 = vpop.f32.mrb[0].mxu0
    %v2479 = vadd.f32 0.0, %v2478
    %v2480 = vpop.f32.mrb[0].mxu0
    %v2481 = vadd.f32 0.0, %v2480
    %2482 = vmatprep.mubr.bf16.mxu0 0
    %2483 = vmatmul.mubr.bf16.gmra.mrb[0].mxu0 %v1458
    %v2484 = vpop.f32.mrb[0].mxu0
    %v2485 = vadd.f32 0.0, %v2484
    %v2486 = vpop.f32.mrb[0].mxu0
    %v2487 = vadd.f32 0.0, %v2486
    %v2488 = vpop.f32.mrb[0].mxu0
    %v2489 = vadd.f32 0.0, %v2488
    %v2490 = vpop.f32.mrb[0].mxu0
    %v2491 = vadd.f32 0.0, %v2490
    %2492 = vdwg.mxu0
    %v2493 = vmax.f32 %v2175, %v2185
    %v2494 = vmax.f32 %v2179, %v2189
    %v2495 = vmax.f32 %v2493, %v2195
    %v2496 = vmax.f32 %v2494, %v2199
    %v2497 = vmax.f32 %v2495, %v2205
    %v2498 = vmax.f32 %v2496, %v2209
    %v2499 = vmax.f32 %v2497, %v2215
    %v2500 = vmax.f32 %v2498, %v2219
    %v2501 = vmax.f32 %v2499, %v2225
    %v2502 = vmax.f32 %v2500, %v2229
    %v2503 = vmax.f32 %v2501, %v2235
    %v2504 = vmax.f32 %v2502, %v2239
    %v2505 = vmax.f32 %v2503, %v2245
    %v2506 = vmax.f32 %v2504, %v2249
    %v2507 = vmax.f32 %v2505, %v2255
    %v2508 = vmax.f32 %v2506, %v2259
    %v2509 = vmax.f32 %v2507, %v2265
    %v2510 = vmax.f32 %v2508, %v2269
    %v2511 = vmax.f32 %v2509, %v2275
    %v2512 = vmax.f32 %v2510, %v2279
    %v2513 = vmax.f32 %v2511, %v2285
    %v2514 = vmax.f32 %v2512, %v2289
    %v2515 = vmax.f32 %v2513, %v2295
    %v2516 = vmax.f32 %v2514, %v2299
    %v2517 = vmax.f32 %v2515, %v2305
    %v2518 = vmax.f32 %v2516, %v2309
    %v2519 = vmax.f32 %v2517, %v2315
    %v2520 = vmax.f32 %v2518, %v2319
    %v2521 = vmax.f32 %v2519, %v2325
    %v2522 = vmax.f32 %v2520, %v2329
    %v2523 = vmax.f32 %v2521, %v2522
    %v2524 = vmax.f32 %v2177, %v2187
    %v2525 = vmax.f32 %v2181, %v2191
    %v2526 = vmax.f32 %v2524, %v2197
    %v2527 = vmax.f32 %v2525, %v2201
    %v2528 = vmax.f32 %v2526, %v2207
    %v2529 = vmax.f32 %v2527, %v2211
    %v2530 = vmax.f32 %v2528, %v2217
    %v2531 = vmax.f32 %v2529, %v2221
    %v2532 = vmax.f32 %v2530, %v2227
    %v2533 = vmax.f32 %v2531, %v2231
    %v2534 = vmax.f32 %v2532, %v2237
    %v2535 = vmax.f32 %v2533, %v2241
    %v2536 = vmax.f32 %v2534, %v2247
    %v2537 = vmax.f32 %v2535, %v2251
    %v2538 = vmax.f32 %v2536, %v2257
    %v2539 = vmax.f32 %v2537, %v2261
    %v2540 = vmax.f32 %v2538, %v2267
    %v2541 = vmax.f32 %v2539, %v2271
    %v2542 = vmax.f32 %v2540, %v2277
    %v2543 = vmax.f32 %v2541, %v2281
    %v2544 = vmax.f32 %v2542, %v2287
    %v2545 = vmax.f32 %v2543, %v2291
    %v2546 = vmax.f32 %v2544, %v2297
    %v2547 = vmax.f32 %v2545, %v2301
    %v2548 = vmax.f32 %v2546, %v2307
    %v2549 = vmax.f32 %v2547, %v2311
    %v2550 = vmax.f32 %v2548, %v2317
    %v2551 = vmax.f32 %v2549, %v2321
    %v2552 = vmax.f32 %v2550, %v2327
    %v2553 = vmax.f32 %v2551, %v2331
    %v2554 = vmax.f32 %v2552, %v2553
    %v2555 = vld [vmem:[#allocation2 + $0x10] sm:$0xff]
    %v2556 = vld [vmem:[#allocation2 + $0x18] sm:$0xff]
    %v2557 = vmax.f32 %v2555, %v2523
    %v2558 = vmax.f32 %v2556, %v2554
    %2559 = vst [vmem:[#allocation2 + $0x10] sm:$0xff] %v2557
    %2560 = vst [vmem:[#allocation2 + $0x18] sm:$0xff] %v2558
    %v2561 = vmax.f32 %v2335, %v2345
    %v2562 = vmax.f32 %v2339, %v2349
    %v2563 = vmax.f32 %v2561, %v2355
    %v2564 = vmax.f32 %v2562, %v2359
    %v2565 = vmax.f32 %v2563, %v2365
    %v2566 = vmax.f32 %v2564, %v2369
    %v2567 = vmax.f32 %v2565, %v2375
    %v2568 = vmax.f32 %v2566, %v2379
    %v2569 = vmax.f32 %v2567, %v2385
    %v2570 = vmax.f32 %v2568, %v2389
    %v2571 = vmax.f32 %v2569, %v2395
    %v2572 = vmax.f32 %v2570, %v2399
    %v2573 = vmax.f32 %v2571, %v2405
    %v2574 = vmax.f32 %v2572, %v2409
    %v2575 = vmax.f32 %v2573, %v2415
    %v2576 = vmax.f32 %v2574, %v2419
    %v2577 = vmax.f32 %v2575, %v2425
    %v2578 = vmax.f32 %v2576, %v2429
    %v2579 = vmax.f32 %v2577, %v2435
    %v2580 = vmax.f32 %v2578, %v2439
    %v2581 = vmax.f32 %v2579, %v2445
    %v2582 = vmax.f32 %v2580, %v2449
    %v2583 = vmax.f32 %v2581, %v2455
    %v2584 = vmax.f32 %v2582, %v2459
    %v2585 = vmax.f32 %v2583, %v2465
    %v2586 = vmax.f32 %v2584, %v2469
    %v2587 = vmax.f32 %v2585, %v2475
    %v2588 = vmax.f32 %v2586, %v2479
    %v2589 = vmax.f32 %v2587, %v2485
    %v2590 = vmax.f32 %v2588, %v2489
    %v2591 = vmax.f32 %v2589, %v2590
    %v2592 = vmax.f32 %v2337, %v2347
    %v2593 = vmax.f32 %v2341, %v2351
    %v2594 = vmax.f32 %v2592, %v2357
    %v2595 = vmax.f32 %v2593, %v2361
    %v2596 = vmax.f32 %v2594, %v2367
    %v2597 = vmax.f32 %v2595, %v2371
    %v2598 = vmax.f32 %v2596, %v2377
    %v2599 = vmax.f32 %v2597, %v2381
    %v2600 = vmax.f32 %v2598, %v2387
    %v2601 = vmax.f32 %v2599, %v2391
    %v2602 = vmax.f32 %v2600, %v2397
    %v2603 = vmax.f32 %v2601, %v2401
    %v2604 = vmax.f32 %v2602, %v2407
    %v2605 = vmax.f32 %v2603, %v2411
    %v2606 = vmax.f32 %v2604, %v2417
    %v2607 = vmax.f32 %v2605, %v2421
    %v2608 = vmax.f32 %v2606, %v2427
    %v2609 = vmax.f32 %v2607, %v2431
    %v2610 = vmax.f32 %v2608, %v2437
    %v2611 = vmax.f32 %v2609, %v2441
    %v2612 = vmax.f32 %v2610, %v2447
    %v2613 = vmax.f32 %v2611, %v2451
    %v2614 = vmax.f32 %v2612, %v2457
    %v2615 = vmax.f32 %v2613, %v2461
    %v2616 = vmax.f32 %v2614, %v2467
    %v2617 = vmax.f32 %v2615, %v2471
    %v2618 = vmax.f32 %v2616, %v2477
    %v2619 = vmax.f32 %v2617, %v2481
    %v2620 = vmax.f32 %v2618, %v2487
    %v2621 = vmax.f32 %v2619, %v2491
    %v2622 = vmax.f32 %v2620, %v2621
    %v2623 = vld [vmem:[#allocation2 + $0x50] sm:$0xff]
    %v2624 = vld [vmem:[#allocation2 + $0x58] sm:$0xff]
    %v2625 = vmax.f32 %v2623, %v2591
    %v2626 = vmax.f32 %v2624, %v2622
    %2627 = vst [vmem:[#allocation2 + $0x50] sm:$0xff] %v2625
    %2628 = vst [vmem:[#allocation2 + $0x58] sm:$0xff] %v2626
    %v2629 = vld [vmem:[%s5 + $0x10] sm:$0xff]
    %v2630 = vld [vmem:[%s5 + $0x30] sm:$0xff]
    %v2631 = vld [vmem:[%s5 + $0x50] sm:$0xff]
    %v2632 = vld [vmem:[%s5 + $0x70] sm:$0xff]
    %v2633 = vld [vmem:[%s5 + $0x90] sm:$0xff]
    %v2634 = vld [vmem:[%s5 + $0xb0] sm:$0xff]
    %v2635 = vld [vmem:[%s5 + $0xd0] sm:$0xff]
    %v2636 = vld [vmem:[%s5 + $0xf0] sm:$0xff]
    %v2637 = vld [vmem:[%s5 + $0x110] sm:$0xff]
    %v2638 = vld [vmem:[%s5 + $0x130] sm:$0xff]
    %v2639 = vld [vmem:[%s5 + $0x150] sm:$0xff]
    %v2640 = vld [vmem:[%s5 + $0x170] sm:$0xff]
    %v2641 = vld [vmem:[%s5 + $0x190] sm:$0xff]
    %v2642 = vld [vmem:[%s5 + $0x1b0] sm:$0xff]
    %v2643 = vld [vmem:[%s5 + $0x1d0] sm:$0xff]
    %v2644 = vld [vmem:[%s5 + $0x1f0] sm:$0xff]
    %v2661 = vunpack.c.l.b16 %v2629
    %v2662 = vunpack.c.h.b16 %v2629
    %v2663 = vunpack.c.l.b16 %v2630
    %v2664 = vunpack.c.h.b16 %v2630
    %v2665 = vunpack.c.l.b16 %v2631
    %v2666 = vunpack.c.h.b16 %v2631
    %v2667 = vunpack.c.l.b16 %v2632
    %v2668 = vunpack.c.h.b16 %v2632
    %v2669 = vunpack.c.l.b16 %v2633
    %v2670 = vunpack.c.h.b16 %v2633
    %v2671 = vunpack.c.l.b16 %v2634
    %v2672 = vunpack.c.h.b16 %v2634
    %v2673 = vunpack.c.l.b16 %v2635
    %v2674 = vunpack.c.h.b16 %v2635
    %v2675 = vunpack.c.l.b16 %v2636
    %v2676 = vunpack.c.h.b16 %v2636
    %v2677 = vunpack.c.l.b16 %v2637
    %v2678 = vunpack.c.h.b16 %v2637
    %v2679 = vunpack.c.l.b16 %v2638
    %v2680 = vunpack.c.h.b16 %v2638
    %v2681 = vunpack.c.l.b16 %v2639
    %v2682 = vunpack.c.h.b16 %v2639
    %v2683 = vunpack.c.l.b16 %v2640
    %v2684 = vunpack.c.h.b16 %v2640
    %v2685 = vunpack.c.l.b16 %v2641
    %v2686 = vunpack.c.h.b16 %v2641
    %v2687 = vunpack.c.l.b16 %v2642
    %v2688 = vunpack.c.h.b16 %v2642
    %v2689 = vunpack.c.l.b16 %v2643
    %v2690 = vunpack.c.h.b16 %v2643
    %v2691 = vunpack.c.l.b16 %v2644
    %v2692 = vunpack.c.h.b16 %v2644
    %v2693 = vpack.c.b16 %v2663, %v2661
    %v2694 = vpack.c.b16 %v2664, %v2662
    %v2695 = vpack.c.b16 %v2667, %v2665
    %v2696 = vpack.c.b16 %v2668, %v2666
    %v2697 = vpack.c.b16 %v2671, %v2669
    %v2698 = vpack.c.b16 %v2672, %v2670
    %v2699 = vpack.c.b16 %v2675, %v2673
    %v2700 = vpack.c.b16 %v2676, %v2674
    %v2701 = vpack.c.b16 %v2679, %v2677
    %v2702 = vpack.c.b16 %v2680, %v2678
    %v2703 = vpack.c.b16 %v2683, %v2681
    %v2704 = vpack.c.b16 %v2684, %v2682
    %v2705 = vpack.c.b16 %v2687, %v2685
    %v2706 = vpack.c.b16 %v2688, %v2686
    %v2707 = vpack.c.b16 %v2691, %v2689
    %v2708 = vpack.c.b16 %v2692, %v2690
    %2725 = vmatprep.subr.bf16.mxu0 %v2694
    %2726 = vmatpush1.bf16.msra.mxu0 %v2693
    %2727 = vmatprep.subr.bf16.mxu0 %v2696
    %2728 = vmatpush1.bf16.msra.mxu0 %v2695
    %2729 = vmatprep.subr.bf16.mxu0 %v2698
    %2730 = vmatpush1.bf16.msra.mxu0 %v2697
    %2731 = vmatprep.subr.bf16.mxu0 %v2700
    %2732 = vmatpush1.bf16.msra.mxu0 %v2699
    %2733 = vmatprep.subr.bf16.mxu0 %v2702
    %2734 = vmatpush1.bf16.msra.mxu0 %v2701
    %2735 = vmatprep.subr.bf16.mxu0 %v2704
    %2736 = vmatpush1.bf16.msra.mxu0 %v2703
    %2737 = vmatprep.subr.bf16.mxu0 %v2706
    %2738 = vmatpush1.bf16.msra.mxu0 %v2705
    %2739 = vmatprep.subr.bf16.mxu0 %v2708
    %2740 = vmatpush1.bf16.msra.mxu0 %v2707
    %2741 = vmatprep.subr.bf16.mxu0 0
    %2742 = vmatpush1.bf16.msra.mxu0 0
    %2743 = vmatprep.subr.bf16.mxu0 0
    %2744 = vmatpush1.bf16.msra.mxu0 0
    %2745 = vmatprep.subr.bf16.mxu0 0
    %2746 = vmatpush1.bf16.msra.mxu0 0
    %2747 = vmatprep.subr.bf16.mxu0 0
    %2748 = vmatpush1.bf16.msra.mxu0 0
    %2749 = vmatprep.subr.bf16.mxu0 0
    %2750 = vmatpush1.bf16.msra.mxu0 0
    %2751 = vmatprep.subr.bf16.mxu0 0
    %2752 = vmatpush1.bf16.msra.mxu0 0
    %2753 = vmatprep.subr.bf16.mxu0 0
    %2754 = vmatpush1.bf16.msra.mxu0 0
    %2755 = vmatprep.subr.bf16.mxu0 0
    %2756 = vmatpush1.bf16.msra.mxu0 0
    %2757 = vmatprep.mubr.bf16.mxu0 0
    %2758 = vmatmul.mubr.bf16.gmra.mrb[0].mxu0 %v1427
    %v2759 = vpop.f32.mrb[0].mxu0
    %v2760 = vadd.f32 0.0, %v2759
    %v2761 = vpop.f32.mrb[0].mxu0
    %v2762 = vadd.f32 0.0, %v2761
    %v2763 = vpop.f32.mrb[0].mxu0
    %v2764 = vadd.f32 0.0, %v2763
    %v2765 = vpop.f32.mrb[0].mxu0
    %v2766 = vadd.f32 0.0, %v2765
    %2767 = vmatprep.mubr.bf16.mxu0 0
    %2768 = vmatmul.mubr.bf16.gmra.mrb[0].mxu0 %v1428
    %v2769 = vpop.f32.mrb[0].mxu0
    %v2770 = vadd.f32 0.0, %v2769
    %v2771 = vpop.f32.mrb[0].mxu0
    %v2772 = vadd.f32 0.0, %v2771
    %v2773 = vpop.f32.mrb[0].mxu0
    %v2774 = vadd.f32 0.0, %v2773
    %v2775 = vpop.f32.mrb[0].mxu0
    %v2776 = vadd.f32 0.0, %v2775
    %2777 = vmatprep.mubr.bf16.mxu0 0
    %2778 = vmatmul.mubr.bf16.gmra.mrb[0].mxu0 %v1429
    %v2779 = vpop.f32.mrb[0].mxu0
    %v2780 = vadd.f32 0.0, %v2779
    %v2781 = vpop.f32.mrb[0].mxu0
    %v2782 = vadd.f32 0.0, %v2781
    %v2783 = vpop.f32.mrb[0].mxu0
    %v2784 = vadd.f32 0.0, %v2783
    %v2785 = vpop.f32.mrb[0].mxu0
    %v2786 = vadd.f32 0.0, %v2785
    %2787 = vmatprep.mubr.bf16.mxu0 0
    %2788 = vmatmul.mubr.bf16.gmra.mrb[0].mxu0 %v1430
    %v2789 = vpop.f32.mrb[0].mxu0
    %v2790 = vadd.f32 0.0, %v2789
    %v2791 = vpop.f32.mrb[0].mxu0
    %v2792 = vadd.f32 0.0, %v2791
    %v2793 = vpop.f32.mrb[0].mxu0
    %v2794 = vadd.f32 0.0, %v2793
    %v2795 = vpop.f32.mrb[0].mxu0
    %v2796 = vadd.f32 0.0, %v2795
    %2797 = vmatprep.mubr.bf16.mxu0 0
    %2798 = vmatmul.mubr.bf16.gmra.mrb[0].mxu0 %v1431
    %v2799 = vpop.f32.mrb[0].mxu0
    %v2800 = vadd.f32 0.0, %v2799
    %v2801 = vpop.f32.mrb[0].mxu0
    %v2802 = vadd.f32 0.0, %v2801
    %v2803 = vpop.f32.mrb[0].mxu0
    %v2804 = vadd.f32 0.0, %v2803
    %v2805 = vpop.f32.mrb[0].mxu0
    %v2806 = vadd.f32 0.0, %v2805
    %2807 = vmatprep.mubr.bf16.mxu0 0
    %2808 = vmatmul.mubr.bf16.gmra.mrb[0].mxu0 %v1432
    %v2809 = vpop.f32.mrb[0].mxu0
    %v2810 = vadd.f32 0.0, %v2809
    %v2811 = vpop.f32.mrb[0].mxu0
    %v2812 = vadd.f32 0.0, %v2811
    %v2813 = vpop.f32.mrb[0].mxu0
    %v2814 = vadd.f32 0.0, %v2813
    %v2815 = vpop.f32.mrb[0].mxu0
    %v2816 = vadd.f32 0.0, %v2815
    %2817 = vmatprep.mubr.bf16.mxu0 0
    %2818 = vmatmul.mubr.bf16.gmra.mrb[0].mxu0 %v1433
    %v2819 = vpop.f32.mrb[0].mxu0
    %v2820 = vadd.f32 0.0, %v2819
    %v2821 = vpop.f32.mrb[0].mxu0
    %v2822 = vadd.f32 0.0, %v2821
    %v2823 = vpop.f32.mrb[0].mxu0
    %v2824 = vadd.f32 0.0, %v2823
    %v2825 = vpop.f32.mrb[0].mxu0
    %v2826 = vadd.f32 0.0, %v2825
    %2827 = vmatprep.mubr.bf16.mxu0 0
    %2828 = vmatmul.mubr.bf16.gmra.mrb[0].mxu0 %v1434
    %v2829 = vpop.f32.mrb[0].mxu0
    %v2830 = vadd.f32 0.0, %v2829
    %v2831 = vpop.f32.mrb[0].mxu0
    %v2832 = vadd.f32 0.0, %v2831
    %v2833 = vpop.f32.mrb[0].mxu0
    %v2834 = vadd.f32 0.0, %v2833
    %v2835 = vpop.f32.mrb[0].mxu0
    %v2836 = vadd.f32 0.0, %v2835
    %2837 = vmatprep.mubr.bf16.mxu0 0
    %2838 = vmatmul.mubr.bf16.gmra.mrb[0].mxu0 %v1435
    %v2839 = vpop.f32.mrb[0].mxu0
    %v2840 = vadd.f32 0.0, %v2839
    %v2841 = vpop.f32.mrb[0].mxu0
    %v2842 = vadd.f32 0.0, %v2841
    %v2843 = vpop.f32.mrb[0].mxu0
    %v2844 = vadd.f32 0.0, %v2843
    %v2845 = vpop.f32.mrb[0].mxu0
    %v2846 = vadd.f32 0.0, %v2845
    %2847 = vmatprep.mubr.bf16.mxu0 0
    %2848 = vmatmul.mubr.bf16.gmra.mrb[0].mxu0 %v1436
    %v2849 = vpop.f32.mrb[0].mxu0
    %v2850 = vadd.f32 0.0, %v2849
    %v2851 = vpop.f32.mrb[0].mxu0
    %v2852 = vadd.f32 0.0, %v2851
    %v2853 = vpop.f32.mrb[0].mxu0
    %v2854 = vadd.f32 0.0, %v2853
    %v2855 = vpop.f32.mrb[0].mxu0
    %v2856 = vadd.f32 0.0, %v2855
    %2857 = vmatprep.mubr.bf16.mxu0 0
    %2858 = vmatmul.mubr.bf16.gmra.mrb[0].mxu0 %v1437
    %v2859 = vpop.f32.mrb[0].mxu0
    %v2860 = vadd.f32 0.0, %v2859
    %v2861 = vpop.f32.mrb[0].mxu0
    %v2862 = vadd.f32 0.0, %v2861
    %v2863 = vpop.f32.mrb[0].mxu0
    %v2864 = vadd.f32 0.0, %v2863
    %v2865 = vpop.f32.mrb[0].mxu0
    %v2866 = vadd.f32 0.0, %v2865
    %2867 = vmatprep.mubr.bf16.mxu0 0
    %2868 = vmatmul.mubr.bf16.gmra.mrb[0].mxu0 %v1438
    %v2869 = vpop.f32.mrb[0].mxu0
    %v2870 = vadd.f32 0.0, %v2869
    %v2871 = vpop.f32.mrb[0].mxu0
    %v2872 = vadd.f32 0.0, %v2871
    %v2873 = vpop.f32.mrb[0].mxu0
    %v2874 = vadd.f32 0.0, %v2873
    %v2875 = vpop.f32.mrb[0].mxu0
    %v2876 = vadd.f32 0.0, %v2875
    %2877 = vmatprep.mubr.bf16.mxu0 0
    %2878 = vmatmul.mubr.bf16.gmra.mrb[0].mxu0 %v1439
    %v2879 = vpop.f32.mrb[0].mxu0
    %v2880 = vadd.f32 0.0, %v2879
    %v2881 = vpop.f32.mrb[0].mxu0
    %v2882 = vadd.f32 0.0, %v2881
    %v2883 = vpop.f32.mrb[0].mxu0
    %v2884 = vadd.f32 0.0, %v2883
    %v2885 = vpop.f32.mrb[0].mxu0
    %v2886 = vadd.f32 0.0, %v2885
    %2887 = vmatprep.mubr.bf16.mxu0 0
    %2888 = vmatmul.mubr.bf16.gmra.mrb[0].mxu0 %v1440
    %v2889 = vpop.f32.mrb[0].mxu0
    %v2890 = vadd.f32 0.0, %v2889
    %v2891 = vpop.f32.mrb[0].mxu0
    %v2892 = vadd.f32 0.0, %v2891
    %v2893 = vpop.f32.mrb[0].mxu0
    %v2894 = vadd.f32 0.0, %v2893
    %v2895 = vpop.f32.mrb[0].mxu0
    %v2896 = vadd.f32 0.0, %v2895
    %2897 = vmatprep.mubr.bf16.mxu0 0
    %2898 = vmatmul.mubr.bf16.gmra.mrb[0].mxu0 %v1441
    %v2899 = vpop.f32.mrb[0].mxu0
    %v2900 = vadd.f32 0.0, %v2899
    %v2901 = vpop.f32.mrb[0].mxu0
    %v2902 = vadd.f32 0.0, %v2901
    %v2903 = vpop.f32.mrb[0].mxu0
    %v2904 = vadd.f32 0.0, %v2903
    %v2905 = vpop.f32.mrb[0].mxu0
    %v2906 = vadd.f32 0.0, %v2905
    %2907 = vmatprep.mubr.bf16.mxu0 0
    %2908 = vmatmul.mubr.bf16.gmra.mrb[0].mxu0 %v1442
    %v2909 = vpop.f32.mrb[0].mxu0
    %v2910 = vadd.f32 0.0, %v2909
    %v2911 = vpop.f32.mrb[0].mxu0
    %v2912 = vadd.f32 0.0, %v2911
    %v2913 = vpop.f32.mrb[0].mxu0
    %v2914 = vadd.f32 0.0, %v2913
    %v2915 = vpop.f32.mrb[0].mxu0
    %v2916 = vadd.f32 0.0, %v2915
    %2917 = vmatprep.mubr.bf16.mxu0 0
    %2918 = vmatmul.mubr.bf16.gmra.mrb[0].mxu0 %v1443
    %v2919 = vpop.f32.mrb[0].mxu0
    %v2920 = vadd.f32 0.0, %v2919
    %v2921 = vpop.f32.mrb[0].mxu0
    %v2922 = vadd.f32 0.0, %v2921
    %v2923 = vpop.f32.mrb[0].mxu0
    %v2924 = vadd.f32 0.0, %v2923
    %v2925 = vpop.f32.mrb[0].mxu0
    %v2926 = vadd.f32 0.0, %v2925
    %2927 = vmatprep.mubr.bf16.mxu0 0
    %2928 = vmatmul.mubr.bf16.gmra.mrb[0].mxu0 %v1444
    %v2929 = vpop.f32.mrb[0].mxu0
    %v2930 = vadd.f32 0.0, %v2929
    %v2931 = vpop.f32.mrb[0].mxu0
    %v2932 = vadd.f32 0.0, %v2931
    %v2933 = vpop.f32.mrb[0].mxu0
    %v2934 = vadd.f32 0.0, %v2933
    %v2935 = vpop.f32.mrb[0].mxu0
    %v2936 = vadd.f32 0.0, %v2935
    %2937 = vmatprep.mubr.bf16.mxu0 0
    %2938 = vmatmul.mubr.bf16.gmra.mrb[0].mxu0 %v1445
    %v2939 = vpop.f32.mrb[0].mxu0
    %v2940 = vadd.f32 0.0, %v2939
    %v2941 = vpop.f32.mrb[0].mxu0
    %v2942 = vadd.f32 0.0, %v2941
    %v2943 = vpop.f32.mrb[0].mxu0
    %v2944 = vadd.f32 0.0, %v2943
    %v2945 = vpop.f32.mrb[0].mxu0
    %v2946 = vadd.f32 0.0, %v2945
    %2947 = vmatprep.mubr.bf16.mxu0 0
    %2948 = vmatmul.mubr.bf16.gmra.mrb[0].mxu0 %v1446
    %v2949 = vpop.f32.mrb[0].mxu0
    %v2950 = vadd.f32 0.0, %v2949
    %v2951 = vpop.f32.mrb[0].mxu0
    %v2952 = vadd.f32 0.0, %v2951
    %v2953 = vpop.f32.mrb[0].mxu0
    %v2954 = vadd.f32 0.0, %v2953
    %v2955 = vpop.f32.mrb[0].mxu0
    %v2956 = vadd.f32 0.0, %v2955
    %2957 = vmatprep.mubr.bf16.mxu0 0
    %2958 = vmatmul.mubr.bf16.gmra.mrb[0].mxu0 %v1447
    %v2959 = vpop.f32.mrb[0].mxu0
    %v2960 = vadd.f32 0.0, %v2959
    %v2961 = vpop.f32.mrb[0].mxu0
    %v2962 = vadd.f32 0.0, %v2961
    %v2963 = vpop.f32.mrb[0].mxu0
    %v2964 = vadd.f32 0.0, %v2963
    %v2965 = vpop.f32.mrb[0].mxu0
    %v2966 = vadd.f32 0.0, %v2965
    %2967 = vmatprep.mubr.bf16.mxu0 0
    %2968 = vmatmul.mubr.bf16.gmra.mrb[0].mxu0 %v1448
    %v2969 = vpop.f32.mrb[0].mxu0
    %v2970 = vadd.f32 0.0, %v2969
    %v2971 = vpop.f32.mrb[0].mxu0
    %v2972 = vadd.f32 0.0, %v2971
    %v2973 = vpop.f32.mrb[0].mxu0
    %v2974 = vadd.f32 0.0, %v2973
    %v2975 = vpop.f32.mrb[0].mxu0
    %v2976 = vadd.f32 0.0, %v2975
    %2977 = vmatprep.mubr.bf16.mxu0 0
    %2978 = vmatmul.mubr.bf16.gmra.mrb[0].mxu0 %v1449
    %v2979 = vpop.f32.mrb[0].mxu0
    %v2980 = vadd.f32 0.0, %v2979
    %v2981 = vpop.f32.mrb[0].mxu0
    %v2982 = vadd.f32 0.0, %v2981
    %v2983 = vpop.f32.mrb[0].mxu0
    %v2984 = vadd.f32 0.0, %v2983
    %v2985 = vpop.f32.mrb[0].mxu0
    %v2986 = vadd.f32 0.0, %v2985
    %2987 = vmatprep.mubr.bf16.mxu0 0
    %2988 = vmatmul.mubr.bf16.gmra.mrb[0].mxu0 %v1450
    %v2989 = vpop.f32.mrb[0].mxu0
    %v2990 = vadd.f32 0.0, %v2989
    %v2991 = vpop.f32.mrb[0].mxu0
    %v2992 = vadd.f32 0.0, %v2991
    %v2993 = vpop.f32.mrb[0].mxu0
    %v2994 = vadd.f32 0.0, %v2993
    %v2995 = vpop.f32.mrb[0].mxu0
    %v2996 = vadd.f32 0.0, %v2995
    %2997 = vmatprep.mubr.bf16.mxu0 0
    %2998 = vmatmul.mubr.bf16.gmra.mrb[0].mxu0 %v1451
    %v2999 = vpop.f32.mrb[0].mxu0
    %v3000 = vadd.f32 0.0, %v2999
    %v3001 = vpop.f32.mrb[0].mxu0
    %v3002 = vadd.f32 0.0, %v3001
    %v3003 = vpop.f32.mrb[0].mxu0
    %v3004 = vadd.f32 0.0, %v3003
    %v3005 = vpop.f32.mrb[0].mxu0
    %v3006 = vadd.f32 0.0, %v3005
    %3007 = vmatprep.mubr.bf16.mxu0 0
    %3008 = vmatmul.mubr.bf16.gmra.mrb[0].mxu0 %v1452
    %v3009 = vpop.f32.mrb[0].mxu0
    %v3010 = vadd.f32 0.0, %v3009
    %v3011 = vpop.f32.mrb[0].mxu0
    %v3012 = vadd.f32 0.0, %v3011
    %v3013 = vpop.f32.mrb[0].mxu0
    %v3014 = vadd.f32 0.0, %v3013
    %v3015 = vpop.f32.mrb[0].mxu0
    %v3016 = vadd.f32 0.0, %v3015
    %3017 = vmatprep.mubr.bf16.mxu0 0
    %3018 = vmatmul.mubr.bf16.gmra.mrb[0].mxu0 %v1453
    %v3019 = vpop.f32.mrb[0].mxu0
    %v3020 = vadd.f32 0.0, %v3019
    %v3021 = vpop.f32.mrb[0].mxu0
    %v3022 = vadd.f32 0.0, %v3021
    %v3023 = vpop.f32.mrb[0].mxu0
    %v3024 = vadd.f32 0.0, %v3023
    %v3025 = vpop.f32.mrb[0].mxu0
    %v3026 = vadd.f32 0.0, %v3025
    %3027 = vmatprep.mubr.bf16.mxu0 0
    %3028 = vmatmul.mubr.bf16.gmra.mrb[0].mxu0 %v1454
    %v3029 = vpop.f32.mrb[0].mxu0
    %v3030 = vadd.f32 0.0, %v3029
    %v3031 = vpop.f32.mrb[0].mxu0
    %v3032 = vadd.f32 0.0, %v3031
    %v3033 = vpop.f32.mrb[0].mxu0
    %v3034 = vadd.f32 0.0, %v3033
    %v3035 = vpop.f32.mrb[0].mxu0
    %v3036 = vadd.f32 0.0, %v3035
    %3037 = vmatprep.mubr.bf16.mxu0 0
    %3038 = vmatmul.mubr.bf16.gmra.mrb[0].mxu0 %v1455
    %v3039 = vpop.f32.mrb[0].mxu0
    %v3040 = vadd.f32 0.0, %v3039
    %v3041 = vpop.f32.mrb[0].mxu0
    %v3042 = vadd.f32 0.0, %v3041
    %v3043 = vpop.f32.mrb[0].mxu0
    %v3044 = vadd.f32 0.0, %v3043
    %v3045 = vpop.f32.mrb[0].mxu0
    %v3046 = vadd.f32 0.0, %v3045
    %3047 = vmatprep.mubr.bf16.mxu0 0
    %3048 = vmatmul.mubr.bf16.gmra.mrb[0].mxu0 %v1456
    %v3049 = vpop.f32.mrb[0].mxu0
    %v3050 = vadd.f32 0.0, %v3049
    %v3051 = vpop.f32.mrb[0].mxu0
    %v3052 = vadd.f32 0.0, %v3051
    %v3053 = vpop.f32.mrb[0].mxu0
    %v3054 = vadd.f32 0.0, %v3053
    %v3055 = vpop.f32.mrb[0].mxu0
    %v3056 = vadd.f32 0.0, %v3055
    %3057 = vmatprep.mubr.bf16.mxu0 0
    %3058 = vmatmul.mubr.bf16.gmra.mrb[0].mxu0 %v1457
    %v3059 = vpop.f32.mrb[0].mxu0
    %v3060 = vadd.f32 0.0, %v3059
    %v3061 = vpop.f32.mrb[0].mxu0
    %v3062 = vadd.f32 0.0, %v3061
    %v3063 = vpop.f32.mrb[0].mxu0
    %v3064 = vadd.f32 0.0, %v3063
    %v3065 = vpop.f32.mrb[0].mxu0
    %v3066 = vadd.f32 0.0, %v3065
    %3067 = vmatprep.mubr.bf16.mxu0 0
    %3068 = vmatmul.mubr.bf16.gmra.mrb[0].mxu0 %v1458
    %v3069 = vpop.f32.mrb[0].mxu0
    %v3070 = vadd.f32 0.0, %v3069
    %v3071 = vpop.f32.mrb[0].mxu0
    %v3072 = vadd.f32 0.0, %v3071
    %v3073 = vpop.f32.mrb[0].mxu0
    %v3074 = vadd.f32 0.0, %v3073
    %v3075 = vpop.f32.mrb[0].mxu0
    %v3076 = vadd.f32 0.0, %v3075
    %3077 = vdwg.mxu0
    %v3078 = vmax.f32 %v2760, %v2770
    %v3079 = vmax.f32 %v2764, %v2774
    %v3080 = vmax.f32 %v3078, %v2780
    %v3081 = vmax.f32 %v3079, %v2784
    %v3082 = vmax.f32 %v3080, %v2790
    %v3083 = vmax.f32 %v3081, %v2794
    %v3084 = vmax.f32 %v3082, %v2800
    %v3085 = vmax.f32 %v3083, %v2804
    %v3086 = vmax.f32 %v3084, %v2810
    %v3087 = vmax.f32 %v3085, %v2814
    %v3088 = vmax.f32 %v3086, %v2820
    %v3089 = vmax.f32 %v3087, %v2824
    %v3090 = vmax.f32 %v3088, %v2830
    %v3091 = vmax.f32 %v3089, %v2834
    %v3092 = vmax.f32 %v3090, %v2840
    %v3093 = vmax.f32 %v3091, %v2844
    %v3094 = vmax.f32 %v3092, %v2850
    %v3095 = vmax.f32 %v3093, %v2854
    %v3096 = vmax.f32 %v3094, %v2860
    %v3097 = vmax.f32 %v3095, %v2864
    %v3098 = vmax.f32 %v3096, %v2870
    %v3099 = vmax.f32 %v3097, %v2874
    %v3100 = vmax.f32 %v3098, %v2880
    %v3101 = vmax.f32 %v3099, %v2884
    %v3102 = vmax.f32 %v3100, %v2890
    %v3103 = vmax.f32 %v3101, %v2894
    %v3104 = vmax.f32 %v3102, %v2900
    %v3105 = vmax.f32 %v3103, %v2904
    %v3106 = vmax.f32 %v3104, %v2910
    %v3107 = vmax.f32 %v3105, %v2914
    %v3108 = vmax.f32 %v3106, %v3107
    %v3109 = vmax.f32 %v2762, %v2772
    %v3110 = vmax.f32 %v2766, %v2776
    %v3111 = vmax.f32 %v3109, %v2782
    %v3112 = vmax.f32 %v3110, %v2786
    %v3113 = vmax.f32 %v3111, %v2792
    %v3114 = vmax.f32 %v3112, %v2796
    %v3115 = vmax.f32 %v3113, %v2802
    %v3116 = vmax.f32 %v3114, %v2806
    %v3117 = vmax.f32 %v3115, %v2812
    %v3118 = vmax.f32 %v3116, %v2816
    %v3119 = vmax.f32 %v3117, %v2822
    %v3120 = vmax.f32 %v3118, %v2826
    %v3121 = vmax.f32 %v3119, %v2832
    %v3122 = vmax.f32 %v3120, %v2836
    %v3123 = vmax.f32 %v3121, %v2842
    %v3124 = vmax.f32 %v3122, %v2846
    %v3125 = vmax.f32 %v3123, %v2852
    %v3126 = vmax.f32 %v3124, %v2856
    %v3127 = vmax.f32 %v3125, %v2862
    %v3128 = vmax.f32 %v3126, %v2866
    %v3129 = vmax.f32 %v3127, %v2872
    %v3130 = vmax.f32 %v3128, %v2876
    %v3131 = vmax.f32 %v3129, %v2882
    %v3132 = vmax.f32 %v3130, %v2886
    %v3133 = vmax.f32 %v3131, %v2892
    %v3134 = vmax.f32 %v3132, %v2896
    %v3135 = vmax.f32 %v3133, %v2902
    %v3136 = vmax.f32 %v3134, %v2906
    %v3137 = vmax.f32 %v3135, %v2912
    %v3138 = vmax.f32 %v3136, %v2916
    %v3139 = vmax.f32 %v3137, %v3138
    %v3140 = vld [vmem:[#allocation2 + $0x20] sm:$0xff]
    %v3141 = vld [vmem:[#allocation2 + $0x28] sm:$0xff]
    %v3142 = vmax.f32 %v3140, %v3108
    %v3143 = vmax.f32 %v3141, %v3139
    %3144 = vst [vmem:[#allocation2 + $0x20] sm:$0xff] %v3142
    %3145 = vst [vmem:[#allocation2 + $0x28] sm:$0xff] %v3143
    %v3146 = vmax.f32 %v2920, %v2930
    %v3147 = vmax.f32 %v2924, %v2934
    %v3148 = vmax.f32 %v3146, %v2940
    %v3149 = vmax.f32 %v3147, %v2944
    %v3150 = vmax.f32 %v3148, %v2950
    %v3151 = vmax.f32 %v3149, %v2954
    %v3152 = vmax.f32 %v3150, %v2960
    %v3153 = vmax.f32 %v3151, %v2964
    %v3154 = vmax.f32 %v3152, %v2970
    %v3155 = vmax.f32 %v3153, %v2974
    %v3156 = vmax.f32 %v3154, %v2980
    %v3157 = vmax.f32 %v3155, %v2984
    %v3158 = vmax.f32 %v3156, %v2990
    %v3159 = vmax.f32 %v3157, %v2994
    %v3160 = vmax.f32 %v3158, %v3000
    %v3161 = vmax.f32 %v3159, %v3004
    %v3162 = vmax.f32 %v3160, %v3010
    %v3163 = vmax.f32 %v3161, %v3014
    %v3164 = vmax.f32 %v3162, %v3020
    %v3165 = vmax.f32 %v3163, %v3024
    %v3166 = vmax.f32 %v3164, %v3030
    %v3167 = vmax.f32 %v3165, %v3034
    %v3168 = vmax.f32 %v3166, %v3040
    %v3169 = vmax.f32 %v3167, %v3044
    %v3170 = vmax.f32 %v3168, %v3050
    %v3171 = vmax.f32 %v3169, %v3054
    %v3172 = vmax.f32 %v3170, %v3060
    %v3173 = vmax.f32 %v3171, %v3064
    %v3174 = vmax.f32 %v3172, %v3070
    %v3175 = vmax.f32 %v3173, %v3074
    %v3176 = vmax.f32 %v3174, %v3175
    %v3177 = vmax.f32 %v2922, %v2932
    %v3178 = vmax.f32 %v2926, %v2936
    %v3179 = vmax.f32 %v3177, %v2942
    %v3180 = vmax.f32 %v3178, %v2946
    %v3181 = vmax.f32 %v3179, %v2952
    %v3182 = vmax.f32 %v3180, %v2956
    %v3183 = vmax.f32 %v3181, %v2962
    %v3184 = vmax.f32 %v3182, %v2966
    %v3185 = vmax.f32 %v3183, %v2972
    %v3186 = vmax.f32 %v3184, %v2976
    %v3187 = vmax.f32 %v3185, %v2982
    %v3188 = vmax.f32 %v3186, %v2986
    %v3189 = vmax.f32 %v3187, %v2992
    %v3190 = vmax.f32 %v3188, %v2996
    %v3191 = vmax.f32 %v3189, %v3002
    %v3192 = vmax.f32 %v3190, %v3006
    %v3193 = vmax.f32 %v3191, %v3012
    %v3194 = vmax.f32 %v3192, %v3016
    %v3195 = vmax.f32 %v3193, %v3022
    %v3196 = vmax.f32 %v3194, %v3026
    %v3197 = vmax.f32 %v3195, %v3032
    %v3198 = vmax.f32 %v3196, %v3036
    %v3199 = vmax.f32 %v3197, %v3042
    %v3200 = vmax.f32 %v3198, %v3046
    %v3201 = vmax.f32 %v3199, %v3052
    %v3202 = vmax.f32 %v3200, %v3056
    %v3203 = vmax.f32 %v3201, %v3062
    %v3204 = vmax.f32 %v3202, %v3066
    %v3205 = vmax.f32 %v3203, %v3072
    %v3206 = vmax.f32 %v3204, %v3076
    %v3207 = vmax.f32 %v3205, %v3206
    %v3208 = vld [vmem:[#allocation2 + $0x60] sm:$0xff]
    %v3209 = vld [vmem:[#allocation2 + $0x68] sm:$0xff]
    %v3210 = vmax.f32 %v3208, %v3176
    %v3211 = vmax.f32 %v3209, %v3207
    %3212 = vst [vmem:[#allocation2 + $0x60] sm:$0xff] %v3210
    %3213 = vst [vmem:[#allocation2 + $0x68] sm:$0xff] %v3211
    %v3214 = vld [vmem:[%s5 + $0x18] sm:$0xff]
    %v3215 = vld [vmem:[%s5 + $0x38] sm:$0xff]
    %v3216 = vld [vmem:[%s5 + $0x58] sm:$0xff]
    %v3217 = vld [vmem:[%s5 + $0x78] sm:$0xff]
    %v3218 = vld [vmem:[%s5 + $0x98] sm:$0xff]
    %v3219 = vld [vmem:[%s5 + $0xb8] sm:$0xff]
    %v3220 = vld [vmem:[%s5 + $0xd8] sm:$0xff]
    %v3221 = vld [vmem:[%s5 + $0xf8] sm:$0xff]
    %v3222 = vld [vmem:[%s5 + $0x118] sm:$0xff]
    %v3223 = vld [vmem:[%s5 + $0x138] sm:$0xff]
    %v3224 = vld [vmem:[%s5 + $0x158] sm:$0xff]
    %v3225 = vld [vmem:[%s5 + $0x178] sm:$0xff]
    %v3226 = vld [vmem:[%s5 + $0x198] sm:$0xff]
    %v3227 = vld [vmem:[%s5 + $0x1b8] sm:$0xff]
    %v3228 = vld [vmem:[%s5 + $0x1d8] sm:$0xff]
    %v3229 = vld [vmem:[%s5 + $0x1f8] sm:$0xff]
    %v3246 = vunpack.c.l.b16 %v3214
    %v3247 = vunpack.c.h.b16 %v3214
    %v3248 = vunpack.c.l.b16 %v3215
    %v3249 = vunpack.c.h.b16 %v3215
    %v3250 = vunpack.c.l.b16 %v3216
    %v3251 = vunpack.c.h.b16 %v3216
    %v3252 = vunpack.c.l.b16 %v3217
    %v3253 = vunpack.c.h.b16 %v3217
    %v3254 = vunpack.c.l.b16 %v3218
    %v3255 = vunpack.c.h.b16 %v3218
    %v3256 = vunpack.c.l.b16 %v3219
    %v3257 = vunpack.c.h.b16 %v3219
    %v3258 = vunpack.c.l.b16 %v3220
    %v3259 = vunpack.c.h.b16 %v3220
    %v3260 = vunpack.c.l.b16 %v3221
    %v3261 = vunpack.c.h.b16 %v3221
    %v3262 = vunpack.c.l.b16 %v3222
    %v3263 = vunpack.c.h.b16 %v3222
    %v3264 = vunpack.c.l.b16 %v3223
    %v3265 = vunpack.c.h.b16 %v3223
    %v3266 = vunpack.c.l.b16 %v3224
    %v3267 = vunpack.c.h.b16 %v3224
    %v3268 = vunpack.c.l.b16 %v3225
    %v3269 = vunpack.c.h.b16 %v3225
    %v3270 = vunpack.c.l.b16 %v3226
    %v3271 = vunpack.c.h.b16 %v3226
    %v3272 = vunpack.c.l.b16 %v3227
    %v3273 = vunpack.c.h.b16 %v3227
    %v3274 = vunpack.c.l.b16 %v3228
    %v3275 = vunpack.c.h.b16 %v3228
    %v3276 = vunpack.c.l.b16 %v3229
    %v3277 = vunpack.c.h.b16 %v3229
    %v3278 = vpack.c.b16 %v3248, %v3246
    %v3279 = vpack.c.b16 %v3249, %v3247
    %v3280 = vpack.c.b16 %v3252, %v3250
    %v3281 = vpack.c.b16 %v3253, %v3251
    %v3282 = vpack.c.b16 %v3256, %v3254
    %v3283 = vpack.c.b16 %v3257, %v3255
    %v3284 = vpack.c.b16 %v3260, %v3258
    %v3285 = vpack.c.b16 %v3261, %v3259
    %v3286 = vpack.c.b16 %v3264, %v3262
    %v3287 = vpack.c.b16 %v3265, %v3263
    %v3288 = vpack.c.b16 %v3268, %v3266
    %v3289 = vpack.c.b16 %v3269, %v3267
    %v3290 = vpack.c.b16 %v3272, %v3270
    %v3291 = vpack.c.b16 %v3273, %v3271
    %v3292 = vpack.c.b16 %v3276, %v3274
    %v3293 = vpack.c.b16 %v3277, %v3275
    %3310 = vmatprep.subr.bf16.mxu0 %v3279
    %3311 = vmatpush1.bf16.msra.mxu0 %v3278
    %3312 = vmatprep.subr.bf16.mxu0 %v3281
    %3313 = vmatpush1.bf16.msra.mxu0 %v3280
    %3314 = vmatprep.subr.bf16.mxu0 %v3283
    %3315 = vmatpush1.bf16.msra.mxu0 %v3282
    %3316 = vmatprep.subr.bf16.mxu0 %v3285
    %3317 = vmatpush1.bf16.msra.mxu0 %v3284
    %3318 = vmatprep.subr.bf16.mxu0 %v3287
    %3319 = vmatpush1.bf16.msra.mxu0 %v3286
    %3320 = vmatprep.subr.bf16.mxu0 %v3289
    %3321 = vmatpush1.bf16.msra.mxu0 %v3288
    %3322 = vmatprep.subr.bf16.mxu0 %v3291
    %3323 = vmatpush1.bf16.msra.mxu0 %v3290
    %3324 = vmatprep.subr.bf16.mxu0 %v3293
    %3325 = vmatpush1.bf16.msra.mxu0 %v3292
    %3326 = vmatprep.subr.bf16.mxu0 0
    %3327 = vmatpush1.bf16.msra.mxu0 0
    %3328 = vmatprep.subr.bf16.mxu0 0
    %3329 = vmatpush1.bf16.msra.mxu0 0
    %3330 = vmatprep.subr.bf16.mxu0 0
    %3331 = vmatpush1.bf16.msra.mxu0 0
    %3332 = vmatprep.subr.bf16.mxu0 0
    %3333 = vmatpush1.bf16.msra.mxu0 0
    %3334 = vmatprep.subr.bf16.mxu0 0
    %3335 = vmatpush1.bf16.msra.mxu0 0
    %3336 = vmatprep.subr.bf16.mxu0 0
    %3337 = vmatpush1.bf16.msra.mxu0 0
    %3338 = vmatprep.subr.bf16.mxu0 0
    %3339 = vmatpush1.bf16.msra.mxu0 0
    %3340 = vmatprep.subr.bf16.mxu0 0
    %3341 = vmatpush1.bf16.msra.mxu0 0
    %3342 = vmatprep.mubr.bf16.mxu0 0
    %3343 = vmatmul.mubr.bf16.gmra.mrb[0].mxu0 %v1427
    %v3344 = vpop.f32.mrb[0].mxu0
    %v3345 = vadd.f32 0.0, %v3344
    %v3346 = vpop.f32.mrb[0].mxu0
    %v3347 = vadd.f32 0.0, %v3346
    %v3348 = vpop.f32.mrb[0].mxu0
    %v3349 = vadd.f32 0.0, %v3348
    %v3350 = vpop.f32.mrb[0].mxu0
    %v3351 = vadd.f32 0.0, %v3350
    %3352 = vmatprep.mubr.bf16.mxu0 0
    %3353 = vmatmul.mubr.bf16.gmra.mrb[0].mxu0 %v1428
    %v3354 = vpop.f32.mrb[0].mxu0
    %v3355 = vadd.f32 0.0, %v3354
    %v3356 = vpop.f32.mrb[0].mxu0
    %v3357 = vadd.f32 0.0, %v3356
    %v3358 = vpop.f32.mrb[0].mxu0
    %v3359 = vadd.f32 0.0, %v3358
    %v3360 = vpop.f32.mrb[0].mxu0
    %v3361 = vadd.f32 0.0, %v3360
    %3362 = vmatprep.mubr.bf16.mxu0 0
    %3363 = vmatmul.mubr.bf16.gmra.mrb[0].mxu0 %v1429
    %v3364 = vpop.f32.mrb[0].mxu0
    %v3365 = vadd.f32 0.0, %v3364
    %v3366 = vpop.f32.mrb[0].mxu0
    %v3367 = vadd.f32 0.0, %v3366
    %v3368 = vpop.f32.mrb[0].mxu0
    %v3369 = vadd.f32 0.0, %v3368
    %v3370 = vpop.f32.mrb[0].mxu0
    %v3371 = vadd.f32 0.0, %v3370
    %3372 = vmatprep.mubr.bf16.mxu0 0
    %3373 = vmatmul.mubr.bf16.gmra.mrb[0].mxu0 %v1430
    %v3374 = vpop.f32.mrb[0].mxu0
    %v3375 = vadd.f32 0.0, %v3374
    %v3376 = vpop.f32.mrb[0].mxu0
    %v3377 = vadd.f32 0.0, %v3376
    %v3378 = vpop.f32.mrb[0].mxu0
    %v3379 = vadd.f32 0.0, %v3378
    %v3380 = vpop.f32.mrb[0].mxu0
    %v3381 = vadd.f32 0.0, %v3380
    %3382 = vmatprep.mubr.bf16.mxu0 0
    %3383 = vmatmul.mubr.bf16.gmra.mrb[0].mxu0 %v1431
    %v3384 = vpop.f32.mrb[0].mxu0
    %v3385 = vadd.f32 0.0, %v3384
    %v3386 = vpop.f32.mrb[0].mxu0
    %v3387 = vadd.f32 0.0, %v3386
    %v3388 = vpop.f32.mrb[0].mxu0
    %v3389 = vadd.f32 0.0, %v3388
    %v3390 = vpop.f32.mrb[0].mxu0
    %v3391 = vadd.f32 0.0, %v3390
    %3392 = vmatprep.mubr.bf16.mxu0 0
    %3393 = vmatmul.mubr.bf16.gmra.mrb[0].mxu0 %v1432
    %v3394 = vpop.f32.mrb[0].mxu0
    %v3395 = vadd.f32 0.0, %v3394
    %v3396 = vpop.f32.mrb[0].mxu0
    %v3397 = vadd.f32 0.0, %v3396
    %v3398 = vpop.f32.mrb[0].mxu0
    %v3399 = vadd.f32 0.0, %v3398
    %v3400 = vpop.f32.mrb[0].mxu0
    %v3401 = vadd.f32 0.0, %v3400
    %3402 = vmatprep.mubr.bf16.mxu0 0
    %3403 = vmatmul.mubr.bf16.gmra.mrb[0].mxu0 %v1433
    %v3404 = vpop.f32.mrb[0].mxu0
    %v3405 = vadd.f32 0.0, %v3404
    %v3406 = vpop.f32.mrb[0].mxu0
    %v3407 = vadd.f32 0.0, %v3406
    %v3408 = vpop.f32.mrb[0].mxu0
    %v3409 = vadd.f32 0.0, %v3408
    %v3410 = vpop.f32.mrb[0].mxu0
    %v3411 = vadd.f32 0.0, %v3410
    %3412 = vmatprep.mubr.bf16.mxu0 0
    %3413 = vmatmul.mubr.bf16.gmra.mrb[0].mxu0 %v1434
    %v3414 = vpop.f32.mrb[0].mxu0
    %v3415 = vadd.f32 0.0, %v3414
    %v3416 = vpop.f32.mrb[0].mxu0
    %v3417 = vadd.f32 0.0, %v3416
    %v3418 = vpop.f32.mrb[0].mxu0
    %v3419 = vadd.f32 0.0, %v3418
    %v3420 = vpop.f32.mrb[0].mxu0
    %v3421 = vadd.f32 0.0, %v3420
    %3422 = vmatprep.mubr.bf16.mxu0 0
    %3423 = vmatmul.mubr.bf16.gmra.mrb[0].mxu0 %v1435
    %v3424 = vpop.f32.mrb[0].mxu0
    %v3425 = vadd.f32 0.0, %v3424
    %v3426 = vpop.f32.mrb[0].mxu0
    %v3427 = vadd.f32 0.0, %v3426
    %v3428 = vpop.f32.mrb[0].mxu0
    %v3429 = vadd.f32 0.0, %v3428
    %v3430 = vpop.f32.mrb[0].mxu0
    %v3431 = vadd.f32 0.0, %v3430
    %3432 = vmatprep.mubr.bf16.mxu0 0
    %3433 = vmatmul.mubr.bf16.gmra.mrb[0].mxu0 %v1436
    %v3434 = vpop.f32.mrb[0].mxu0
    %v3435 = vadd.f32 0.0, %v3434
    %v3436 = vpop.f32.mrb[0].mxu0
    %v3437 = vadd.f32 0.0, %v3436
    %v3438 = vpop.f32.mrb[0].mxu0
    %v3439 = vadd.f32 0.0, %v3438
    %v3440 = vpop.f32.mrb[0].mxu0
    %v3441 = vadd.f32 0.0, %v3440
    %3442 = vmatprep.mubr.bf16.mxu0 0
    %3443 = vmatmul.mubr.bf16.gmra.mrb[0].mxu0 %v1437
    %v3444 = vpop.f32.mrb[0].mxu0
    %v3445 = vadd.f32 0.0, %v3444
    %v3446 = vpop.f32.mrb[0].mxu0
    %v3447 = vadd.f32 0.0, %v3446
    %v3448 = vpop.f32.mrb[0].mxu0
    %v3449 = vadd.f32 0.0, %v3448
    %v3450 = vpop.f32.mrb[0].mxu0
    %v3451 = vadd.f32 0.0, %v3450
    %3452 = vmatprep.mubr.bf16.mxu0 0
    %3453 = vmatmul.mubr.bf16.gmra.mrb[0].mxu0 %v1438
    %v3454 = vpop.f32.mrb[0].mxu0
    %v3455 = vadd.f32 0.0, %v3454
    %v3456 = vpop.f32.mrb[0].mxu0
    %v3457 = vadd.f32 0.0, %v3456
    %v3458 = vpop.f32.mrb[0].mxu0
    %v3459 = vadd.f32 0.0, %v3458
    %v3460 = vpop.f32.mrb[0].mxu0
    %v3461 = vadd.f32 0.0, %v3460
    %3462 = vmatprep.mubr.bf16.mxu0 0
    %3463 = vmatmul.mubr.bf16.gmra.mrb[0].mxu0 %v1439
    %v3464 = vpop.f32.mrb[0].mxu0
    %v3465 = vadd.f32 0.0, %v3464
    %v3466 = vpop.f32.mrb[0].mxu0
    %v3467 = vadd.f32 0.0, %v3466
    %v3468 = vpop.f32.mrb[0].mxu0
    %v3469 = vadd.f32 0.0, %v3468
    %v3470 = vpop.f32.mrb[0].mxu0
    %v3471 = vadd.f32 0.0, %v3470
    %3472 = vmatprep.mubr.bf16.mxu0 0
    %3473 = vmatmul.mubr.bf16.gmra.mrb[0].mxu0 %v1440
    %v3474 = vpop.f32.mrb[0].mxu0
    %v3475 = vadd.f32 0.0, %v3474
    %v3476 = vpop.f32.mrb[0].mxu0
    %v3477 = vadd.f32 0.0, %v3476
    %v3478 = vpop.f32.mrb[0].mxu0
    %v3479 = vadd.f32 0.0, %v3478
    %v3480 = vpop.f32.mrb[0].mxu0
    %v3481 = vadd.f32 0.0, %v3480
    %3482 = vmatprep.mubr.bf16.mxu0 0
    %3483 = vmatmul.mubr.bf16.gmra.mrb[0].mxu0 %v1441
    %v3484 = vpop.f32.mrb[0].mxu0
    %v3485 = vadd.f32 0.0, %v3484
    %v3486 = vpop.f32.mrb[0].mxu0
    %v3487 = vadd.f32 0.0, %v3486
    %v3488 = vpop.f32.mrb[0].mxu0
    %v3489 = vadd.f32 0.0, %v3488
    %v3490 = vpop.f32.mrb[0].mxu0
    %v3491 = vadd.f32 0.0, %v3490
    %3492 = vmatprep.mubr.bf16.mxu0 0
    %3493 = vmatmul.mubr.bf16.gmra.mrb[0].mxu0 %v1442
    %v3494 = vpop.f32.mrb[0].mxu0
    %v3495 = vadd.f32 0.0, %v3494
    %v3496 = vpop.f32.mrb[0].mxu0
    %v3497 = vadd.f32 0.0, %v3496
    %v3498 = vpop.f32.mrb[0].mxu0
    %v3499 = vadd.f32 0.0, %v3498
    %v3500 = vpop.f32.mrb[0].mxu0
    %v3501 = vadd.f32 0.0, %v3500
    %3502 = vmatprep.mubr.bf16.mxu0 0
    %3503 = vmatmul.mubr.bf16.gmra.mrb[0].mxu0 %v1443
    %v3504 = vpop.f32.mrb[0].mxu0
    %v3505 = vadd.f32 0.0, %v3504
    %v3506 = vpop.f32.mrb[0].mxu0
    %v3507 = vadd.f32 0.0, %v3506
    %v3508 = vpop.f32.mrb[0].mxu0
    %v3509 = vadd.f32 0.0, %v3508
    %v3510 = vpop.f32.mrb[0].mxu0
    %v3511 = vadd.f32 0.0, %v3510
    %3512 = vmatprep.mubr.bf16.mxu0 0
    %3513 = vmatmul.mubr.bf16.gmra.mrb[0].mxu0 %v1444
    %v3514 = vpop.f32.mrb[0].mxu0
    %v3515 = vadd.f32 0.0, %v3514
    %v3516 = vpop.f32.mrb[0].mxu0
    %v3517 = vadd.f32 0.0, %v3516
    %v3518 = vpop.f32.mrb[0].mxu0
    %v3519 = vadd.f32 0.0, %v3518
    %v3520 = vpop.f32.mrb[0].mxu0
    %v3521 = vadd.f32 0.0, %v3520
    %3522 = vmatprep.mubr.bf16.mxu0 0
    %3523 = vmatmul.mubr.bf16.gmra.mrb[0].mxu0 %v1445
    %v3524 = vpop.f32.mrb[0].mxu0
    %v3525 = vadd.f32 0.0, %v3524
    %v3526 = vpop.f32.mrb[0].mxu0
    %v3527 = vadd.f32 0.0, %v3526
    %v3528 = vpop.f32.mrb[0].mxu0
    %v3529 = vadd.f32 0.0, %v3528
    %v3530 = vpop.f32.mrb[0].mxu0
    %v3531 = vadd.f32 0.0, %v3530
    %3532 = vmatprep.mubr.bf16.mxu0 0
    %3533 = vmatmul.mubr.bf16.gmra.mrb[0].mxu0 %v1446
    %v3534 = vpop.f32.mrb[0].mxu0
    %v3535 = vadd.f32 0.0, %v3534
    %v3536 = vpop.f32.mrb[0].mxu0
    %v3537 = vadd.f32 0.0, %v3536
    %v3538 = vpop.f32.mrb[0].mxu0
    %v3539 = vadd.f32 0.0, %v3538
    %v3540 = vpop.f32.mrb[0].mxu0
    %v3541 = vadd.f32 0.0, %v3540
    %3542 = vmatprep.mubr.bf16.mxu0 0
    %3543 = vmatmul.mubr.bf16.gmra.mrb[0].mxu0 %v1447
    %v3544 = vpop.f32.mrb[0].mxu0
    %v3545 = vadd.f32 0.0, %v3544
    %v3546 = vpop.f32.mrb[0].mxu0
    %v3547 = vadd.f32 0.0, %v3546
    %v3548 = vpop.f32.mrb[0].mxu0
    %v3549 = vadd.f32 0.0, %v3548
    %v3550 = vpop.f32.mrb[0].mxu0
    %v3551 = vadd.f32 0.0, %v3550
    %3552 = vmatprep.mubr.bf16.mxu0 0
    %3553 = vmatmul.mubr.bf16.gmra.mrb[0].mxu0 %v1448
    %v3554 = vpop.f32.mrb[0].mxu0
    %v3555 = vadd.f32 0.0, %v3554
    %v3556 = vpop.f32.mrb[0].mxu0
    %v3557 = vadd.f32 0.0, %v3556
    %v3558 = vpop.f32.mrb[0].mxu0
    %v3559 = vadd.f32 0.0, %v3558
    %v3560 = vpop.f32.mrb[0].mxu0
    %v3561 = vadd.f32 0.0, %v3560
    %3562 = vmatprep.mubr.bf16.mxu0 0
    %3563 = vmatmul.mubr.bf16.gmra.mrb[0].mxu0 %v1449
    %v3564 = vpop.f32.mrb[0].mxu0
    %v3565 = vadd.f32 0.0, %v3564
    %v3566 = vpop.f32.mrb[0].mxu0
    %v3567 = vadd.f32 0.0, %v3566
    %v3568 = vpop.f32.mrb[0].mxu0
    %v3569 = vadd.f32 0.0, %v3568
    %v3570 = vpop.f32.mrb[0].mxu0
    %v3571 = vadd.f32 0.0, %v3570
    %3572 = vmatprep.mubr.bf16.mxu0 0
    %3573 = vmatmul.mubr.bf16.gmra.mrb[0].mxu0 %v1450
    %v3574 = vpop.f32.mrb[0].mxu0
    %v3575 = vadd.f32 0.0, %v3574
    %v3576 = vpop.f32.mrb[0].mxu0
    %v3577 = vadd.f32 0.0, %v3576
    %v3578 = vpop.f32.mrb[0].mxu0
    %v3579 = vadd.f32 0.0, %v3578
    %v3580 = vpop.f32.mrb[0].mxu0
    %v3581 = vadd.f32 0.0, %v3580
    %3582 = vmatprep.mubr.bf16.mxu0 0
    %3583 = vmatmul.mubr.bf16.gmra.mrb[0].mxu0 %v1451
    %v3584 = vpop.f32.mrb[0].mxu0
    %v3585 = vadd.f32 0.0, %v3584
    %v3586 = vpop.f32.mrb[0].mxu0
    %v3587 = vadd.f32 0.0, %v3586
    %v3588 = vpop.f32.mrb[0].mxu0
    %v3589 = vadd.f32 0.0, %v3588
    %v3590 = vpop.f32.mrb[0].mxu0
    %v3591 = vadd.f32 0.0, %v3590
    %3592 = vmatprep.mubr.bf16.mxu0 0
    %3593 = vmatmul.mubr.bf16.gmra.mrb[0].mxu0 %v1452
    %v3594 = vpop.f32.mrb[0].mxu0
    %v3595 = vadd.f32 0.0, %v3594
    %v3596 = vpop.f32.mrb[0].mxu0
    %v3597 = vadd.f32 0.0, %v3596
    %v3598 = vpop.f32.mrb[0].mxu0
    %v3599 = vadd.f32 0.0, %v3598
    %v3600 = vpop.f32.mrb[0].mxu0
    %v3601 = vadd.f32 0.0, %v3600
    %3602 = vmatprep.mubr.bf16.mxu0 0
    %3603 = vmatmul.mubr.bf16.gmra.mrb[0].mxu0 %v1453
    %v3604 = vpop.f32.mrb[0].mxu0
    %v3605 = vadd.f32 0.0, %v3604
    %v3606 = vpop.f32.mrb[0].mxu0
    %v3607 = vadd.f32 0.0, %v3606
    %v3608 = vpop.f32.mrb[0].mxu0
    %v3609 = vadd.f32 0.0, %v3608
    %v3610 = vpop.f32.mrb[0].mxu0
    %v3611 = vadd.f32 0.0, %v3610
    %3612 = vmatprep.mubr.bf16.mxu0 0
    %3613 = vmatmul.mubr.bf16.gmra.mrb[0].mxu0 %v1454
    %v3614 = vpop.f32.mrb[0].mxu0
    %v3615 = vadd.f32 0.0, %v3614
    %v3616 = vpop.f32.mrb[0].mxu0
    %v3617 = vadd.f32 0.0, %v3616
    %v3618 = vpop.f32.mrb[0].mxu0
    %v3619 = vadd.f32 0.0, %v3618
    %v3620 = vpop.f32.mrb[0].mxu0
    %v3621 = vadd.f32 0.0, %v3620
    %3622 = vmatprep.mubr.bf16.mxu0 0
    %3623 = vmatmul.mubr.bf16.gmra.mrb[0].mxu0 %v1455
    %v3624 = vpop.f32.mrb[0].mxu0
    %v3625 = vadd.f32 0.0, %v3624
    %v3626 = vpop.f32.mrb[0].mxu0
    %v3627 = vadd.f32 0.0, %v3626
    %v3628 = vpop.f32.mrb[0].mxu0
    %v3629 = vadd.f32 0.0, %v3628
    %v3630 = vpop.f32.mrb[0].mxu0
    %v3631 = vadd.f32 0.0, %v3630
    %3632 = vmatprep.mubr.bf16.mxu0 0
    %3633 = vmatmul.mubr.bf16.gmra.mrb[0].mxu0 %v1456
    %v3634 = vpop.f32.mrb[0].mxu0
    %v3635 = vadd.f32 0.0, %v3634
    %v3636 = vpop.f32.mrb[0].mxu0
    %v3637 = vadd.f32 0.0, %v3636
    %v3638 = vpop.f32.mrb[0].mxu0
    %v3639 = vadd.f32 0.0, %v3638
    %v3640 = vpop.f32.mrb[0].mxu0
    %v3641 = vadd.f32 0.0, %v3640
    %3642 = vmatprep.mubr.bf16.mxu0 0
    %3643 = vmatmul.mubr.bf16.gmra.mrb[0].mxu0 %v1457
    %v3644 = vpop.f32.mrb[0].mxu0
    %v3645 = vadd.f32 0.0, %v3644
    %v3646 = vpop.f32.mrb[0].mxu0
    %v3647 = vadd.f32 0.0, %v3646
    %v3648 = vpop.f32.mrb[0].mxu0
    %v3649 = vadd.f32 0.0, %v3648
    %v3650 = vpop.f32.mrb[0].mxu0
    %v3651 = vadd.f32 0.0, %v3650
    %3652 = vmatprep.mubr.bf16.mxu0 0
    %3653 = vmatmul.mubr.bf16.gmra.mrb[0].mxu0 %v1458
    %v3654 = vpop.f32.mrb[0].mxu0
    %v3655 = vadd.f32 0.0, %v3654
    %v3656 = vpop.f32.mrb[0].mxu0
    %v3657 = vadd.f32 0.0, %v3656
    %v3658 = vpop.f32.mrb[0].mxu0
    %v3659 = vadd.f32 0.0, %v3658
    %v3660 = vpop.f32.mrb[0].mxu0
    %v3661 = vadd.f32 0.0, %v3660
    %3662 = vdwg.mxu0
    %v3663 = vmax.f32 %v3345, %v3355
    %v3664 = vmax.f32 %v3349, %v3359
    %v3665 = vmax.f32 %v3663, %v3365
    %v3666 = vmax.f32 %v3664, %v3369
    %v3667 = vmax.f32 %v3665, %v3375
    %v3668 = vmax.f32 %v3666, %v3379
    %v3669 = vmax.f32 %v3667, %v3385
    %v3670 = vmax.f32 %v3668, %v3389
    %v3671 = vmax.f32 %v3669, %v3395
    %v3672 = vmax.f32 %v3670, %v3399
    %v3673 = vmax.f32 %v3671, %v3405
    %v3674 = vmax.f32 %v3672, %v3409
    %v3675 = vmax.f32 %v3673, %v3415
    %v3676 = vmax.f32 %v3674, %v3419
    %v3677 = vmax.f32 %v3675, %v3425
    %v3678 = vmax.f32 %v3676, %v3429
    %v3679 = vmax.f32 %v3677, %v3435
    %v3680 = vmax.f32 %v3678, %v3439
    %v3681 = vmax.f32 %v3679, %v3445
    %v3682 = vmax.f32 %v3680, %v3449
    %v3683 = vmax.f32 %v3681, %v3455
    %v3684 = vmax.f32 %v3682, %v3459
    %v3685 = vmax.f32 %v3683, %v3465
    %v3686 = vmax.f32 %v3684, %v3469
    %v3687 = vmax.f32 %v3685, %v3475
    %v3688 = vmax.f32 %v3686, %v3479
    %v3689 = vmax.f32 %v3687, %v3485
    %v3690 = vmax.f32 %v3688, %v3489
    %v3691 = vmax.f32 %v3689, %v3495
    %v3692 = vmax.f32 %v3690, %v3499
    %v3693 = vmax.f32 %v3691, %v3692
    %v3694 = vmax.f32 %v3347, %v3357
    %v3695 = vmax.f32 %v3351, %v3361
    %v3696 = vmax.f32 %v3694, %v3367
    %v3697 = vmax.f32 %v3695, %v3371
    %v3698 = vmax.f32 %v3696, %v3377
    %v3699 = vmax.f32 %v3697, %v3381
    %v3700 = vmax.f32 %v3698, %v3387
    %v3701 = vmax.f32 %v3699, %v3391
    %v3702 = vmax.f32 %v3700, %v3397
    %v3703 = vmax.f32 %v3701, %v3401
    %v3704 = vmax.f32 %v3702, %v3407
    %v3705 = vmax.f32 %v3703, %v3411
    %v3706 = vmax.f32 %v3704, %v3417
    %v3707 = vmax.f32 %v3705, %v3421
    %v3708 = vmax.f32 %v3706, %v3427
    %v3709 = vmax.f32 %v3707, %v3431
    %v3710 = vmax.f32 %v3708, %v3437
    %v3711 = vmax.f32 %v3709, %v3441
    %v3712 = vmax.f32 %v3710, %v3447
    %v3713 = vmax.f32 %v3711, %v3451
    %v3714 = vmax.f32 %v3712, %v3457
    %v3715 = vmax.f32 %v3713, %v3461
    %v3716 = vmax.f32 %v3714, %v3467
    %v3717 = vmax.f32 %v3715, %v3471
    %v3718 = vmax.f32 %v3716, %v3477
    %v3719 = vmax.f32 %v3717, %v3481
    %v3720 = vmax.f32 %v3718, %v3487
    %v3721 = vmax.f32 %v3719, %v3491
    %v3722 = vmax.f32 %v3720, %v3497
    %v3723 = vmax.f32 %v3721, %v3501
    %v3724 = vmax.f32 %v3722, %v3723
    %v3725 = vld [vmem:[#allocation2 + $0x30] sm:$0xff]
    %v3726 = vld [vmem:[#allocation2 + $0x38] sm:$0xff]
    %v3727 = vmax.f32 %v3725, %v3693
    %v3728 = vmax.f32 %v3726, %v3724
    %3729 = vst [vmem:[#allocation2 + $0x30] sm:$0xff] %v3727
    %3730 = vst [vmem:[#allocation2 + $0x38] sm:$0xff] %v3728
    %v3731 = vmax.f32 %v3505, %v3515
    %v3732 = vmax.f32 %v3509, %v3519
    %v3733 = vmax.f32 %v3731, %v3525
    %v3734 = vmax.f32 %v3732, %v3529
    %v3735 = vmax.f32 %v3733, %v3535
    %v3736 = vmax.f32 %v3734, %v3539
    %v3737 = vmax.f32 %v3735, %v3545
    %v3738 = vmax.f32 %v3736, %v3549
    %v3739 = vmax.f32 %v3737, %v3555
    %v3740 = vmax.f32 %v3738, %v3559
    %v3741 = vmax.f32 %v3739, %v3565
    %v3742 = vmax.f32 %v3740, %v3569
    %v3743 = vmax.f32 %v3741, %v3575
    %v3744 = vmax.f32 %v3742, %v3579
    %v3745 = vmax.f32 %v3743, %v3585
    %v3746 = vmax.f32 %v3744, %v3589
    %v3747 = vmax.f32 %v3745, %v3595
    %v3748 = vmax.f32 %v3746, %v3599
    %v3749 = vmax.f32 %v3747, %v3605
    %v3750 = vmax.f32 %v3748, %v3609
    %v3751 = vmax.f32 %v3749, %v3615
    %v3752 = vmax.f32 %v3750, %v3619
    %v3753 = vmax.f32 %v3751, %v3625
    %v3754 = vmax.f32 %v3752, %v3629
    %v3755 = vmax.f32 %v3753, %v3635
    %v3756 = vmax.f32 %v3754, %v3639
    %v3757 = vmax.f32 %v3755, %v3645
    %v3758 = vmax.f32 %v3756, %v3649
    %v3759 = vmax.f32 %v3757, %v3655
    %v3760 = vmax.f32 %v3758, %v3659
    %v3761 = vmax.f32 %v3759, %v3760
    %v3762 = vmax.f32 %v3507, %v3517
    %v3763 = vmax.f32 %v3511, %v3521
    %v3764 = vmax.f32 %v3762, %v3527
    %v3765 = vmax.f32 %v3763, %v3531
    %v3766 = vmax.f32 %v3764, %v3537
    %v3767 = vmax.f32 %v3765, %v3541
    %v3768 = vmax.f32 %v3766, %v3547
    %v3769 = vmax.f32 %v3767, %v3551
    %v3770 = vmax.f32 %v3768, %v3557
    %v3771 = vmax.f32 %v3769, %v3561
    %v3772 = vmax.f32 %v3770, %v3567
    %v3773 = vmax.f32 %v3771, %v3571
    %v3774 = vmax.f32 %v3772, %v3577
    %v3775 = vmax.f32 %v3773, %v3581
    %v3776 = vmax.f32 %v3774, %v3587
    %v3777 = vmax.f32 %v3775, %v3591
    %v3778 = vmax.f32 %v3776, %v3597
    %v3779 = vmax.f32 %v3777, %v3601
    %v3780 = vmax.f32 %v3778, %v3607
    %v3781 = vmax.f32 %v3779, %v3611
    %v3782 = vmax.f32 %v3780, %v3617
    %v3783 = vmax.f32 %v3781, %v3621
    %v3784 = vmax.f32 %v3782, %v3627
    %v3785 = vmax.f32 %v3783, %v3631
    %v3786 = vmax.f32 %v3784, %v3637
    %v3787 = vmax.f32 %v3785, %v3641
    %v3788 = vmax.f32 %v3786, %v3647
    %v3789 = vmax.f32 %v3787, %v3651
    %v3790 = vmax.f32 %v3788, %v3657
    %v3791 = vmax.f32 %v3789, %v3661
    %v3792 = vmax.f32 %v3790, %v3791
    %v3793 = vld [vmem:[#allocation2 + $0x70] sm:$0xff]
    %v3794 = vld [vmem:[#allocation2 + $0x78] sm:$0xff]
    %v3795 = vmax.f32 %v3793, %v3761
    %v3796 = vmax.f32 %v3794, %v3792
    %3797 = vst [vmem:[#allocation2 + $0x70] sm:$0xff] %v3795
    %3798 = vst [vmem:[#allocation2 + $0x78] sm:$0xff] %v3796
    // Predicated region
    $region50: #{stn3d_forward.1} parent=1 // pred_check
      %p3799 = pneg %p96
    $region51: #{stn3d_forward.1} parent=1 // pred_check_branch
      %3801 = sbr.rel (%p3799) target = $region53
    $region52: #{stn3d_forward.1} parent=1 // pred_region
      %v3802 = vld [vmem:[#allocation2] sm:$0xff]
      %v3803 = vld [vmem:[#allocation2 + $0x8] sm:$0xff]
      %v3804 = vld [vmem:[#allocation2 + $0x10] sm:$0xff]
      %v3805 = vld [vmem:[#allocation2 + $0x18] sm:$0xff]
      %v3806 = vld [vmem:[#allocation2 + $0x20] sm:$0xff]
      %v3807 = vld [vmem:[#allocation2 + $0x28] sm:$0xff]
      %v3808 = vld [vmem:[#allocation2 + $0x30] sm:$0xff]
      %v3809 = vld [vmem:[#allocation2 + $0x38] sm:$0xff]
      %v3810 = vrot.slane %v3802, 4
      %v3811 = vmax.f32 %v3802, %v3810
      %v3812 = vrot.slane %v3811, 2
      %v3813 = vmax.f32 %v3811, %v3812
      %v3814 = vrot.slane %v3813, 1
      %v3815 = vmax.f32 %v3813, %v3814
      %v3816 = vrot.slane %v3803, 4
      %v3817 = vmax.f32 %v3803, %v3816
      %v3818 = vrot.slane %v3817, 2
      %v3819 = vmax.f32 %v3817, %v3818
      %v3820 = vrot.slane %v3819, 1
      %v3821 = vmax.f32 %v3819, %v3820
      %v3822 = vrot.slane %v3804, 4
      %v3823 = vmax.f32 %v3804, %v3822
      %v3824 = vrot.slane %v3823, 2
      %v3825 = vmax.f32 %v3823, %v3824
      %v3826 = vrot.slane %v3825, 1
      %v3827 = vmax.f32 %v3825, %v3826
      %v3828 = vrot.slane %v3805, 4
      %v3829 = vmax.f32 %v3805, %v3828
      %v3830 = vrot.slane %v3829, 2
      %v3831 = vmax.f32 %v3829, %v3830
      %v3832 = vrot.slane %v3831, 1
      %v3833 = vmax.f32 %v3831, %v3832
      %v3834 = vrot.slane %v3806, 4
      %v3835 = vmax.f32 %v3806, %v3834
      %v3836 = vrot.slane %v3835, 2
      %v3837 = vmax.f32 %v3835, %v3836
      %v3838 = vrot.slane %v3837, 1
      %v3839 = vmax.f32 %v3837, %v3838
      %v3840 = vrot.slane %v3807, 4
      %v3841 = vmax.f32 %v3807, %v3840
      %v3842 = vrot.slane %v3841, 2
      %v3843 = vmax.f32 %v3841, %v3842
      %v3844 = vrot.slane %v3843, 1
      %v3845 = vmax.f32 %v3843, %v3844
      %v3846 = vrot.slane %v3808, 4
      %v3847 = vmax.f32 %v3808, %v3846
      %v3848 = vrot.slane %v3847, 2
      %v3849 = vmax.f32 %v3847, %v3848
      %v3850 = vrot.slane %v3849, 1
      %v3851 = vmax.f32 %v3849, %v3850
      %v3852 = vrot.slane %v3809, 4
      %v3853 = vmax.f32 %v3809, %v3852
      %v3854 = vrot.slane %v3853, 2
      %v3855 = vmax.f32 %v3853, %v3854
      %v3856 = vrot.slane %v3855, 1
      %v3857 = vmax.f32 %v3855, %v3856
      %v3858 = vld [vmem:[#allocation8] sm:$0xff]
      %v3860 = vlaneseq
      %v3861 = vshrl.u32 %v3860, 7
      %v3862 = vsub.s32 0, %v3861
      %v3863 = vrot.slane %v3858, %v3862
      %v3864 = vlaneseq
      %v3865 = vshrl.u32 %v3864, 7
      %v3866 = vsub.s32 1, %v3865
      %v3867 = vrot.slane %v3858, %v3866
      %v3868 = vlaneseq
      %v3869 = vshrl.u32 %v3868, 7
      %v3870 = vsub.s32 2, %v3869
      %v3871 = vrot.slane %v3858, %v3870
      %v3872 = vlaneseq
      %v3873 = vshrl.u32 %v3872, 7
      %v3874 = vsub.s32 3, %v3873
      %v3875 = vrot.slane %v3858, %v3874
      %v3876 = vlaneseq
      %v3877 = vshrl.u32 %v3876, 7
      %v3878 = vsub.s32 4, %v3877
      %v3879 = vrot.slane %v3858, %v3878
      %v3880 = vlaneseq
      %v3881 = vshrl.u32 %v3880, 7
      %v3882 = vsub.s32 5, %v3881
      %v3883 = vrot.slane %v3858, %v3882
      %v3884 = vlaneseq
      %v3885 = vshrl.u32 %v3884, 7
      %v3886 = vsub.s32 6, %v3885
      %v3887 = vrot.slane %v3858, %v3886
      %v3888 = vlaneseq
      %v3889 = vshrl.u32 %v3888, 7
      %v3890 = vsub.s32 7, %v3889
      %v3891 = vrot.slane %v3858, %v3890
      %v3900 = vadd.f32 %v3815, %v3863
      %v3901 = vadd.f32 %v3821, %v3867
      %v3902 = vadd.f32 %v3827, %v3871
      %v3903 = vadd.f32 %v3833, %v3875
      %v3904 = vadd.f32 %v3839, %v3879
      %v3905 = vadd.f32 %v3845, %v3883
      %v3906 = vadd.f32 %v3851, %v3887
      %v3907 = vadd.f32 %v3857, %v3891
      %v3908 = vmax.f32 %v3900, 0.0
      %v3909 = vmax.f32 %v3901, 0.0
      %v3910 = vmax.f32 %v3902, 0.0
      %v3911 = vmax.f32 %v3903, 0.0
      %v3912 = vmax.f32 %v3904, 0.0
      %v3913 = vmax.f32 %v3905, 0.0
      %v3914 = vmax.f32 %v3906, 0.0
      %v3915 = vmax.f32 %v3907, 0.0
      %v3924 = vcombine.low %v3908, %v3909
      %v3925 = vcombine.low %v3910, %v3911
      %v3926 = vcombine.low %v3912, %v3913
      %v3927 = vcombine.low %v3914, %v3915
      %v3929 = vunpack.c.l.s4 1966171168
      %v3930 = vunpack.c.0.s8 %v3929
      %v3931 = vlaneseq
      %v3932 = vshrl.u32 %v3931, 7
      %v3933 = vsub.s32 %v3930, %v3932
      %v3934 = vrot.slane %v3924, %v3933
      %v3936 = vunpack.c.l.s4 1966171168
      %v3937 = vunpack.c.0.s8 %v3936
      %v3938 = vlaneseq
      %v3939 = vshrl.u32 %v3938, 7
      %v3940 = vsub.s32 %v3937, %v3939
      %v3941 = vrot.slane %v3925, %v3940
      %v3943 = vunpack.c.l.s4 1966171168
      %v3944 = vunpack.c.0.s8 %v3943
      %v3945 = vlaneseq
      %v3946 = vshrl.u32 %v3945, 7
      %v3947 = vsub.s32 %v3944, %v3946
      %v3948 = vrot.slane %v3926, %v3947
      %v3950 = vunpack.c.l.s4 1966171168
      %v3951 = vunpack.c.0.s8 %v3950
      %v3952 = vlaneseq
      %v3953 = vshrl.u32 %v3952, 7
      %v3954 = vsub.s32 %v3951, %v3953
      %v3955 = vrot.slane %v3927, %v3954
      %v3956 = vcombine.low %v3934, %v3941
      %v3957 = vcombine.low %v3948, %v3955
      %v3959 = vunpack.c.l.s4 1966171168
      %v3960 = vunpack.c.0.s8 %v3959
      %v3961 = vlaneseq
      %v3962 = vshrl.u32 %v3961, 7
      %v3963 = vsub.s32 %v3960, %v3962
      %v3964 = vrot.slane %v3956, %v3963
      %v3966 = vunpack.c.l.s4 1966171168
      %v3967 = vunpack.c.0.s8 %v3966
      %v3968 = vlaneseq
      %v3969 = vshrl.u32 %v3968, 7
      %v3970 = vsub.s32 %v3967, %v3969
      %v3971 = vrot.slane %v3957, %v3970
      %v3972 = vcombine.low %v3964, %v3971
      %3974 = vst [vmem:[%s7] ss:$2 sm:$0xff] %v3972
      %v3975 = vld [vmem:[#allocation2 + $0x40] sm:$0xff]
      %v3976 = vld [vmem:[#allocation2 + $0x48] sm:$0xff]
      %v3977 = vld [vmem:[#allocation2 + $0x50] sm:$0xff]
      %v3978 = vld [vmem:[#allocation2 + $0x58] sm:$0xff]
      %v3979 = vld [vmem:[#allocation2 + $0x60] sm:$0xff]
      %v3980 = vld [vmem:[#allocation2 + $0x68] sm:$0xff]
      %v3981 = vld [vmem:[#allocation2 + $0x70] sm:$0xff]
      %v3982 = vld [vmem:[#allocation2 + $0x78] sm:$0xff]
      %v3983 = vrot.slane %v3975, 4
      %v3984 = vmax.f32 %v3975, %v3983
      %v3985 = vrot.slane %v3984, 2
      %v3986 = vmax.f32 %v3984, %v3985
      %v3987 = vrot.slane %v3986, 1
      %v3988 = vmax.f32 %v3986, %v3987
      %v3989 = vrot.slane %v3976, 4
      %v3990 = vmax.f32 %v3976, %v3989
      %v3991 = vrot.slane %v3990, 2
      %v3992 = vmax.f32 %v3990, %v3991
      %v3993 = vrot.slane %v3992, 1
      %v3994 = vmax.f32 %v3992, %v3993
      %v3995 = vrot.slane %v3977, 4
      %v3996 = vmax.f32 %v3977, %v3995
      %v3997 = vrot.slane %v3996, 2
      %v3998 = vmax.f32 %v3996, %v3997
      %v3999 = vrot.slane %v3998, 1
      %v4000 = vmax.f32 %v3998, %v3999
      %v4001 = vrot.slane %v3978, 4
      %v4002 = vmax.f32 %v3978, %v4001
      %v4003 = vrot.slane %v4002, 2
      %v4004 = vmax.f32 %v4002, %v4003
      %v4005 = vrot.slane %v4004, 1
      %v4006 = vmax.f32 %v4004, %v4005
      %v4007 = vrot.slane %v3979, 4
      %v4008 = vmax.f32 %v3979, %v4007
      %v4009 = vrot.slane %v4008, 2
      %v4010 = vmax.f32 %v4008, %v4009
      %v4011 = vrot.slane %v4010, 1
      %v4012 = vmax.f32 %v4010, %v4011
      %v4013 = vrot.slane %v3980, 4
      %v4014 = vmax.f32 %v3980, %v4013
      %v4015 = vrot.slane %v4014, 2
      %v4016 = vmax.f32 %v4014, %v4015
      %v4017 = vrot.slane %v4016, 1
      %v4018 = vmax.f32 %v4016, %v4017
      %v4019 = vrot.slane %v3981, 4
      %v4020 = vmax.f32 %v3981, %v4019
      %v4021 = vrot.slane %v4020, 2
      %v4022 = vmax.f32 %v4020, %v4021
      %v4023 = vrot.slane %v4022, 1
      %v4024 = vmax.f32 %v4022, %v4023
      %v4025 = vrot.slane %v3982, 4
      %v4026 = vmax.f32 %v3982, %v4025
      %v4027 = vrot.slane %v4026, 2
      %v4028 = vmax.f32 %v4026, %v4027
      %v4029 = vrot.slane %v4028, 1
      %v4030 = vmax.f32 %v4028, %v4029
      %v4031 = vld [vmem:[#allocation8] sm:$0xff]
      %v4033 = vlaneseq
      %v4034 = vshrl.u32 %v4033, 7
      %v4035 = vsub.s32 0, %v4034
      %v4036 = vrot.slane %v4031, %v4035
      %v4037 = vlaneseq
      %v4038 = vshrl.u32 %v4037, 7
      %v4039 = vsub.s32 1, %v4038
      %v4040 = vrot.slane %v4031, %v4039
      %v4041 = vlaneseq
      %v4042 = vshrl.u32 %v4041, 7
      %v4043 = vsub.s32 2, %v4042
      %v4044 = vrot.slane %v4031, %v4043
      %v4045 = vlaneseq
      %v4046 = vshrl.u32 %v4045, 7
      %v4047 = vsub.s32 3, %v4046
      %v4048 = vrot.slane %v4031, %v4047
      %v4049 = vlaneseq
      %v4050 = vshrl.u32 %v4049, 7
      %v4051 = vsub.s32 4, %v4050
      %v4052 = vrot.slane %v4031, %v4051
      %v4053 = vlaneseq
      %v4054 = vshrl.u32 %v4053, 7
      %v4055 = vsub.s32 5, %v4054
      %v4056 = vrot.slane %v4031, %v4055
      %v4057 = vlaneseq
      %v4058 = vshrl.u32 %v4057, 7
      %v4059 = vsub.s32 6, %v4058
      %v4060 = vrot.slane %v4031, %v4059
      %v4061 = vlaneseq
      %v4062 = vshrl.u32 %v4061, 7
      %v4063 = vsub.s32 7, %v4062
      %v4064 = vrot.slane %v4031, %v4063
      %v4073 = vadd.f32 %v3988, %v4036
      %v4074 = vadd.f32 %v3994, %v4040
      %v4075 = vadd.f32 %v4000, %v4044
      %v4076 = vadd.f32 %v4006, %v4048
      %v4077 = vadd.f32 %v4012, %v4052
      %v4078 = vadd.f32 %v4018, %v4056
      %v4079 = vadd.f32 %v4024, %v4060
      %v4080 = vadd.f32 %v4030, %v4064
      %v4081 = vmax.f32 %v4073, 0.0
      %v4082 = vmax.f32 %v4074, 0.0
      %v4083 = vmax.f32 %v4075, 0.0
      %v4084 = vmax.f32 %v4076, 0.0
      %v4085 = vmax.f32 %v4077, 0.0
      %v4086 = vmax.f32 %v4078, 0.0
      %v4087 = vmax.f32 %v4079, 0.0
      %v4088 = vmax.f32 %v4080, 0.0
      %v4097 = vcombine.low %v4081, %v4082
      %v4098 = vcombine.low %v4083, %v4084
      %v4099 = vcombine.low %v4085, %v4086
      %v4100 = vcombine.low %v4087, %v4088
      %v4102 = vunpack.c.l.s4 1966171168
      %v4103 = vunpack.c.0.s8 %v4102
      %v4104 = vlaneseq
      %v4105 = vshrl.u32 %v4104, 7
      %v4106 = vsub.s32 %v4103, %v4105
      %v4107 = vrot.slane %v4097, %v4106
      %v4109 = vunpack.c.l.s4 1966171168
      %v4110 = vunpack.c.0.s8 %v4109
      %v4111 = vlaneseq
      %v4112 = vshrl.u32 %v4111, 7
      %v4113 = vsub.s32 %v4110, %v4112
      %v4114 = vrot.slane %v4098, %v4113
      %v4116 = vunpack.c.l.s4 1966171168
      %v4117 = vunpack.c.0.s8 %v4116
      %v4118 = vlaneseq
      %v4119 = vshrl.u32 %v4118, 7
      %v4120 = vsub.s32 %v4117, %v4119
      %v4121 = vrot.slane %v4099, %v4120
      %v4123 = vunpack.c.l.s4 1966171168
      %v4124 = vunpack.c.0.s8 %v4123
      %v4125 = vlaneseq
      %v4126 = vshrl.u32 %v4125, 7
      %v4127 = vsub.s32 %v4124, %v4126
      %v4128 = vrot.slane %v4100, %v4127
      %v4129 = vcombine.low %v4107, %v4114
      %v4130 = vcombine.low %v4121, %v4128
      %v4132 = vunpack.c.l.s4 1966171168
      %v4133 = vunpack.c.0.s8 %v4132
      %v4134 = vlaneseq
      %v4135 = vshrl.u32 %v4134, 7
      %v4136 = vsub.s32 %v4133, %v4135
      %v4137 = vrot.slane %v4129, %v4136
      %v4139 = vunpack.c.l.s4 1966171168
      %v4140 = vunpack.c.0.s8 %v4139
      %v4141 = vlaneseq
      %v4142 = vshrl.u32 %v4141, 7
      %v4143 = vsub.s32 %v4140, %v4142
      %v4144 = vrot.slane %v4130, %v4143
      %v4145 = vcombine.low %v4137, %v4144
      %s4147 = scalar_lea.vmem %s7, 1
      %4148 = vst [vmem:[%s4147] ss:$2 sm:$0xff] %v4145
    $region53: #{stn3d_forward.1} parent=1 // pred_fallthru
      _
    // Predicated region
    $region54: #{stn3d_forward.1} parent=1 // pred_check
      _
    $region55: #{stn3d_forward.1} parent=1 // pred_check_branch
      %4150 = sbr.rel (0) target = $region57
    $region56: #{stn3d_forward.1} parent=1 // pred_region
      _
    $region57: #{stn3d_forward.1} parent=1 // pred_fallthru
      _
    // Predicated region
    $region58: #{stn3d_forward.1} parent=1 // pred_check
      _
    $region59: #{stn3d_forward.1} parent=1 // pred_check_branch
      %4152 = sbr.rel (0) target = $region61
    $region60: #{stn3d_forward.1} parent=1 // pred_region
      _
    $region61: #{stn3d_forward.1} parent=1 // pred_fallthru
      _
    %4153 = vsyncpa [#allocation4], 1
    %4154 = vsyncpa [#allocation6], 1
    %4155 = vsyncpa [#allocation9], 1

</llo_original>
